<compile_context>
chip_gen: v6e
topology: v6e:2x2x1
jax: 0.10.0
libtpu: 0.0.40
codegen_flags: <defaults>
</compile_context>

<pallas_src>
import jax
import jax.numpy as jnp
from jax.experimental import pallas as pl
from jax.experimental.pallas import tpu as pltpu

MODEL_CONFIG_GNN = [(11, 128), (128, 128), (128, 128), (128, 64)]
MODEL_CONFIG_MLP = [(64, 128), (128, 64), (64, 1)]

# bf16 matmuls are ~2-4x faster on the MXU but introduce ~1e-2 relative
# deviation vs the f32 PyTorch reference; keep exact f32 by default.
USE_BF16_MATMUL = False


# ---------------------------------------------------------------------------
# Fused kernel: 4x GNN layer -> mean pool -> 3-layer MLP, one batch tile/step
# ---------------------------------------------------------------------------
def _fused_gnn_kernel(adj_ref, h_ref,
                      gw0, gb0, gw1, gb1, gw2, gb2, gw3, gb3,
                      mw0, mb0, mw1, mb1, mw2, mb2,
                      o_ref):
    adj = adj_ref[...]                                        # (bt, n, n)
    bt, n, _ = adj.shape

    # Exact row normalization (matches torch adj / (adj.sum(2) + 1e-6)),
    # computed once per tile.  Fold the residual into the operator:
    # A_hat = I + norm_adj, so each layer is ReLU((A_hat @ h) W + b).
    row_sum = jnp.sum(adj, axis=2, keepdims=True) + 1e-6
    rows = jax.lax.broadcasted_iota(jnp.int32, (n, n), 0)
    cols = jax.lax.broadcasted_iota(jnp.int32, (n, n), 1)
    eye = jnp.where(rows == cols, 1.0, 0.0).astype(jnp.float32)
    a_hat = adj / row_sum + eye[None]                         # (bt, n, n)

    def aggregate(h):
        # (I + norm_adj) @ h.  For small n, per-graph (n,n)@(n,F) matmuls run
        # the MXU at a few-% occupancy, so do a VPU multiply-accumulate over
        # the n neighbours instead (n is static -> Python unroll); F (the
        # wide dim) stays on the lane axis for every op.
        if n >= 64:
            return jnp.einsum('bij,bjf->bif', a_hat, h,
                              preferred_element_type=jnp.float32)
        acc = a_hat[:, :, 0:1] * h[:, 0:1, :]
        for j in range(1, n):
            acc = acc + a_hat[:, :, j:j + 1] * h[:, j:j + 1, :]
        return acc

    def dense(x, w_ref, b_ref=None):
        w = w_ref[...]
        if USE_BF16_MATMUL:
            out = jnp.dot(x.astype(jnp.bfloat16), w.astype(jnp.bfloat16),
                          preferred_element_type=jnp.float32)
        else:
            out = jnp.dot(x, w, preferred_element_type=jnp.float32)
        if b_ref is not None:
            out = out + b_ref[...]
        return out

    # GNN layers 0-2: aggregate (11/128-wide), then fold batch into M for one
    # MXU-shaped (bt*n, Fin) @ (Fin, Fout) matmul, bias + ReLU.
    h = h_ref[...]                                            # (bt, n, 11)
    for w_ref, b_ref in ((gw0, gb0), (gw1, gb1), (gw2, gb2)):
        fin = h.shape[-1]
        comb = aggregate(h).reshape(bt * n, fin)
        h = jnp.maximum(dense(comb, w_ref, b_ref), 0.0)
        h = h.reshape(bt, n, h.shape[-1])

    # GNN layer 3 (128 -> 64): ((I+A)h)W == (I+A)(hW) -- matmul first, then
    # aggregate the 64-wide result (half the VPU aggregation work).
    hw = dense(h.reshape(bt * n, h.shape[-1]), gw3).reshape(bt, n, -1)
    h = jnp.maximum(aggregate(hw) + gb3[...], 0.0)            # (bt, n, 64)

    # Global mean pooling over nodes + MLP head, all VMEM-resident.
    pooled = jnp.mean(h, axis=1)                              # (bt, 64)
    x = jnp.maximum(dense(pooled, mw0, mb0), 0.0)             # (bt, 128)
    x = jnp.maximum(dense(x, mw1, mb1), 0.0)                  # (bt, 64)
    # Final 64 -> 1 projection: VPU multiply + lane reduction (mw2 is passed
    # as a (1, 64) row) instead of a degenerate 1-column MXU matmul.
    o_ref[...] = jnp.sum(x * mw2[...], axis=-1, keepdims=True) + mb2[...]


# ---------------------------------------------------------------------------
# Wrapper
# ---------------------------------------------------------------------------
def _round_up(x, m):
    return (x + m - 1) // m * m


def _full_spec(shape):
    nd = len(shape)
    return pl.BlockSpec(shape, lambda i, _nd=nd: (0,) * _nd)


def simple_gnn_forward(params, h, adj):
    B, N, f_in = h.shape
    assert f_in == MODEL_CONFIG_GNN[0][0]
    assert adj.shape == (B, N, N)

    # Flatten parameters. Biases become (1, fout) rows; the final 64->1
    # projection is passed as a (1, 64) row for the in-kernel VPU reduction.
    gnn_p = list(params["gnn"])
    mlp_p = list(params["mlp"])
    flat = []
    for (w, b) in gnn_p + mlp_p[:-1]:
        flat += [w, b.reshape(1, -1)]
    w_last, b_last = mlp_p[-1]
    flat += [w_last.reshape(1, -1), b_last.reshape(1, 1)]

    # ---- generation-aware batch-tile sizing -------------------------------
    try:
        vmem_cap = int(pltpu.get_tpu_info().vmem_capacity_bytes)
        vmem_cap = max(vmem_cap, 32 << 20)
    except Exception:
        vmem_cap = 64 << 20            # conservative (v7x) fallback

    lp_n = _round_up(N, 128)           # adj's last dim is lane-padded in VMEM
    per_graph_bytes = 4 * (
        2 * N * lp_n                   # adj input tile, double-buffered
        + 2 * N * 128                  # h input tile (lane-padded), double-buffered
        + N * lp_n                     # A_hat = I + norm_adj, live across layers
        + 4 * N * 128                  # ~4 concurrently-live (N, 128) activations
    )
    param_bytes = 2 * sum(int(p.size) * p.dtype.itemsize for p in flat)
    ws_target = int(vmem_cap * 0.4)    # leave headroom for spills / pipelining
    bt = max(8, ((ws_target - param_bytes) // per_graph_bytes) // 8 * 8)

    b8 = _round_up(B, 8)
    bt = min(bt, b8, 1024)
    if b8 >= 16:
        # Keep >= 2 grid steps so the "parallel" batch axis can be split
        # across v7x's two TensorCores (harmless on single-TC v5e/v6e).
        bt = min(bt, _round_up((b8 + 1) // 2, 8))

    Bp = _round_up(B, bt)
    if Bp != B:  # zero-pad batch; padded graphs are harmless and sliced off
        h = jnp.pad(h, ((0, Bp - B), (0, 0), (0, 0)))
        adj = jnp.pad(adj, ((0, Bp - B), (0, 0), (0, 0)))

    in_specs = [
        pl.BlockSpec((bt, N, N), lambda i: (i, 0, 0)),        # adj tile
        pl.BlockSpec((bt, N, f_in), lambda i: (i, 0, 0)),     # h tile, unpadded
    ] + [_full_spec(p.shape) for p in flat]

    out = pl.pallas_call(
        _fused_gnn_kernel,
        out_shape=jax.ShapeDtypeStruct((Bp, 1), jnp.float32),
        grid=(Bp // bt,),
        in_specs=in_specs,
        out_specs=pl.BlockSpec((bt, 1), lambda i: (i, 0)),
        compiler_params=pltpu.CompilerParams(
            dimension_semantics=("parallel",),                # megacore-shardable
            vmem_limit_bytes=int(vmem_cap * 0.75),            # ~48MB v7x / ~96MB v5e-v6e
        ),
    )(adj, h, *flat)
    return out[:B]


# ---------------------------------------------------------------------------
# Pure-JAX reference (mirrors the PyTorch module) for a correctness check
# ---------------------------------------------------------------------------
def _reference_forward(params, h, adj):
    row_sum = jnp.sum(adj, axis=2, keepdims=True) + 1e-6
    norm_adj = adj / row_sum
    x = h
    for (w, b) in params["gnn"]:
        hp = jnp.einsum('bij,bjf->bif', norm_adj, x)
        x = jnp.maximum((x + hp) @ w + b, 0.0)
    y = jnp.mean(x, axis=1)
    for i, (w, b) in enumerate(params["mlp"]):
        y = y @ w + b
        if i < len(params["mlp"]) - 1:
            y = jnp.maximum(y, 0.0)
    return y


# ---------------------------------------------------------------------------
# Deterministic parameter init (synthetic; no checkpoint loading)
# ---------------------------------------------------------------------------
def init_params(key):
    params = {"gnn": [], "mlp": []}
    for name, cfg in (("gnn", MODEL_CONFIG_GNN), ("mlp", MODEL_CONFIG_MLP)):
        for (fin, fout) in cfg:
            key, kw, kb = jax.random.split(key, 3)
            scale = 1.0 / jnp.sqrt(jnp.float32(fin))
            w = jax.random.uniform(kw, (fin, fout), jnp.float32, -scale, scale)
            b = jax.random.uniform(kb, (fout,), jnp.float32, -scale, scale)
            params[name].append((w, b))
    return params


if __name__ == "__main__":
    B, N, F_IN = 2, 8, 11
    key = jax.random.PRNGKey(0)
    kh, ka, kp = jax.random.split(key, 3)

    h = jax.random.normal(kh, (B, N, F_IN), dtype=jnp.float32)
    adj_raw = jax.random.uniform(ka, (B, N, N), dtype=jnp.float32)
    # weighted, sparse-ish adjacency (non-negative edge weights)
    adj = jnp.where(adj_raw > 0.5, adj_raw, 0.0).astype(jnp.float32)

    params = init_params(kp)

    out = simple_gnn_forward(params, h, adj)
    out = jax.block_until_ready(out)
    assert out.shape == (B, 1) and out.dtype == jnp.float32

    ref = _reference_forward(params, h, adj)
    assert jnp.allclose(out, ref, rtol=5e-3, atol=5e-3), (out, ref)
    print("KERNEL_OK")
</pallas_src>

<mosaic_0001>
module attributes {stable_mosaic.version = 11 : i64} {
  func.func @_fused_gnn_kernel(%arg0: i32, %arg1: memref<8x8x8xf32, #tpu.memory_space<vmem>>, %arg2: memref<8x8x11xf32, #tpu.memory_space<vmem>>, %arg3: memref<11x128xf32, #tpu.memory_space<vmem>>, %arg4: memref<1x128xf32, #tpu.memory_space<vmem>>, %arg5: memref<128x128xf32, #tpu.memory_space<vmem>>, %arg6: memref<1x128xf32, #tpu.memory_space<vmem>>, %arg7: memref<128x128xf32, #tpu.memory_space<vmem>>, %arg8: memref<1x128xf32, #tpu.memory_space<vmem>>, %arg9: memref<128x64xf32, #tpu.memory_space<vmem>>, %arg10: memref<1x64xf32, #tpu.memory_space<vmem>>, %arg11: memref<64x128xf32, #tpu.memory_space<vmem>>, %arg12: memref<1x128xf32, #tpu.memory_space<vmem>>, %arg13: memref<128x64xf32, #tpu.memory_space<vmem>>, %arg14: memref<1x64xf32, #tpu.memory_space<vmem>>, %arg15: memref<1x64xf32, #tpu.memory_space<vmem>>, %arg16: memref<1x1xf32, #tpu.memory_space<vmem>>, %arg17: memref<8x1xf32, #tpu.memory_space<vmem>>) attributes {dimension_semantics = [#tpu.dimension_semantics<parallel>], iteration_bounds = array<i64: 1>, scalar_prefetch = 0 : i64, scratch_operands = 0 : i64, tpu.core_type = #tpu.core_type<tc>, window_params = [{transform_indices = @transform_0, window_bounds = array<i64: 8, 8, 8>}, {transform_indices = @transform_1, window_bounds = array<i64: 8, 8, 11>}, {pipeline_mode = #tpu.pipeline_mode<synchronous>, transform_indices = @transform_2, window_bounds = array<i64: 11, 128>}, {pipeline_mode = #tpu.pipeline_mode<synchronous>, transform_indices = @transform_3, window_bounds = array<i64: 1, 128>}, {pipeline_mode = #tpu.pipeline_mode<synchronous>, transform_indices = @transform_4, window_bounds = array<i64: 128, 128>}, {pipeline_mode = #tpu.pipeline_mode<synchronous>, transform_indices = @transform_5, window_bounds = array<i64: 1, 128>}, {pipeline_mode = #tpu.pipeline_mode<synchronous>, transform_indices = @transform_6, window_bounds = array<i64: 128, 128>}, {pipeline_mode = #tpu.pipeline_mode<synchronous>, transform_indices = @transform_7, window_bounds = array<i64: 1, 128>}, {pipeline_mode = #tpu.pipeline_mode<synchronous>, transform_indices = @transform_8, window_bounds = array<i64: 128, 64>}, {pipeline_mode = #tpu.pipeline_mode<synchronous>, transform_indices = @transform_9, window_bounds = array<i64: 1, 64>}, {pipeline_mode = #tpu.pipeline_mode<synchronous>, transform_indices = @transform_10, window_bounds = array<i64: 64, 128>}, {pipeline_mode = #tpu.pipeline_mode<synchronous>, transform_indices = @transform_11, window_bounds = array<i64: 1, 128>}, {pipeline_mode = #tpu.pipeline_mode<synchronous>, transform_indices = @transform_12, window_bounds = array<i64: 128, 64>}, {pipeline_mode = #tpu.pipeline_mode<synchronous>, transform_indices = @transform_13, window_bounds = array<i64: 1, 64>}, {pipeline_mode = #tpu.pipeline_mode<synchronous>, transform_indices = @transform_14, window_bounds = array<i64: 1, 64>}, {pipeline_mode = #tpu.pipeline_mode<synchronous>, transform_indices = @transform_15, window_bounds = array<i64: 1, 1>}, {transform_indices = @transform_16, window_bounds = array<i64: 8, 1>}]} {
    %c0 = arith.constant 0 : index
    %c0_0 = arith.constant 0 : index
    %c0_1 = arith.constant 0 : index
    %0 = vector.load %arg1[%c0, %c0_0, %c0_1] : memref<8x8x8xf32, #tpu.memory_space<vmem>>, vector<8x8x8xf32>
    %cst = arith.constant dense<0.000000e+00> : vector<8x8xf32>
    %1 = vector.multi_reduction <add>, %0, %cst [2] : vector<8x8x8xf32> to vector<8x8xf32>
    %2 = vector.shape_cast %1 : vector<8x8xf32> to vector<8x8x1xf32>
    %cst_2 = arith.constant 9.99999997E-7 : f32
    %3 = vector.broadcast %cst_2 : f32 to vector<8x8x1xf32>
    %4 = arith.addf %2, %3 : vector<8x8x1xf32>
    %5 = tpu.iota {dimensions = array<i32: 0>} : vector<8x8xi32>
    %6 = tpu.iota {dimensions = array<i32: 1>} : vector<8x8xi32>
    %7 = arith.cmpi eq, %5, %6 : vector<8x8xi32>
    %cst_3 = arith.constant 1.000000e+00 : f32
    %cst_4 = arith.constant 0.000000e+00 : f32
    %8 = vector.broadcast %cst_3 : f32 to vector<8x8xf32>
    %9 = vector.broadcast %cst_4 : f32 to vector<8x8xf32>
    %10 = arith.select %7, %8, %9 : vector<8x8xi1>, vector<8x8xf32>
    %11 = vector.broadcast %4 : vector<8x8x1xf32> to vector<8x8x8xf32>
    %12 = arith.divf %0, %11 : vector<8x8x8xf32>
    %13 = vector.shape_cast %10 : vector<8x8xf32> to vector<1x8x8xf32>
    %14 = vector.broadcast %13 : vector<1x8x8xf32> to vector<8x8x8xf32>
    %15 = arith.addf %12, %14 : vector<8x8x8xf32>
    %c0_5 = arith.constant 0 : index
    %c0_6 = arith.constant 0 : index
    %c0_7 = arith.constant 0 : index
    %16 = vector.load %arg2[%c0_5, %c0_6, %c0_7] : memref<8x8x11xf32, #tpu.memory_space<vmem>>, vector<8x8x11xf32>
    %17 = vector.extract_strided_slice %15 {offsets = [0, 0, 0], sizes = [8, 8, 1], strides = [1, 1, 1]} : vector<8x8x8xf32> to vector<8x8x1xf32>
    %18 = vector.extract_strided_slice %16 {offsets = [0, 0, 0], sizes = [8, 1, 11], strides = [1, 1, 1]} : vector<8x8x11xf32> to vector<8x1x11xf32>
    %19 = vector.broadcast %17 : vector<8x8x1xf32> to vector<8x8x11xf32>
    %20 = vector.broadcast %18 : vector<8x1x11xf32> to vector<8x8x11xf32>
    %21 = arith.mulf %19, %20 : vector<8x8x11xf32>
    %22 = vector.extract_strided_slice %15 {offsets = [0, 0, 1], sizes = [8, 8, 1], strides = [1, 1, 1]} : vector<8x8x8xf32> to vector<8x8x1xf32>
    %23 = vector.extract_strided_slice %16 {offsets = [0, 1, 0], sizes = [8, 1, 11], strides = [1, 1, 1]} : vector<8x8x11xf32> to vector<8x1x11xf32>
    %24 = vector.broadcast %22 : vector<8x8x1xf32> to vector<8x8x11xf32>
    %25 = vector.broadcast %23 : vector<8x1x11xf32> to vector<8x8x11xf32>
    %26 = arith.mulf %24, %25 : vector<8x8x11xf32>
    %27 = arith.addf %21, %26 : vector<8x8x11xf32>
    %28 = vector.extract_strided_slice %15 {offsets = [0, 0, 2], sizes = [8, 8, 1], strides = [1, 1, 1]} : vector<8x8x8xf32> to vector<8x8x1xf32>
    %29 = vector.extract_strided_slice %16 {offsets = [0, 2, 0], sizes = [8, 1, 11], strides = [1, 1, 1]} : vector<8x8x11xf32> to vector<8x1x11xf32>
    %30 = vector.broadcast %28 : vector<8x8x1xf32> to vector<8x8x11xf32>
    %31 = vector.broadcast %29 : vector<8x1x11xf32> to vector<8x8x11xf32>
    %32 = arith.mulf %30, %31 : vector<8x8x11xf32>
    %33 = arith.addf %27, %32 : vector<8x8x11xf32>
    %34 = vector.extract_strided_slice %15 {offsets = [0, 0, 3], sizes = [8, 8, 1], strides = [1, 1, 1]} : vector<8x8x8xf32> to vector<8x8x1xf32>
    %35 = vector.extract_strided_slice %16 {offsets = [0, 3, 0], sizes = [8, 1, 11], strides = [1, 1, 1]} : vector<8x8x11xf32> to vector<8x1x11xf32>
    %36 = vector.broadcast %34 : vector<8x8x1xf32> to vector<8x8x11xf32>
    %37 = vector.broadcast %35 : vector<8x1x11xf32> to vector<8x8x11xf32>
    %38 = arith.mulf %36, %37 : vector<8x8x11xf32>
    %39 = arith.addf %33, %38 : vector<8x8x11xf32>
    %40 = vector.extract_strided_slice %15 {offsets = [0, 0, 4], sizes = [8, 8, 1], strides = [1, 1, 1]} : vector<8x8x8xf32> to vector<8x8x1xf32>
    %41 = vector.extract_strided_slice %16 {offsets = [0, 4, 0], sizes = [8, 1, 11], strides = [1, 1, 1]} : vector<8x8x11xf32> to vector<8x1x11xf32>
    %42 = vector.broadcast %40 : vector<8x8x1xf32> to vector<8x8x11xf32>
    %43 = vector.broadcast %41 : vector<8x1x11xf32> to vector<8x8x11xf32>
    %44 = arith.mulf %42, %43 : vector<8x8x11xf32>
    %45 = arith.addf %39, %44 : vector<8x8x11xf32>
    %46 = vector.extract_strided_slice %15 {offsets = [0, 0, 5], sizes = [8, 8, 1], strides = [1, 1, 1]} : vector<8x8x8xf32> to vector<8x8x1xf32>
    %47 = vector.extract_strided_slice %16 {offsets = [0, 5, 0], sizes = [8, 1, 11], strides = [1, 1, 1]} : vector<8x8x11xf32> to vector<8x1x11xf32>
    %48 = vector.broadcast %46 : vector<8x8x1xf32> to vector<8x8x11xf32>
    %49 = vector.broadcast %47 : vector<8x1x11xf32> to vector<8x8x11xf32>
    %50 = arith.mulf %48, %49 : vector<8x8x11xf32>
    %51 = arith.addf %45, %50 : vector<8x8x11xf32>
    %52 = vector.extract_strided_slice %15 {offsets = [0, 0, 6], sizes = [8, 8, 1], strides = [1, 1, 1]} : vector<8x8x8xf32> to vector<8x8x1xf32>
    %53 = vector.extract_strided_slice %16 {offsets = [0, 6, 0], sizes = [8, 1, 11], strides = [1, 1, 1]} : vector<8x8x11xf32> to vector<8x1x11xf32>
    %54 = vector.broadcast %52 : vector<8x8x1xf32> to vector<8x8x11xf32>
    %55 = vector.broadcast %53 : vector<8x1x11xf32> to vector<8x8x11xf32>
    %56 = arith.mulf %54, %55 : vector<8x8x11xf32>
    %57 = arith.addf %51, %56 : vector<8x8x11xf32>
    %58 = vector.extract_strided_slice %15 {offsets = [0, 0, 7], sizes = [8, 8, 1], strides = [1, 1, 1]} : vector<8x8x8xf32> to vector<8x8x1xf32>
    %59 = vector.extract_strided_slice %16 {offsets = [0, 7, 0], sizes = [8, 1, 11], strides = [1, 1, 1]} : vector<8x8x11xf32> to vector<8x1x11xf32>
    %60 = vector.broadcast %58 : vector<8x8x1xf32> to vector<8x8x11xf32>
    %61 = vector.broadcast %59 : vector<8x1x11xf32> to vector<8x8x11xf32>
    %62 = arith.mulf %60, %61 : vector<8x8x11xf32>
    %63 = arith.addf %57, %62 : vector<8x8x11xf32>
    %64 = vector.shape_cast %63 : vector<8x8x11xf32> to vector<64x11xf32>
    %c0_8 = arith.constant 0 : index
    %c0_9 = arith.constant 0 : index
    %65 = vector.load %arg3[%c0_8, %c0_9] : memref<11x128xf32, #tpu.memory_space<vmem>>, vector<11x128xf32>
    %cst_10 = arith.constant dense<0.000000e+00> : vector<64x128xf32>
    %66 = tpu.matmul %64, %65, %cst_10 {dimension_numbers = #tpu.dot_dimension_numbers<[1], [0], [0], [1], [0, 0, 1, 1], [], []>} : vector<64x11xf32>, vector<11x128xf32>, vector<64x128xf32> -> vector<64x128xf32>
    %c0_11 = arith.constant 0 : index
    %c0_12 = arith.constant 0 : index
    %67 = vector.load %arg4[%c0_11, %c0_12] : memref<1x128xf32, #tpu.memory_space<vmem>>, vector<1x128xf32>
    %68 = vector.broadcast %67 : vector<1x128xf32> to vector<64x128xf32>
    %69 = arith.addf %66, %68 : vector<64x128xf32>
    %cst_13 = arith.constant 0.000000e+00 : f32
    %70 = vector.broadcast %cst_13 : f32 to vector<64x128xf32>
    %71 = arith.maximumf %69, %70 : vector<64x128xf32>
    %72 = vector.shape_cast %71 : vector<64x128xf32> to vector<8x8x128xf32>
    %73 = vector.extract_strided_slice %15 {offsets = [0, 0, 0], sizes = [8, 8, 1], strides = [1, 1, 1]} : vector<8x8x8xf32> to vector<8x8x1xf32>
    %74 = vector.extract_strided_slice %72 {offsets = [0, 0, 0], sizes = [8, 1, 128], strides = [1, 1, 1]} : vector<8x8x128xf32> to vector<8x1x128xf32>
    %75 = vector.broadcast %73 : vector<8x8x1xf32> to vector<8x8x128xf32>
    %76 = vector.broadcast %74 : vector<8x1x128xf32> to vector<8x8x128xf32>
    %77 = arith.mulf %75, %76 : vector<8x8x128xf32>
    %78 = vector.extract_strided_slice %15 {offsets = [0, 0, 1], sizes = [8, 8, 1], strides = [1, 1, 1]} : vector<8x8x8xf32> to vector<8x8x1xf32>
    %79 = vector.extract_strided_slice %72 {offsets = [0, 1, 0], sizes = [8, 1, 128], strides = [1, 1, 1]} : vector<8x8x128xf32> to vector<8x1x128xf32>
    %80 = vector.broadcast %78 : vector<8x8x1xf32> to vector<8x8x128xf32>
    %81 = vector.broadcast %79 : vector<8x1x128xf32> to vector<8x8x128xf32>
    %82 = arith.mulf %80, %81 : vector<8x8x128xf32>
    %83 = arith.addf %77, %82 : vector<8x8x128xf32>
    %84 = vector.extract_strided_slice %15 {offsets = [0, 0, 2], sizes = [8, 8, 1], strides = [1, 1, 1]} : vector<8x8x8xf32> to vector<8x8x1xf32>
    %85 = vector.extract_strided_slice %72 {offsets = [0, 2, 0], sizes = [8, 1, 128], strides = [1, 1, 1]} : vector<8x8x128xf32> to vector<8x1x128xf32>
    %86 = vector.broadcast %84 : vector<8x8x1xf32> to vector<8x8x128xf32>
    %87 = vector.broadcast %85 : vector<8x1x128xf32> to vector<8x8x128xf32>
    %88 = arith.mulf %86, %87 : vector<8x8x128xf32>
    %89 = arith.addf %83, %88 : vector<8x8x128xf32>
    %90 = vector.extract_strided_slice %15 {offsets = [0, 0, 3], sizes = [8, 8, 1], strides = [1, 1, 1]} : vector<8x8x8xf32> to vector<8x8x1xf32>
    %91 = vector.extract_strided_slice %72 {offsets = [0, 3, 0], sizes = [8, 1, 128], strides = [1, 1, 1]} : vector<8x8x128xf32> to vector<8x1x128xf32>
    %92 = vector.broadcast %90 : vector<8x8x1xf32> to vector<8x8x128xf32>
    %93 = vector.broadcast %91 : vector<8x1x128xf32> to vector<8x8x128xf32>
    %94 = arith.mulf %92, %93 : vector<8x8x128xf32>
    %95 = arith.addf %89, %94 : vector<8x8x128xf32>
    %96 = vector.extract_strided_slice %15 {offsets = [0, 0, 4], sizes = [8, 8, 1], strides = [1, 1, 1]} : vector<8x8x8xf32> to vector<8x8x1xf32>
    %97 = vector.extract_strided_slice %72 {offsets = [0, 4, 0], sizes = [8, 1, 128], strides = [1, 1, 1]} : vector<8x8x128xf32> to vector<8x1x128xf32>
    %98 = vector.broadcast %96 : vector<8x8x1xf32> to vector<8x8x128xf32>
    %99 = vector.broadcast %97 : vector<8x1x128xf32> to vector<8x8x128xf32>
    %100 = arith.mulf %98, %99 : vector<8x8x128xf32>
    %101 = arith.addf %95, %100 : vector<8x8x128xf32>
    %102 = vector.extract_strided_slice %15 {offsets = [0, 0, 5], sizes = [8, 8, 1], strides = [1, 1, 1]} : vector<8x8x8xf32> to vector<8x8x1xf32>
    %103 = vector.extract_strided_slice %72 {offsets = [0, 5, 0], sizes = [8, 1, 128], strides = [1, 1, 1]} : vector<8x8x128xf32> to vector<8x1x128xf32>
    %104 = vector.broadcast %102 : vector<8x8x1xf32> to vector<8x8x128xf32>
    %105 = vector.broadcast %103 : vector<8x1x128xf32> to vector<8x8x128xf32>
    %106 = arith.mulf %104, %105 : vector<8x8x128xf32>
    %107 = arith.addf %101, %106 : vector<8x8x128xf32>
    %108 = vector.extract_strided_slice %15 {offsets = [0, 0, 6], sizes = [8, 8, 1], strides = [1, 1, 1]} : vector<8x8x8xf32> to vector<8x8x1xf32>
    %109 = vector.extract_strided_slice %72 {offsets = [0, 6, 0], sizes = [8, 1, 128], strides = [1, 1, 1]} : vector<8x8x128xf32> to vector<8x1x128xf32>
    %110 = vector.broadcast %108 : vector<8x8x1xf32> to vector<8x8x128xf32>
    %111 = vector.broadcast %109 : vector<8x1x128xf32> to vector<8x8x128xf32>
    %112 = arith.mulf %110, %111 : vector<8x8x128xf32>
    %113 = arith.addf %107, %112 : vector<8x8x128xf32>
    %114 = vector.extract_strided_slice %15 {offsets = [0, 0, 7], sizes = [8, 8, 1], strides = [1, 1, 1]} : vector<8x8x8xf32> to vector<8x8x1xf32>
    %115 = vector.extract_strided_slice %72 {offsets = [0, 7, 0], sizes = [8, 1, 128], strides = [1, 1, 1]} : vector<8x8x128xf32> to vector<8x1x128xf32>
    %116 = vector.broadcast %114 : vector<8x8x1xf32> to vector<8x8x128xf32>
    %117 = vector.broadcast %115 : vector<8x1x128xf32> to vector<8x8x128xf32>
    %118 = arith.mulf %116, %117 : vector<8x8x128xf32>
    %119 = arith.addf %113, %118 : vector<8x8x128xf32>
    %120 = vector.shape_cast %119 : vector<8x8x128xf32> to vector<64x128xf32>
    %c0_14 = arith.constant 0 : index
    %c0_15 = arith.constant 0 : index
    %121 = vector.load %arg5[%c0_14, %c0_15] : memref<128x128xf32, #tpu.memory_space<vmem>>, vector<128x128xf32>
    %cst_16 = arith.constant dense<0.000000e+00> : vector<64x128xf32>
    %122 = tpu.matmul %120, %121, %cst_16 {dimension_numbers = #tpu.dot_dimension_numbers<[1], [0], [0], [1], [0, 0, 1, 1], [], []>} : vector<64x128xf32>, vector<128x128xf32>, vector<64x128xf32> -> vector<64x128xf32>
    %c0_17 = arith.constant 0 : index
    %c0_18 = arith.constant 0 : index
    %123 = vector.load %arg6[%c0_17, %c0_18] : memref<1x128xf32, #tpu.memory_space<vmem>>, vector<1x128xf32>
    %124 = vector.broadcast %123 : vector<1x128xf32> to vector<64x128xf32>
    %125 = arith.addf %122, %124 : vector<64x128xf32>
    %cst_19 = arith.constant 0.000000e+00 : f32
    %126 = vector.broadcast %cst_19 : f32 to vector<64x128xf32>
    %127 = arith.maximumf %125, %126 : vector<64x128xf32>
    %128 = vector.shape_cast %127 : vector<64x128xf32> to vector<8x8x128xf32>
    %129 = vector.extract_strided_slice %15 {offsets = [0, 0, 0], sizes = [8, 8, 1], strides = [1, 1, 1]} : vector<8x8x8xf32> to vector<8x8x1xf32>
    %130 = vector.extract_strided_slice %128 {offsets = [0, 0, 0], sizes = [8, 1, 128], strides = [1, 1, 1]} : vector<8x8x128xf32> to vector<8x1x128xf32>
    %131 = vector.broadcast %129 : vector<8x8x1xf32> to vector<8x8x128xf32>
    %132 = vector.broadcast %130 : vector<8x1x128xf32> to vector<8x8x128xf32>
    %133 = arith.mulf %131, %132 : vector<8x8x128xf32>
    %134 = vector.extract_strided_slice %15 {offsets = [0, 0, 1], sizes = [8, 8, 1], strides = [1, 1, 1]} : vector<8x8x8xf32> to vector<8x8x1xf32>
    %135 = vector.extract_strided_slice %128 {offsets = [0, 1, 0], sizes = [8, 1, 128], strides = [1, 1, 1]} : vector<8x8x128xf32> to vector<8x1x128xf32>
    %136 = vector.broadcast %134 : vector<8x8x1xf32> to vector<8x8x128xf32>
    %137 = vector.broadcast %135 : vector<8x1x128xf32> to vector<8x8x128xf32>
    %138 = arith.mulf %136, %137 : vector<8x8x128xf32>
    %139 = arith.addf %133, %138 : vector<8x8x128xf32>
    %140 = vector.extract_strided_slice %15 {offsets = [0, 0, 2], sizes = [8, 8, 1], strides = [1, 1, 1]} : vector<8x8x8xf32> to vector<8x8x1xf32>
    %141 = vector.extract_strided_slice %128 {offsets = [0, 2, 0], sizes = [8, 1, 128], strides = [1, 1, 1]} : vector<8x8x128xf32> to vector<8x1x128xf32>
    %142 = vector.broadcast %140 : vector<8x8x1xf32> to vector<8x8x128xf32>
    %143 = vector.broadcast %141 : vector<8x1x128xf32> to vector<8x8x128xf32>
    %144 = arith.mulf %142, %143 : vector<8x8x128xf32>
    %145 = arith.addf %139, %144 : vector<8x8x128xf32>
    %146 = vector.extract_strided_slice %15 {offsets = [0, 0, 3], sizes = [8, 8, 1], strides = [1, 1, 1]} : vector<8x8x8xf32> to vector<8x8x1xf32>
    %147 = vector.extract_strided_slice %128 {offsets = [0, 3, 0], sizes = [8, 1, 128], strides = [1, 1, 1]} : vector<8x8x128xf32> to vector<8x1x128xf32>
    %148 = vector.broadcast %146 : vector<8x8x1xf32> to vector<8x8x128xf32>
    %149 = vector.broadcast %147 : vector<8x1x128xf32> to vector<8x8x128xf32>
    %150 = arith.mulf %148, %149 : vector<8x8x128xf32>
    %151 = arith.addf %145, %150 : vector<8x8x128xf32>
    %152 = vector.extract_strided_slice %15 {offsets = [0, 0, 4], sizes = [8, 8, 1], strides = [1, 1, 1]} : vector<8x8x8xf32> to vector<8x8x1xf32>
    %153 = vector.extract_strided_slice %128 {offsets = [0, 4, 0], sizes = [8, 1, 128], strides = [1, 1, 1]} : vector<8x8x128xf32> to vector<8x1x128xf32>
    %154 = vector.broadcast %152 : vector<8x8x1xf32> to vector<8x8x128xf32>
    %155 = vector.broadcast %153 : vector<8x1x128xf32> to vector<8x8x128xf32>
    %156 = arith.mulf %154, %155 : vector<8x8x128xf32>
    %157 = arith.addf %151, %156 : vector<8x8x128xf32>
    %158 = vector.extract_strided_slice %15 {offsets = [0, 0, 5], sizes = [8, 8, 1], strides = [1, 1, 1]} : vector<8x8x8xf32> to vector<8x8x1xf32>
    %159 = vector.extract_strided_slice %128 {offsets = [0, 5, 0], sizes = [8, 1, 128], strides = [1, 1, 1]} : vector<8x8x128xf32> to vector<8x1x128xf32>
    %160 = vector.broadcast %158 : vector<8x8x1xf32> to vector<8x8x128xf32>
    %161 = vector.broadcast %159 : vector<8x1x128xf32> to vector<8x8x128xf32>
    %162 = arith.mulf %160, %161 : vector<8x8x128xf32>
    %163 = arith.addf %157, %162 : vector<8x8x128xf32>
    %164 = vector.extract_strided_slice %15 {offsets = [0, 0, 6], sizes = [8, 8, 1], strides = [1, 1, 1]} : vector<8x8x8xf32> to vector<8x8x1xf32>
    %165 = vector.extract_strided_slice %128 {offsets = [0, 6, 0], sizes = [8, 1, 128], strides = [1, 1, 1]} : vector<8x8x128xf32> to vector<8x1x128xf32>
    %166 = vector.broadcast %164 : vector<8x8x1xf32> to vector<8x8x128xf32>
    %167 = vector.broadcast %165 : vector<8x1x128xf32> to vector<8x8x128xf32>
    %168 = arith.mulf %166, %167 : vector<8x8x128xf32>
    %169 = arith.addf %163, %168 : vector<8x8x128xf32>
    %170 = vector.extract_strided_slice %15 {offsets = [0, 0, 7], sizes = [8, 8, 1], strides = [1, 1, 1]} : vector<8x8x8xf32> to vector<8x8x1xf32>
    %171 = vector.extract_strided_slice %128 {offsets = [0, 7, 0], sizes = [8, 1, 128], strides = [1, 1, 1]} : vector<8x8x128xf32> to vector<8x1x128xf32>
    %172 = vector.broadcast %170 : vector<8x8x1xf32> to vector<8x8x128xf32>
    %173 = vector.broadcast %171 : vector<8x1x128xf32> to vector<8x8x128xf32>
    %174 = arith.mulf %172, %173 : vector<8x8x128xf32>
    %175 = arith.addf %169, %174 : vector<8x8x128xf32>
    %176 = vector.shape_cast %175 : vector<8x8x128xf32> to vector<64x128xf32>
    %c0_20 = arith.constant 0 : index
    %c0_21 = arith.constant 0 : index
    %177 = vector.load %arg7[%c0_20, %c0_21] : memref<128x128xf32, #tpu.memory_space<vmem>>, vector<128x128xf32>
    %cst_22 = arith.constant dense<0.000000e+00> : vector<64x128xf32>
    %178 = tpu.matmul %176, %177, %cst_22 {dimension_numbers = #tpu.dot_dimension_numbers<[1], [0], [0], [1], [0, 0, 1, 1], [], []>} : vector<64x128xf32>, vector<128x128xf32>, vector<64x128xf32> -> vector<64x128xf32>
    %c0_23 = arith.constant 0 : index
    %c0_24 = arith.constant 0 : index
    %179 = vector.load %arg8[%c0_23, %c0_24] : memref<1x128xf32, #tpu.memory_space<vmem>>, vector<1x128xf32>
    %180 = vector.broadcast %179 : vector<1x128xf32> to vector<64x128xf32>
    %181 = arith.addf %178, %180 : vector<64x128xf32>
    %cst_25 = arith.constant 0.000000e+00 : f32
    %182 = vector.broadcast %cst_25 : f32 to vector<64x128xf32>
    %183 = arith.maximumf %181, %182 : vector<64x128xf32>
    %184 = vector.shape_cast %183 : vector<64x128xf32> to vector<8x8x128xf32>
    %185 = vector.shape_cast %184 : vector<8x8x128xf32> to vector<64x128xf32>
    %c0_26 = arith.constant 0 : index
    %c0_27 = arith.constant 0 : index
    %186 = vector.load %arg9[%c0_26, %c0_27] : memref<128x64xf32, #tpu.memory_space<vmem>>, vector<128x64xf32>
    %cst_28 = arith.constant dense<0.000000e+00> : vector<64x64xf32>
    %187 = tpu.matmul %185, %186, %cst_28 {dimension_numbers = #tpu.dot_dimension_numbers<[1], [0], [0], [1], [0, 0, 1, 1], [], []>} : vector<64x128xf32>, vector<128x64xf32>, vector<64x64xf32> -> vector<64x64xf32>
    %188 = vector.shape_cast %187 : vector<64x64xf32> to vector<8x8x64xf32>
    %189 = vector.extract_strided_slice %15 {offsets = [0, 0, 0], sizes = [8, 8, 1], strides = [1, 1, 1]} : vector<8x8x8xf32> to vector<8x8x1xf32>
    %190 = vector.extract_strided_slice %188 {offsets = [0, 0, 0], sizes = [8, 1, 64], strides = [1, 1, 1]} : vector<8x8x64xf32> to vector<8x1x64xf32>
    %191 = vector.broadcast %189 : vector<8x8x1xf32> to vector<8x8x64xf32>
    %192 = vector.broadcast %190 : vector<8x1x64xf32> to vector<8x8x64xf32>
    %193 = arith.mulf %191, %192 : vector<8x8x64xf32>
    %194 = vector.extract_strided_slice %15 {offsets = [0, 0, 1], sizes = [8, 8, 1], strides = [1, 1, 1]} : vector<8x8x8xf32> to vector<8x8x1xf32>
    %195 = vector.extract_strided_slice %188 {offsets = [0, 1, 0], sizes = [8, 1, 64], strides = [1, 1, 1]} : vector<8x8x64xf32> to vector<8x1x64xf32>
    %196 = vector.broadcast %194 : vector<8x8x1xf32> to vector<8x8x64xf32>
    %197 = vector.broadcast %195 : vector<8x1x64xf32> to vector<8x8x64xf32>
    %198 = arith.mulf %196, %197 : vector<8x8x64xf32>
    %199 = arith.addf %193, %198 : vector<8x8x64xf32>
    %200 = vector.extract_strided_slice %15 {offsets = [0, 0, 2], sizes = [8, 8, 1], strides = [1, 1, 1]} : vector<8x8x8xf32> to vector<8x8x1xf32>
    %201 = vector.extract_strided_slice %188 {offsets = [0, 2, 0], sizes = [8, 1, 64], strides = [1, 1, 1]} : vector<8x8x64xf32> to vector<8x1x64xf32>
    %202 = vector.broadcast %200 : vector<8x8x1xf32> to vector<8x8x64xf32>
    %203 = vector.broadcast %201 : vector<8x1x64xf32> to vector<8x8x64xf32>
    %204 = arith.mulf %202, %203 : vector<8x8x64xf32>
    %205 = arith.addf %199, %204 : vector<8x8x64xf32>
    %206 = vector.extract_strided_slice %15 {offsets = [0, 0, 3], sizes = [8, 8, 1], strides = [1, 1, 1]} : vector<8x8x8xf32> to vector<8x8x1xf32>
    %207 = vector.extract_strided_slice %188 {offsets = [0, 3, 0], sizes = [8, 1, 64], strides = [1, 1, 1]} : vector<8x8x64xf32> to vector<8x1x64xf32>
    %208 = vector.broadcast %206 : vector<8x8x1xf32> to vector<8x8x64xf32>
    %209 = vector.broadcast %207 : vector<8x1x64xf32> to vector<8x8x64xf32>
    %210 = arith.mulf %208, %209 : vector<8x8x64xf32>
    %211 = arith.addf %205, %210 : vector<8x8x64xf32>
    %212 = vector.extract_strided_slice %15 {offsets = [0, 0, 4], sizes = [8, 8, 1], strides = [1, 1, 1]} : vector<8x8x8xf32> to vector<8x8x1xf32>
    %213 = vector.extract_strided_slice %188 {offsets = [0, 4, 0], sizes = [8, 1, 64], strides = [1, 1, 1]} : vector<8x8x64xf32> to vector<8x1x64xf32>
    %214 = vector.broadcast %212 : vector<8x8x1xf32> to vector<8x8x64xf32>
    %215 = vector.broadcast %213 : vector<8x1x64xf32> to vector<8x8x64xf32>
    %216 = arith.mulf %214, %215 : vector<8x8x64xf32>
    %217 = arith.addf %211, %216 : vector<8x8x64xf32>
    %218 = vector.extract_strided_slice %15 {offsets = [0, 0, 5], sizes = [8, 8, 1], strides = [1, 1, 1]} : vector<8x8x8xf32> to vector<8x8x1xf32>
    %219 = vector.extract_strided_slice %188 {offsets = [0, 5, 0], sizes = [8, 1, 64], strides = [1, 1, 1]} : vector<8x8x64xf32> to vector<8x1x64xf32>
    %220 = vector.broadcast %218 : vector<8x8x1xf32> to vector<8x8x64xf32>
    %221 = vector.broadcast %219 : vector<8x1x64xf32> to vector<8x8x64xf32>
    %222 = arith.mulf %220, %221 : vector<8x8x64xf32>
    %223 = arith.addf %217, %222 : vector<8x8x64xf32>
    %224 = vector.extract_strided_slice %15 {offsets = [0, 0, 6], sizes = [8, 8, 1], strides = [1, 1, 1]} : vector<8x8x8xf32> to vector<8x8x1xf32>
    %225 = vector.extract_strided_slice %188 {offsets = [0, 6, 0], sizes = [8, 1, 64], strides = [1, 1, 1]} : vector<8x8x64xf32> to vector<8x1x64xf32>
    %226 = vector.broadcast %224 : vector<8x8x1xf32> to vector<8x8x64xf32>
    %227 = vector.broadcast %225 : vector<8x1x64xf32> to vector<8x8x64xf32>
    %228 = arith.mulf %226, %227 : vector<8x8x64xf32>
    %229 = arith.addf %223, %228 : vector<8x8x64xf32>
    %230 = vector.extract_strided_slice %15 {offsets = [0, 0, 7], sizes = [8, 8, 1], strides = [1, 1, 1]} : vector<8x8x8xf32> to vector<8x8x1xf32>
    %231 = vector.extract_strided_slice %188 {offsets = [0, 7, 0], sizes = [8, 1, 64], strides = [1, 1, 1]} : vector<8x8x64xf32> to vector<8x1x64xf32>
    %232 = vector.broadcast %230 : vector<8x8x1xf32> to vector<8x8x64xf32>
    %233 = vector.broadcast %231 : vector<8x1x64xf32> to vector<8x8x64xf32>
    %234 = arith.mulf %232, %233 : vector<8x8x64xf32>
    %235 = arith.addf %229, %234 : vector<8x8x64xf32>
    %c0_29 = arith.constant 0 : index
    %c0_30 = arith.constant 0 : index
    %236 = vector.load %arg10[%c0_29, %c0_30] : memref<1x64xf32, #tpu.memory_space<vmem>>, vector<1x64xf32>
    %237 = vector.shape_cast %236 : vector<1x64xf32> to vector<1x1x64xf32>
    %238 = vector.broadcast %237 : vector<1x1x64xf32> to vector<8x8x64xf32>
    %239 = arith.addf %235, %238 : vector<8x8x64xf32>
    %cst_31 = arith.constant 0.000000e+00 : f32
    %240 = vector.broadcast %cst_31 : f32 to vector<8x8x64xf32>
    %241 = arith.maximumf %239, %240 : vector<8x8x64xf32>
    %cst_32 = arith.constant dense<0.000000e+00> : vector<8x64xf32>
    %242 = vector.multi_reduction <add>, %241, %cst_32 [1] : vector<8x8x64xf32> to vector<8x64xf32>
    %cst_33 = arith.constant 8.000000e+00 : f32
    %243 = vector.broadcast %cst_33 : f32 to vector<8x64xf32>
    %244 = arith.divf %242, %243 : vector<8x64xf32>
    %c0_34 = arith.constant 0 : index
    %c0_35 = arith.constant 0 : index
    %245 = vector.load %arg11[%c0_34, %c0_35] : memref<64x128xf32, #tpu.memory_space<vmem>>, vector<64x128xf32>
    %cst_36 = arith.constant dense<0.000000e+00> : vector<8x128xf32>
    %246 = tpu.matmul %244, %245, %cst_36 {dimension_numbers = #tpu.dot_dimension_numbers<[1], [0], [0], [1], [0, 0, 1, 1], [], []>} : vector<8x64xf32>, vector<64x128xf32>, vector<8x128xf32> -> vector<8x128xf32>
    %c0_37 = arith.constant 0 : index
    %c0_38 = arith.constant 0 : index
    %247 = vector.load %arg12[%c0_37, %c0_38] : memref<1x128xf32, #tpu.memory_space<vmem>>, vector<1x128xf32>
    %248 = vector.broadcast %247 : vector<1x128xf32> to vector<8x128xf32>
    %249 = arith.addf %246, %248 : vector<8x128xf32>
    %cst_39 = arith.constant 0.000000e+00 : f32
    %250 = vector.broadcast %cst_39 : f32 to vector<8x128xf32>
    %251 = arith.maximumf %249, %250 : vector<8x128xf32>
    %c0_40 = arith.constant 0 : index
    %c0_41 = arith.constant 0 : index
    %252 = vector.load %arg13[%c0_40, %c0_41] : memref<128x64xf32, #tpu.memory_space<vmem>>, vector<128x64xf32>
    %cst_42 = arith.constant dense<0.000000e+00> : vector<8x64xf32>
    %253 = tpu.matmul %251, %252, %cst_42 {dimension_numbers = #tpu.dot_dimension_numbers<[1], [0], [0], [1], [0, 0, 1, 1], [], []>} : vector<8x128xf32>, vector<128x64xf32>, vector<8x64xf32> -> vector<8x64xf32>
    %c0_43 = arith.constant 0 : index
    %c0_44 = arith.constant 0 : index
    %254 = vector.load %arg14[%c0_43, %c0_44] : memref<1x64xf32, #tpu.memory_space<vmem>>, vector<1x64xf32>
    %255 = vector.broadcast %254 : vector<1x64xf32> to vector<8x64xf32>
    %256 = arith.addf %253, %255 : vector<8x64xf32>
    %cst_45 = arith.constant 0.000000e+00 : f32
    %257 = vector.broadcast %cst_45 : f32 to vector<8x64xf32>
    %258 = arith.maximumf %256, %257 : vector<8x64xf32>
    %c0_46 = arith.constant 0 : index
    %c0_47 = arith.constant 0 : index
    %259 = vector.load %arg15[%c0_46, %c0_47] : memref<1x64xf32, #tpu.memory_space<vmem>>, vector<1x64xf32>
    %260 = vector.broadcast %259 : vector<1x64xf32> to vector<8x64xf32>
    %261 = arith.mulf %258, %260 : vector<8x64xf32>
    %cst_48 = arith.constant dense<0.000000e+00> : vector<8xf32>
    %262 = vector.multi_reduction <add>, %261, %cst_48 [1] : vector<8x64xf32> to vector<8xf32>
    %263 = vector.shape_cast %262 : vector<8xf32> to vector<8x1xf32>
    %c0_49 = arith.constant 0 : index
    %c0_50 = arith.constant 0 : index
    %264 = vector.load %arg16[%c0_49, %c0_50] : memref<1x1xf32, #tpu.memory_space<vmem>>, vector<1x1xf32>
    %265 = vector.broadcast %264 : vector<1x1xf32> to vector<8x1xf32>
    %266 = arith.addf %263, %265 : vector<8x1xf32>
    %c0_51 = arith.constant 0 : index
    %c0_52 = arith.constant 0 : index
    %267 = vector.load %arg17[%c0_51, %c0_52] : memref<8x1xf32, #tpu.memory_space<vmem>>, vector<8x1xf32>
    tpu.vector_store %arg17[%c0_51, %c0_52], %266 {strides = array<i32>} : memref<8x1xf32, #tpu.memory_space<vmem>>, vector<8x1xf32>,
    return
  }
  func.func @transform_0(%arg0: i32) -> (i32, i32, i32) {
    %c0_i32 = arith.constant 0 : i32
    %c0_i32_0 = arith.constant 0 : i32
    %c0_i32_1 = arith.constant 0 : i32
    return %arg0, %c0_i32, %c0_i32_0 : i32, i32, i32
  }
  func.func @transform_1(%arg0: i32) -> (i32, i32, i32) {
    %c0_i32 = arith.constant 0 : i32
    %c0_i32_0 = arith.constant 0 : i32
    %c0_i32_1 = arith.constant 0 : i32
    return %arg0, %c0_i32, %c0_i32_0 : i32, i32, i32
  }
  func.func @transform_2(%arg0: i32) -> (i32, i32) {
    %c0_i32 = arith.constant 0 : i32
    %c0_i32_0 = arith.constant 0 : i32
    %c0_i32_1 = arith.constant 0 : i32
    return %c0_i32, %c0_i32_0 : i32, i32
  }
  func.func @transform_3(%arg0: i32) -> (i32, i32) {
    %c0_i32 = arith.constant 0 : i32
    %c0_i32_0 = arith.constant 0 : i32
    %c0_i32_1 = arith.constant 0 : i32
    return %c0_i32, %c0_i32_0 : i32, i32
  }
  func.func @transform_4(%arg0: i32) -> (i32, i32) {
    %c0_i32 = arith.constant 0 : i32
    %c0_i32_0 = arith.constant 0 : i32
    %c0_i32_1 = arith.constant 0 : i32
    return %c0_i32, %c0_i32_0 : i32, i32
  }
  func.func @transform_5(%arg0: i32) -> (i32, i32) {
    %c0_i32 = arith.constant 0 : i32
    %c0_i32_0 = arith.constant 0 : i32
    %c0_i32_1 = arith.constant 0 : i32
    return %c0_i32, %c0_i32_0 : i32, i32
  }
  func.func @transform_6(%arg0: i32) -> (i32, i32) {
    %c0_i32 = arith.constant 0 : i32
    %c0_i32_0 = arith.constant 0 : i32
    %c0_i32_1 = arith.constant 0 : i32
    return %c0_i32, %c0_i32_0 : i32, i32
  }
  func.func @transform_7(%arg0: i32) -> (i32, i32) {
    %c0_i32 = arith.constant 0 : i32
    %c0_i32_0 = arith.constant 0 : i32
    %c0_i32_1 = arith.constant 0 : i32
    return %c0_i32, %c0_i32_0 : i32, i32
  }
  func.func @transform_8(%arg0: i32) -> (i32, i32) {
    %c0_i32 = arith.constant 0 : i32
    %c0_i32_0 = arith.constant 0 : i32
    %c0_i32_1 = arith.constant 0 : i32
    return %c0_i32, %c0_i32_0 : i32, i32
  }
  func.func @transform_9(%arg0: i32) -> (i32, i32) {
    %c0_i32 = arith.constant 0 : i32
    %c0_i32_0 = arith.constant 0 : i32
    %c0_i32_1 = arith.constant 0 : i32
    return %c0_i32, %c0_i32_0 : i32, i32
  }
  func.func @transform_10(%arg0: i32) -> (i32, i32) {
    %c0_i32 = arith.constant 0 : i32
    %c0_i32_0 = arith.constant 0 : i32
    %c0_i32_1 = arith.constant 0 : i32
    return %c0_i32, %c0_i32_0 : i32, i32
  }
  func.func @transform_11(%arg0: i32) -> (i32, i32) {
    %c0_i32 = arith.constant 0 : i32
    %c0_i32_0 = arith.constant 0 : i32
    %c0_i32_1 = arith.constant 0 : i32
    return %c0_i32, %c0_i32_0 : i32, i32
  }
  func.func @transform_12(%arg0: i32) -> (i32, i32) {
    %c0_i32 = arith.constant 0 : i32
    %c0_i32_0 = arith.constant 0 : i32
    %c0_i32_1 = arith.constant 0 : i32
    return %c0_i32, %c0_i32_0 : i32, i32
  }
  func.func @transform_13(%arg0: i32) -> (i32, i32) {
    %c0_i32 = arith.constant 0 : i32
    %c0_i32_0 = arith.constant 0 : i32
    %c0_i32_1 = arith.constant 0 : i32
    return %c0_i32, %c0_i32_0 : i32, i32
  }
  func.func @transform_14(%arg0: i32) -> (i32, i32) {
    %c0_i32 = arith.constant 0 : i32
    %c0_i32_0 = arith.constant 0 : i32
    %c0_i32_1 = arith.constant 0 : i32
    return %c0_i32, %c0_i32_0 : i32, i32
  }
  func.func @transform_15(%arg0: i32) -> (i32, i32) {
    %c0_i32 = arith.constant 0 : i32
    %c0_i32_0 = arith.constant 0 : i32
    %c0_i32_1 = arith.constant 0 : i32
    return %c0_i32, %c0_i32_0 : i32, i32
  }
  func.func @transform_16(%arg0: i32) -> (i32, i32) {
    %c0_i32 = arith.constant 0 : i32
    %c0_i32_0 = arith.constant 0 : i32
    return %arg0, %c0_i32 : i32, i32
  }
}

</mosaic_0001>

<llo_original>
// kernel: tpu_custom_call.1
$region0: #{tpu_custom_call.1}
  #allocation0 [shape = 'u32[]', space=smem, size = 0x4, offset = 0x4, fixed_abs, tag = 'smem constant byte address 0x4 - core index']
  #allocation1 [shape = 'u32[144,128]{1,0:T(1,128)}', space=vmem, size = 0x12000, scoped, tag = 'internal scratch']
  #allocation2 [shape = 'f32[1,1]{1,0:T(1,128)S(1)}', space=vmem, size = 0x200, scoped, tag = 'scoped memory for tpu_custom_call.1']
  %s0 = inlined_call_operand.vmem [shape: f32[8,8,8], index: 0, kind: input, shape index: {}]
  %s1 = inlined_call_operand.hbm [shape: f32[8,8,11], index: 1, kind: input, shape index: {}]
  %s2 = inlined_call_operand.hbm [shape: f32[11,128], index: 2, kind: input, shape index: {}]
  %s3 = inlined_call_operand.vmem [shape: f32[1,128], index: 3, kind: input, shape index: {}]
  %s4 = inlined_call_operand.vmem [shape: f32[128,128], index: 4, kind: input, shape index: {}]
  %s5 = inlined_call_operand.vmem [shape: f32[1,128], index: 5, kind: input, shape index: {}]
  %s6 = inlined_call_operand.vmem [shape: f32[128,128], index: 6, kind: input, shape index: {}]
  %s7 = inlined_call_operand.vmem [shape: f32[1,128], index: 7, kind: input, shape index: {}]
  %s8 = inlined_call_operand.vmem [shape: f32[128,64], index: 8, kind: input, shape index: {}]
  %s9 = inlined_call_operand.vmem [shape: f32[1,64], index: 9, kind: input, shape index: {}]
  %s10 = inlined_call_operand.hbm [shape: f32[64,128], index: 10, kind: input, shape index: {}]
  %s11 = inlined_call_operand.vmem [shape: f32[1,128], index: 11, kind: input, shape index: {}]
  %s12 = inlined_call_operand.vmem [shape: f32[128,64], index: 12, kind: input, shape index: {}]
  %s13 = inlined_call_operand.vmem [shape: f32[1,64], index: 13, kind: input, shape index: {}]
  %s14 = inlined_call_operand.vmem [shape: f32[1,64], index: 14, kind: input, shape index: {}]
  %s15 = inlined_call_operand.<no memory space> [shape: f32[1,1], index: 15, kind: input, shape index: {}]
  %s16 = inlined_call_operand.vmem [shape: f32[8,1], index: 16, kind: output, shape index: {}]
  %s17 = sld [smem:[#allocation0]]
  $region86: #{tpu_custom_call.1} parent=0
    _
  %s19 = ssub.s32 1, %s17
  %s20 = scalar_select 0, %s19, %s17
  %v21 = vstv %s15
  %22 = vst [vmem:[#allocation2] sm:$0x1] %v21
  $region1: #{tpu_custom_call.1} parent=0
    #allocation3 [shape = 'u8[32768]{0}', space=vmem, size = 0x8000, scoped, tag = 'input window, operand 1, single buffered']
    #allocation4 [shape = 's32[1]{0}', space=sflag, size = 0x4, scoped, tag = 'scoped memory for tpu_custom_call.1']
    #allocation5 [shape = 'u8[8192]{0}', space=vmem, size = 0x2000, scoped, tag = 'input window, operand 2, single buffered']
    #allocation6 [shape = 's32[1]{0}', space=sflag, size = 0x4, scoped, tag = 'scoped memory for tpu_custom_call.1']
    #allocation7 [shape = 'u8[32768]{0}', space=vmem, size = 0x8000, scoped, tag = 'input window, operand 10, single buffered']
    %23 = vsyncpa [#allocation4], 0
    %24 = vsyncpa [#allocation6], 0
    // Predicated region
    $region2: #{tpu_custom_call.1} parent=1 // pred_check
      _
    $region3: #{tpu_custom_call.1} parent=1 // pred_check_branch
      %26 = sbr.rel (0) target = $region5
    $region4: #{tpu_custom_call.1} parent=1 // pred_region
      _
    $region5: #{tpu_custom_call.1} parent=1 // pred_fallthru
      _
    // Predicated region
    $region6: #{tpu_custom_call.1} parent=1 // pred_check
      _
    $region7: #{tpu_custom_call.1} parent=1 // pred_check_branch
      %28 = sbr.rel (0) target = $region9
    $region8: #{tpu_custom_call.1} parent=1 // pred_region
      %s30 = ssub.s32 1024, 1024
      %31 = vsyncadd [#allocation4], %s30
      %s32 = sshll.u32 [#allocation3], 4
      %s33 = int_to_ptr.vmem [resolvable:$true] %s32
      %38 = dma.hbm_to_vmem [thread:$0]  %s1, 1024, %s33, [#allocation4], 128, 128, 8
    $region9: #{tpu_custom_call.1} parent=1 // pred_fallthru
      _
    // Predicated region
    $region10: #{tpu_custom_call.1} parent=1 // pred_check
      _
    $region11: #{tpu_custom_call.1} parent=1 // pred_check_branch
      %40 = sbr.rel (0) target = $region13
    $region12: #{tpu_custom_call.1} parent=1 // pred_region
      %s42 = ssub.s32 256, 256
      %43 = vsyncadd [#allocation6], %s42
      %s44 = sshll.u32 [#allocation5], 4
      %s45 = int_to_ptr.vmem [resolvable:$true] %s44
      %50 = dma.hbm_to_vmem [thread:$0]  %s2, 256, %s45, [#allocation6], 128, 128, 8
    $region13: #{tpu_custom_call.1} parent=1 // pred_fallthru
      _
    // Predicated region
    $region14: #{tpu_custom_call.1} parent=1 // pred_check
      _
    $region15: #{tpu_custom_call.1} parent=1 // pred_check_branch
      %52 = sbr.rel (0) target = $region17
    $region16: #{tpu_custom_call.1} parent=1 // pred_region
      _
    $region17: #{tpu_custom_call.1} parent=1 // pred_fallthru
      _
    // Predicated region
    $region18: #{tpu_custom_call.1} parent=1 // pred_check
      _
    $region19: #{tpu_custom_call.1} parent=1 // pred_check_branch
      %54 = sbr.rel (0) target = $region21
    $region20: #{tpu_custom_call.1} parent=1 // pred_region
      _
    $region21: #{tpu_custom_call.1} parent=1 // pred_fallthru
      _
    // Predicated region
    $region22: #{tpu_custom_call.1} parent=1 // pred_check
      _
    $region23: #{tpu_custom_call.1} parent=1 // pred_check_branch
      %56 = sbr.rel (0) target = $region25
    $region24: #{tpu_custom_call.1} parent=1 // pred_region
      _
    $region25: #{tpu_custom_call.1} parent=1 // pred_fallthru
      _
    // Predicated region
    $region26: #{tpu_custom_call.1} parent=1 // pred_check
      _
    $region27: #{tpu_custom_call.1} parent=1 // pred_check_branch
      %58 = sbr.rel (0) target = $region29
    $region28: #{tpu_custom_call.1} parent=1 // pred_region
      _
    $region29: #{tpu_custom_call.1} parent=1 // pred_fallthru
      _
    // Predicated region
    $region30: #{tpu_custom_call.1} parent=1 // pred_check
      _
    $region31: #{tpu_custom_call.1} parent=1 // pred_check_branch
      %60 = sbr.rel (0) target = $region33
    $region32: #{tpu_custom_call.1} parent=1 // pred_region
      _
    $region33: #{tpu_custom_call.1} parent=1 // pred_fallthru
      _
    // Predicated region
    $region34: #{tpu_custom_call.1} parent=1 // pred_check
      _
    $region35: #{tpu_custom_call.1} parent=1 // pred_check_branch
      %62 = sbr.rel (0) target = $region37
    $region36: #{tpu_custom_call.1} parent=1 // pred_region
      _
    $region37: #{tpu_custom_call.1} parent=1 // pred_fallthru
      _
    // Predicated region
    $region38: #{tpu_custom_call.1} parent=1 // pred_check
      _
    $region39: #{tpu_custom_call.1} parent=1 // pred_check_branch
      %64 = sbr.rel (0) target = $region41
    $region40: #{tpu_custom_call.1} parent=1 // pred_region
      _
    $region41: #{tpu_custom_call.1} parent=1 // pred_fallthru
      _
    // Predicated region
    $region42: #{tpu_custom_call.1} parent=1 // pred_check
      _
    $region43: #{tpu_custom_call.1} parent=1 // pred_check_branch
      %66 = sbr.rel (0) target = $region45
    $region44: #{tpu_custom_call.1} parent=1 // pred_region
      %s68 = ssub.s32 1024, 1024
      %69 = vsyncadd [#allocation6], %s68
      %s70 = sshll.u32 [#allocation7], 4
      %s71 = int_to_ptr.vmem [resolvable:$true] %s70
      %76 = dma.hbm_to_vmem [thread:$0]  %s10, 1024, %s71, [#allocation6], 128, 128, 8
    $region45: #{tpu_custom_call.1} parent=1 // pred_fallthru
      _
    // Predicated region
    $region46: #{tpu_custom_call.1} parent=1 // pred_check
      _
    $region47: #{tpu_custom_call.1} parent=1 // pred_check_branch
      %78 = sbr.rel (0) target = $region49
    $region48: #{tpu_custom_call.1} parent=1 // pred_region
      _
    $region49: #{tpu_custom_call.1} parent=1 // pred_fallthru
      _
    // Predicated region
    $region50: #{tpu_custom_call.1} parent=1 // pred_check
      _
    $region51: #{tpu_custom_call.1} parent=1 // pred_check_branch
      %80 = sbr.rel (0) target = $region53
    $region52: #{tpu_custom_call.1} parent=1 // pred_region
      _
    $region53: #{tpu_custom_call.1} parent=1 // pred_fallthru
      _
    // Predicated region
    $region54: #{tpu_custom_call.1} parent=1 // pred_check
      _
    $region55: #{tpu_custom_call.1} parent=1 // pred_check_branch
      %82 = sbr.rel (0) target = $region57
    $region56: #{tpu_custom_call.1} parent=1 // pred_region
      _
    $region57: #{tpu_custom_call.1} parent=1 // pred_fallthru
      _
    // Predicated region
    $region58: #{tpu_custom_call.1} parent=1 // pred_check
      _
    $region59: #{tpu_custom_call.1} parent=1 // pred_check_branch
      %84 = sbr.rel (0) target = $region61
    $region60: #{tpu_custom_call.1} parent=1 // pred_region
      _
    $region61: #{tpu_custom_call.1} parent=1 // pred_fallthru
      _
    // Predicated region
    $region62: #{tpu_custom_call.1} parent=1 // pred_check
      _
    $region63: #{tpu_custom_call.1} parent=1 // pred_check_branch
      %86 = sbr.rel (0) target = $region65
    $region64: #{tpu_custom_call.1} parent=1 // pred_region
      _
    $region65: #{tpu_custom_call.1} parent=1 // pred_fallthru
      _
    // Predicated region
    $region66: #{tpu_custom_call.1} parent=1 // pred_check
      _
    $region67: #{tpu_custom_call.1} parent=1 // pred_check_branch
      %88 = sbr.rel (0) target = $region69
    $region68: #{tpu_custom_call.1} parent=1 // pred_region
      %89 = dma.done [#allocation4], 1024
    $region69: #{tpu_custom_call.1} parent=1 // pred_fallthru
      _
    // Predicated region
    $region70: #{tpu_custom_call.1} parent=1 // pred_check
      _
    $region71: #{tpu_custom_call.1} parent=1 // pred_check_branch
      %91 = sbr.rel (0) target = $region73
    $region72: #{tpu_custom_call.1} parent=1 // pred_region
      %92 = dma.done [#allocation6], 256
    $region73: #{tpu_custom_call.1} parent=1 // pred_fallthru
      _
    // Predicated region
    $region74: #{tpu_custom_call.1} parent=1 // pred_check
      _
    $region75: #{tpu_custom_call.1} parent=1 // pred_check_branch
      %94 = sbr.rel (0) target = $region77
    $region76: #{tpu_custom_call.1} parent=1 // pred_region
      %95 = dma.done [#allocation6], 1024
    $region77: #{tpu_custom_call.1} parent=1 // pred_fallthru
      _
    %v96 = vld [vmem:[%s0] sm:$0xff]
    %v97 = vld [vmem:[%s0 + $0x8] sm:$0xff]
    %v98 = vld [vmem:[%s0 + $0x10] sm:$0xff]
    %v99 = vld [vmem:[%s0 + $0x18] sm:$0xff]
    %v100 = vld [vmem:[%s0 + $0x20] sm:$0xff]
    %v101 = vld [vmem:[%s0 + $0x28] sm:$0xff]
    %v102 = vld [vmem:[%s0 + $0x30] sm:$0xff]
    %v103 = vld [vmem:[%s0 + $0x38] sm:$0xff]
    %vm104 = vcmask 64512
    %v105 = vsel %vm104, %v96, 0.0
    %106 = vadd.xlane.f32.xlu0 %v105
    %v107 = vpop.xlane.xlu0 %106
    %v108 = vsel %vm104, %v97, 0.0
    %109 = vadd.xlane.f32.xlu0 %v108
    %v110 = vpop.xlane.xlu0 %109
    %v111 = vsel %vm104, %v98, 0.0
    %112 = vadd.xlane.f32.xlu0 %v111
    %v113 = vpop.xlane.xlu0 %112
    %v114 = vsel %vm104, %v99, 0.0
    %115 = vadd.xlane.f32.xlu0 %v114
    %v116 = vpop.xlane.xlu0 %115
    %v117 = vsel %vm104, %v100, 0.0
    %118 = vadd.xlane.f32.xlu0 %v117
    %v119 = vpop.xlane.xlu0 %118
    %v120 = vsel %vm104, %v101, 0.0
    %121 = vadd.xlane.f32.xlu0 %v120
    %v122 = vpop.xlane.xlu0 %121
    %v123 = vsel %vm104, %v102, 0.0
    %124 = vadd.xlane.f32.xlu0 %v123
    %v125 = vpop.xlane.xlu0 %124
    %v126 = vsel %vm104, %v103, 0.0
    %127 = vadd.xlane.f32.xlu0 %v126
    %v128 = vpop.xlane.xlu0 %127
    %v129 = vadd.f32 %v107, 1e-06
    %v130 = vadd.f32 %v110, 1e-06
    %v131 = vadd.f32 %v113, 1e-06
    %v132 = vadd.f32 %v116, 1e-06
    %v133 = vadd.f32 %v119, 1e-06
    %v134 = vadd.f32 %v122, 1e-06
    %v135 = vadd.f32 %v125, 1e-06
    %v136 = vadd.f32 %v128, 1e-06
    %v137 = vlaneseq
    %v138 = vshrl.u32 %v137, 7
    %v139 = vlaneseq
    %v140 = vand.u32 %v139, 127
    %vm141 = vcmp.eq.s32.totalorder %v138, %v140
    %v142 = vsel %vm141, 1.0, 0.0
    %v143 = vrcp.pop %v129
    %v144 = vmul.f32 %v96, %v143
    %v145 = vrcp.pop %v130
    %v146 = vmul.f32 %v97, %v145
    %v147 = vrcp.pop %v131
    %v148 = vmul.f32 %v98, %v147
    %v149 = vrcp.pop %v132
    %v150 = vmul.f32 %v99, %v149
    %v151 = vrcp.pop %v133
    %v152 = vmul.f32 %v100, %v151
    %v153 = vrcp.pop %v134
    %v154 = vmul.f32 %v101, %v153
    %v155 = vrcp.pop %v135
    %v156 = vmul.f32 %v102, %v155
    %v157 = vrcp.pop %v136
    %v158 = vmul.f32 %v103, %v157
    %v159 = vadd.f32 %v144, %v142
    %v160 = vadd.f32 %v146, %v142
    %v161 = vadd.f32 %v148, %v142
    %v162 = vadd.f32 %v150, %v142
    %v163 = vadd.f32 %v152, %v142
    %v164 = vadd.f32 %v154, %v142
    %v165 = vadd.f32 %v156, %v142
    %v166 = vadd.f32 %v158, %v142
    %v167 = vld [vmem:[#allocation3] sm:$0xff]
    %v168 = vld [vmem:[#allocation3 + $0x8] sm:$0xff]
    %v169 = vld [vmem:[#allocation3 + $0x10] sm:$0xff]
    %v170 = vld [vmem:[#allocation3 + $0x18] sm:$0xff]
    %v171 = vld [vmem:[#allocation3 + $0x20] sm:$0xff]
    %v172 = vld [vmem:[#allocation3 + $0x28] sm:$0xff]
    %v173 = vld [vmem:[#allocation3 + $0x30] sm:$0xff]
    %v174 = vld [vmem:[#allocation3 + $0x38] sm:$0xff]
    %176 = vset.pattern.permute.xlu0 0
    %177 = vperm.xlu0 %176, %v159
    %v178 = vpop.permute.xlu0 %177
    %181 = vset.pattern.permute.xlu0 0
    %182 = vperm.xlu0 %181, %v160
    %v183 = vpop.permute.xlu0 %182
    %186 = vset.pattern.permute.xlu0 0
    %187 = vperm.xlu0 %186, %v161
    %v188 = vpop.permute.xlu0 %187
    %191 = vset.pattern.permute.xlu0 0
    %192 = vperm.xlu0 %191, %v162
    %v193 = vpop.permute.xlu0 %192
    %196 = vset.pattern.permute.xlu0 0
    %197 = vperm.xlu0 %196, %v163
    %v198 = vpop.permute.xlu0 %197
    %201 = vset.pattern.permute.xlu0 0
    %202 = vperm.xlu0 %201, %v164
    %v203 = vpop.permute.xlu0 %202
    %206 = vset.pattern.permute.xlu0 0
    %207 = vperm.xlu0 %206, %v165
    %v208 = vpop.permute.xlu0 %207
    %211 = vset.pattern.permute.xlu0 0
    %212 = vperm.xlu0 %211, %v166
    %v213 = vpop.permute.xlu0 %212
    %v215 = vlaneseq
    %v216 = vshrl.u32 %v215, 7
    %v217 = vsub.s32 0, %v216
    %v218 = vrot.slane %v167, %v217
    %v219 = vlaneseq
    %v220 = vshrl.u32 %v219, 7
    %v221 = vsub.s32 0, %v220
    %v222 = vrot.slane %v168, %v221
    %v223 = vlaneseq
    %v224 = vshrl.u32 %v223, 7
    %v225 = vsub.s32 0, %v224
    %v226 = vrot.slane %v169, %v225
    %v227 = vlaneseq
    %v228 = vshrl.u32 %v227, 7
    %v229 = vsub.s32 0, %v228
    %v230 = vrot.slane %v170, %v229
    %v231 = vlaneseq
    %v232 = vshrl.u32 %v231, 7
    %v233 = vsub.s32 0, %v232
    %v234 = vrot.slane %v171, %v233
    %v235 = vlaneseq
    %v236 = vshrl.u32 %v235, 7
    %v237 = vsub.s32 0, %v236
    %v238 = vrot.slane %v172, %v237
    %v239 = vlaneseq
    %v240 = vshrl.u32 %v239, 7
    %v241 = vsub.s32 0, %v240
    %v242 = vrot.slane %v173, %v241
    %v243 = vlaneseq
    %v244 = vshrl.u32 %v243, 7
    %v245 = vsub.s32 0, %v244
    %v246 = vrot.slane %v174, %v245
    %v247 = vmul.f32 %v178, %v218
    %v248 = vmul.f32 %v183, %v222
    %v249 = vmul.f32 %v188, %v226
    %v250 = vmul.f32 %v193, %v230
    %v251 = vmul.f32 %v198, %v234
    %v252 = vmul.f32 %v203, %v238
    %v253 = vmul.f32 %v208, %v242
    %v254 = vmul.f32 %v213, %v246
    %255 = vset.pattern.permute.xlu0 1
    %256 = vperm.xlu0 %255, %v159
    %v257 = vpop.permute.xlu0 %256
    %259 = vset.pattern.permute.xlu0 1
    %260 = vperm.xlu0 %259, %v160
    %v261 = vpop.permute.xlu0 %260
    %263 = vset.pattern.permute.xlu0 1
    %264 = vperm.xlu0 %263, %v161
    %v265 = vpop.permute.xlu0 %264
    %267 = vset.pattern.permute.xlu0 1
    %268 = vperm.xlu0 %267, %v162
    %v269 = vpop.permute.xlu0 %268
    %271 = vset.pattern.permute.xlu0 1
    %272 = vperm.xlu0 %271, %v163
    %v273 = vpop.permute.xlu0 %272
    %275 = vset.pattern.permute.xlu0 1
    %276 = vperm.xlu0 %275, %v164
    %v277 = vpop.permute.xlu0 %276
    %279 = vset.pattern.permute.xlu0 1
    %280 = vperm.xlu0 %279, %v165
    %v281 = vpop.permute.xlu0 %280
    %283 = vset.pattern.permute.xlu0 1
    %284 = vperm.xlu0 %283, %v166
    %v285 = vpop.permute.xlu0 %284
    %v287 = vlaneseq
    %v288 = vshrl.u32 %v287, 7
    %v289 = vsub.s32 1, %v288
    %v290 = vrot.slane %v167, %v289
    %v291 = vlaneseq
    %v292 = vshrl.u32 %v291, 7
    %v293 = vsub.s32 1, %v292
    %v294 = vrot.slane %v168, %v293
    %v295 = vlaneseq
    %v296 = vshrl.u32 %v295, 7
    %v297 = vsub.s32 1, %v296
    %v298 = vrot.slane %v169, %v297
    %v299 = vlaneseq
    %v300 = vshrl.u32 %v299, 7
    %v301 = vsub.s32 1, %v300
    %v302 = vrot.slane %v170, %v301
    %v303 = vlaneseq
    %v304 = vshrl.u32 %v303, 7
    %v305 = vsub.s32 1, %v304
    %v306 = vrot.slane %v171, %v305
    %v307 = vlaneseq
    %v308 = vshrl.u32 %v307, 7
    %v309 = vsub.s32 1, %v308
    %v310 = vrot.slane %v172, %v309
    %v311 = vlaneseq
    %v312 = vshrl.u32 %v311, 7
    %v313 = vsub.s32 1, %v312
    %v314 = vrot.slane %v173, %v313
    %v315 = vlaneseq
    %v316 = vshrl.u32 %v315, 7
    %v317 = vsub.s32 1, %v316
    %v318 = vrot.slane %v174, %v317
    %v319 = vmul.f32 %v257, %v290
    %v320 = vmul.f32 %v261, %v294
    %v321 = vmul.f32 %v265, %v298
    %v322 = vmul.f32 %v269, %v302
    %v323 = vmul.f32 %v273, %v306
    %v324 = vmul.f32 %v277, %v310
    %v325 = vmul.f32 %v281, %v314
    %v326 = vmul.f32 %v285, %v318
    %v327 = vadd.f32 %v247, %v319
    %v328 = vadd.f32 %v248, %v320
    %v329 = vadd.f32 %v249, %v321
    %v330 = vadd.f32 %v250, %v322
    %v331 = vadd.f32 %v251, %v323
    %v332 = vadd.f32 %v252, %v324
    %v333 = vadd.f32 %v253, %v325
    %v334 = vadd.f32 %v254, %v326
    %335 = vset.pattern.permute.xlu0 2
    %336 = vperm.xlu0 %335, %v159
    %v337 = vpop.permute.xlu0 %336
    %339 = vset.pattern.permute.xlu0 2
    %340 = vperm.xlu0 %339, %v160
    %v341 = vpop.permute.xlu0 %340
    %343 = vset.pattern.permute.xlu0 2
    %344 = vperm.xlu0 %343, %v161
    %v345 = vpop.permute.xlu0 %344
    %347 = vset.pattern.permute.xlu0 2
    %348 = vperm.xlu0 %347, %v162
    %v349 = vpop.permute.xlu0 %348
    %351 = vset.pattern.permute.xlu0 2
    %352 = vperm.xlu0 %351, %v163
    %v353 = vpop.permute.xlu0 %352
    %355 = vset.pattern.permute.xlu0 2
    %356 = vperm.xlu0 %355, %v164
    %v357 = vpop.permute.xlu0 %356
    %359 = vset.pattern.permute.xlu0 2
    %360 = vperm.xlu0 %359, %v165
    %v361 = vpop.permute.xlu0 %360
    %363 = vset.pattern.permute.xlu0 2
    %364 = vperm.xlu0 %363, %v166
    %v365 = vpop.permute.xlu0 %364
    %v367 = vlaneseq
    %v368 = vshrl.u32 %v367, 7
    %v369 = vsub.s32 2, %v368
    %v370 = vrot.slane %v167, %v369
    %v371 = vlaneseq
    %v372 = vshrl.u32 %v371, 7
    %v373 = vsub.s32 2, %v372
    %v374 = vrot.slane %v168, %v373
    %v375 = vlaneseq
    %v376 = vshrl.u32 %v375, 7
    %v377 = vsub.s32 2, %v376
    %v378 = vrot.slane %v169, %v377
    %v379 = vlaneseq
    %v380 = vshrl.u32 %v379, 7
    %v381 = vsub.s32 2, %v380
    %v382 = vrot.slane %v170, %v381
    %v383 = vlaneseq
    %v384 = vshrl.u32 %v383, 7
    %v385 = vsub.s32 2, %v384
    %v386 = vrot.slane %v171, %v385
    %v387 = vlaneseq
    %v388 = vshrl.u32 %v387, 7
    %v389 = vsub.s32 2, %v388
    %v390 = vrot.slane %v172, %v389
    %v391 = vlaneseq
    %v392 = vshrl.u32 %v391, 7
    %v393 = vsub.s32 2, %v392
    %v394 = vrot.slane %v173, %v393
    %v395 = vlaneseq
    %v396 = vshrl.u32 %v395, 7
    %v397 = vsub.s32 2, %v396
    %v398 = vrot.slane %v174, %v397
    %v399 = vmul.f32 %v337, %v370
    %v400 = vmul.f32 %v341, %v374
    %v401 = vmul.f32 %v345, %v378
    %v402 = vmul.f32 %v349, %v382
    %v403 = vmul.f32 %v353, %v386
    %v404 = vmul.f32 %v357, %v390
    %v405 = vmul.f32 %v361, %v394
    %v406 = vmul.f32 %v365, %v398
    %v407 = vadd.f32 %v327, %v399
    %v408 = vadd.f32 %v328, %v400
    %v409 = vadd.f32 %v329, %v401
    %v410 = vadd.f32 %v330, %v402
    %v411 = vadd.f32 %v331, %v403
    %v412 = vadd.f32 %v332, %v404
    %v413 = vadd.f32 %v333, %v405
    %v414 = vadd.f32 %v334, %v406
    %415 = vset.pattern.permute.xlu0 3
    %416 = vperm.xlu0 %415, %v159
    %v417 = vpop.permute.xlu0 %416
    %419 = vset.pattern.permute.xlu0 3
    %420 = vperm.xlu0 %419, %v160
    %v421 = vpop.permute.xlu0 %420
    %423 = vset.pattern.permute.xlu0 3
    %424 = vperm.xlu0 %423, %v161
    %v425 = vpop.permute.xlu0 %424
    %427 = vset.pattern.permute.xlu0 3
    %428 = vperm.xlu0 %427, %v162
    %v429 = vpop.permute.xlu0 %428
    %431 = vset.pattern.permute.xlu0 3
    %432 = vperm.xlu0 %431, %v163
    %v433 = vpop.permute.xlu0 %432
    %435 = vset.pattern.permute.xlu0 3
    %436 = vperm.xlu0 %435, %v164
    %v437 = vpop.permute.xlu0 %436
    %439 = vset.pattern.permute.xlu0 3
    %440 = vperm.xlu0 %439, %v165
    %v441 = vpop.permute.xlu0 %440
    %443 = vset.pattern.permute.xlu0 3
    %444 = vperm.xlu0 %443, %v166
    %v445 = vpop.permute.xlu0 %444
    %v447 = vlaneseq
    %v448 = vshrl.u32 %v447, 7
    %v449 = vsub.s32 3, %v448
    %v450 = vrot.slane %v167, %v449
    %v451 = vlaneseq
    %v452 = vshrl.u32 %v451, 7
    %v453 = vsub.s32 3, %v452
    %v454 = vrot.slane %v168, %v453
    %v455 = vlaneseq
    %v456 = vshrl.u32 %v455, 7
    %v457 = vsub.s32 3, %v456
    %v458 = vrot.slane %v169, %v457
    %v459 = vlaneseq
    %v460 = vshrl.u32 %v459, 7
    %v461 = vsub.s32 3, %v460
    %v462 = vrot.slane %v170, %v461
    %v463 = vlaneseq
    %v464 = vshrl.u32 %v463, 7
    %v465 = vsub.s32 3, %v464
    %v466 = vrot.slane %v171, %v465
    %v467 = vlaneseq
    %v468 = vshrl.u32 %v467, 7
    %v469 = vsub.s32 3, %v468
    %v470 = vrot.slane %v172, %v469
    %v471 = vlaneseq
    %v472 = vshrl.u32 %v471, 7
    %v473 = vsub.s32 3, %v472
    %v474 = vrot.slane %v173, %v473
    %v475 = vlaneseq
    %v476 = vshrl.u32 %v475, 7
    %v477 = vsub.s32 3, %v476
    %v478 = vrot.slane %v174, %v477
    %v479 = vmul.f32 %v417, %v450
    %v480 = vmul.f32 %v421, %v454
    %v481 = vmul.f32 %v425, %v458
    %v482 = vmul.f32 %v429, %v462
    %v483 = vmul.f32 %v433, %v466
    %v484 = vmul.f32 %v437, %v470
    %v485 = vmul.f32 %v441, %v474
    %v486 = vmul.f32 %v445, %v478
    %v487 = vadd.f32 %v407, %v479
    %v488 = vadd.f32 %v408, %v480
    %v489 = vadd.f32 %v409, %v481
    %v490 = vadd.f32 %v410, %v482
    %v491 = vadd.f32 %v411, %v483
    %v492 = vadd.f32 %v412, %v484
    %v493 = vadd.f32 %v413, %v485
    %v494 = vadd.f32 %v414, %v486
    %495 = vset.pattern.permute.xlu0 4
    %496 = vperm.xlu0 %495, %v159
    %v497 = vpop.permute.xlu0 %496
    %499 = vset.pattern.permute.xlu0 4
    %500 = vperm.xlu0 %499, %v160
    %v501 = vpop.permute.xlu0 %500
    %503 = vset.pattern.permute.xlu0 4
    %504 = vperm.xlu0 %503, %v161
    %v505 = vpop.permute.xlu0 %504
    %507 = vset.pattern.permute.xlu0 4
    %508 = vperm.xlu0 %507, %v162
    %v509 = vpop.permute.xlu0 %508
    %511 = vset.pattern.permute.xlu0 4
    %512 = vperm.xlu0 %511, %v163
    %v513 = vpop.permute.xlu0 %512
    %515 = vset.pattern.permute.xlu0 4
    %516 = vperm.xlu0 %515, %v164
    %v517 = vpop.permute.xlu0 %516
    %519 = vset.pattern.permute.xlu0 4
    %520 = vperm.xlu0 %519, %v165
    %v521 = vpop.permute.xlu0 %520
    %523 = vset.pattern.permute.xlu0 4
    %524 = vperm.xlu0 %523, %v166
    %v525 = vpop.permute.xlu0 %524
    %v527 = vlaneseq
    %v528 = vshrl.u32 %v527, 7
    %v529 = vsub.s32 4, %v528
    %v530 = vrot.slane %v167, %v529
    %v531 = vlaneseq
    %v532 = vshrl.u32 %v531, 7
    %v533 = vsub.s32 4, %v532
    %v534 = vrot.slane %v168, %v533
    %v535 = vlaneseq
    %v536 = vshrl.u32 %v535, 7
    %v537 = vsub.s32 4, %v536
    %v538 = vrot.slane %v169, %v537
    %v539 = vlaneseq
    %v540 = vshrl.u32 %v539, 7
    %v541 = vsub.s32 4, %v540
    %v542 = vrot.slane %v170, %v541
    %v543 = vlaneseq
    %v544 = vshrl.u32 %v543, 7
    %v545 = vsub.s32 4, %v544
    %v546 = vrot.slane %v171, %v545
    %v547 = vlaneseq
    %v548 = vshrl.u32 %v547, 7
    %v549 = vsub.s32 4, %v548
    %v550 = vrot.slane %v172, %v549
    %v551 = vlaneseq
    %v552 = vshrl.u32 %v551, 7
    %v553 = vsub.s32 4, %v552
    %v554 = vrot.slane %v173, %v553
    %v555 = vlaneseq
    %v556 = vshrl.u32 %v555, 7
    %v557 = vsub.s32 4, %v556
    %v558 = vrot.slane %v174, %v557
    %v559 = vmul.f32 %v497, %v530
    %v560 = vmul.f32 %v501, %v534
    %v561 = vmul.f32 %v505, %v538
    %v562 = vmul.f32 %v509, %v542
    %v563 = vmul.f32 %v513, %v546
    %v564 = vmul.f32 %v517, %v550
    %v565 = vmul.f32 %v521, %v554
    %v566 = vmul.f32 %v525, %v558
    %v567 = vadd.f32 %v487, %v559
    %v568 = vadd.f32 %v488, %v560
    %v569 = vadd.f32 %v489, %v561
    %v570 = vadd.f32 %v490, %v562
    %v571 = vadd.f32 %v491, %v563
    %v572 = vadd.f32 %v492, %v564
    %v573 = vadd.f32 %v493, %v565
    %v574 = vadd.f32 %v494, %v566
    %575 = vset.pattern.permute.xlu0 5
    %576 = vperm.xlu0 %575, %v159
    %v577 = vpop.permute.xlu0 %576
    %579 = vset.pattern.permute.xlu0 5
    %580 = vperm.xlu0 %579, %v160
    %v581 = vpop.permute.xlu0 %580
    %583 = vset.pattern.permute.xlu0 5
    %584 = vperm.xlu0 %583, %v161
    %v585 = vpop.permute.xlu0 %584
    %587 = vset.pattern.permute.xlu0 5
    %588 = vperm.xlu0 %587, %v162
    %v589 = vpop.permute.xlu0 %588
    %591 = vset.pattern.permute.xlu0 5
    %592 = vperm.xlu0 %591, %v163
    %v593 = vpop.permute.xlu0 %592
    %595 = vset.pattern.permute.xlu0 5
    %596 = vperm.xlu0 %595, %v164
    %v597 = vpop.permute.xlu0 %596
    %599 = vset.pattern.permute.xlu0 5
    %600 = vperm.xlu0 %599, %v165
    %v601 = vpop.permute.xlu0 %600
    %603 = vset.pattern.permute.xlu0 5
    %604 = vperm.xlu0 %603, %v166
    %v605 = vpop.permute.xlu0 %604
    %v607 = vlaneseq
    %v608 = vshrl.u32 %v607, 7
    %v609 = vsub.s32 5, %v608
    %v610 = vrot.slane %v167, %v609
    %v611 = vlaneseq
    %v612 = vshrl.u32 %v611, 7
    %v613 = vsub.s32 5, %v612
    %v614 = vrot.slane %v168, %v613
    %v615 = vlaneseq
    %v616 = vshrl.u32 %v615, 7
    %v617 = vsub.s32 5, %v616
    %v618 = vrot.slane %v169, %v617
    %v619 = vlaneseq
    %v620 = vshrl.u32 %v619, 7
    %v621 = vsub.s32 5, %v620
    %v622 = vrot.slane %v170, %v621
    %v623 = vlaneseq
    %v624 = vshrl.u32 %v623, 7
    %v625 = vsub.s32 5, %v624
    %v626 = vrot.slane %v171, %v625
    %v627 = vlaneseq
    %v628 = vshrl.u32 %v627, 7
    %v629 = vsub.s32 5, %v628
    %v630 = vrot.slane %v172, %v629
    %v631 = vlaneseq
    %v632 = vshrl.u32 %v631, 7
    %v633 = vsub.s32 5, %v632
    %v634 = vrot.slane %v173, %v633
    %v635 = vlaneseq
    %v636 = vshrl.u32 %v635, 7
    %v637 = vsub.s32 5, %v636
    %v638 = vrot.slane %v174, %v637
    %v639 = vmul.f32 %v577, %v610
    %v640 = vmul.f32 %v581, %v614
    %v641 = vmul.f32 %v585, %v618
    %v642 = vmul.f32 %v589, %v622
    %v643 = vmul.f32 %v593, %v626
    %v644 = vmul.f32 %v597, %v630
    %v645 = vmul.f32 %v601, %v634
    %v646 = vmul.f32 %v605, %v638
    %v647 = vadd.f32 %v567, %v639
    %v648 = vadd.f32 %v568, %v640
    %v649 = vadd.f32 %v569, %v641
    %v650 = vadd.f32 %v570, %v642
    %v651 = vadd.f32 %v571, %v643
    %v652 = vadd.f32 %v572, %v644
    %v653 = vadd.f32 %v573, %v645
    %v654 = vadd.f32 %v574, %v646
    %655 = vset.pattern.permute.xlu0 6
    %656 = vperm.xlu0 %655, %v159
    %v657 = vpop.permute.xlu0 %656
    %659 = vset.pattern.permute.xlu0 6
    %660 = vperm.xlu0 %659, %v160
    %v661 = vpop.permute.xlu0 %660
    %663 = vset.pattern.permute.xlu0 6
    %664 = vperm.xlu0 %663, %v161
    %v665 = vpop.permute.xlu0 %664
    %667 = vset.pattern.permute.xlu0 6
    %668 = vperm.xlu0 %667, %v162
    %v669 = vpop.permute.xlu0 %668
    %671 = vset.pattern.permute.xlu0 6
    %672 = vperm.xlu0 %671, %v163
    %v673 = vpop.permute.xlu0 %672
    %675 = vset.pattern.permute.xlu0 6
    %676 = vperm.xlu0 %675, %v164
    %v677 = vpop.permute.xlu0 %676
    %679 = vset.pattern.permute.xlu0 6
    %680 = vperm.xlu0 %679, %v165
    %v681 = vpop.permute.xlu0 %680
    %683 = vset.pattern.permute.xlu0 6
    %684 = vperm.xlu0 %683, %v166
    %v685 = vpop.permute.xlu0 %684
    %v687 = vlaneseq
    %v688 = vshrl.u32 %v687, 7
    %v689 = vsub.s32 6, %v688
    %v690 = vrot.slane %v167, %v689
    %v691 = vlaneseq
    %v692 = vshrl.u32 %v691, 7
    %v693 = vsub.s32 6, %v692
    %v694 = vrot.slane %v168, %v693
    %v695 = vlaneseq
    %v696 = vshrl.u32 %v695, 7
    %v697 = vsub.s32 6, %v696
    %v698 = vrot.slane %v169, %v697
    %v699 = vlaneseq
    %v700 = vshrl.u32 %v699, 7
    %v701 = vsub.s32 6, %v700
    %v702 = vrot.slane %v170, %v701
    %v703 = vlaneseq
    %v704 = vshrl.u32 %v703, 7
    %v705 = vsub.s32 6, %v704
    %v706 = vrot.slane %v171, %v705
    %v707 = vlaneseq
    %v708 = vshrl.u32 %v707, 7
    %v709 = vsub.s32 6, %v708
    %v710 = vrot.slane %v172, %v709
    %v711 = vlaneseq
    %v712 = vshrl.u32 %v711, 7
    %v713 = vsub.s32 6, %v712
    %v714 = vrot.slane %v173, %v713
    %v715 = vlaneseq
    %v716 = vshrl.u32 %v715, 7
    %v717 = vsub.s32 6, %v716
    %v718 = vrot.slane %v174, %v717
    %v719 = vmul.f32 %v657, %v690
    %v720 = vmul.f32 %v661, %v694
    %v721 = vmul.f32 %v665, %v698
    %v722 = vmul.f32 %v669, %v702
    %v723 = vmul.f32 %v673, %v706
    %v724 = vmul.f32 %v677, %v710
    %v725 = vmul.f32 %v681, %v714
    %v726 = vmul.f32 %v685, %v718
    %v727 = vadd.f32 %v647, %v719
    %v728 = vadd.f32 %v648, %v720
    %v729 = vadd.f32 %v649, %v721
    %v730 = vadd.f32 %v650, %v722
    %v731 = vadd.f32 %v651, %v723
    %v732 = vadd.f32 %v652, %v724
    %v733 = vadd.f32 %v653, %v725
    %v734 = vadd.f32 %v654, %v726
    %735 = vset.pattern.permute.xlu0 7
    %736 = vperm.xlu0 %735, %v159
    %v737 = vpop.permute.xlu0 %736
    %739 = vset.pattern.permute.xlu0 7
    %740 = vperm.xlu0 %739, %v160
    %v741 = vpop.permute.xlu0 %740
    %743 = vset.pattern.permute.xlu0 7
    %744 = vperm.xlu0 %743, %v161
    %v745 = vpop.permute.xlu0 %744
    %747 = vset.pattern.permute.xlu0 7
    %748 = vperm.xlu0 %747, %v162
    %v749 = vpop.permute.xlu0 %748
    %751 = vset.pattern.permute.xlu0 7
    %752 = vperm.xlu0 %751, %v163
    %v753 = vpop.permute.xlu0 %752
    %755 = vset.pattern.permute.xlu0 7
    %756 = vperm.xlu0 %755, %v164
    %v757 = vpop.permute.xlu0 %756
    %759 = vset.pattern.permute.xlu0 7
    %760 = vperm.xlu0 %759, %v165
    %v761 = vpop.permute.xlu0 %760
    %763 = vset.pattern.permute.xlu0 7
    %764 = vperm.xlu0 %763, %v166
    %v765 = vpop.permute.xlu0 %764
    %v767 = vlaneseq
    %v768 = vshrl.u32 %v767, 7
    %v769 = vsub.s32 7, %v768
    %v770 = vrot.slane %v167, %v769
    %v771 = vlaneseq
    %v772 = vshrl.u32 %v771, 7
    %v773 = vsub.s32 7, %v772
    %v774 = vrot.slane %v168, %v773
    %v775 = vlaneseq
    %v776 = vshrl.u32 %v775, 7
    %v777 = vsub.s32 7, %v776
    %v778 = vrot.slane %v169, %v777
    %v779 = vlaneseq
    %v780 = vshrl.u32 %v779, 7
    %v781 = vsub.s32 7, %v780
    %v782 = vrot.slane %v170, %v781
    %v783 = vlaneseq
    %v784 = vshrl.u32 %v783, 7
    %v785 = vsub.s32 7, %v784
    %v786 = vrot.slane %v171, %v785
    %v787 = vlaneseq
    %v788 = vshrl.u32 %v787, 7
    %v789 = vsub.s32 7, %v788
    %v790 = vrot.slane %v172, %v789
    %v791 = vlaneseq
    %v792 = vshrl.u32 %v791, 7
    %v793 = vsub.s32 7, %v792
    %v794 = vrot.slane %v173, %v793
    %v795 = vlaneseq
    %v796 = vshrl.u32 %v795, 7
    %v797 = vsub.s32 7, %v796
    %v798 = vrot.slane %v174, %v797
    %v799 = vmul.f32 %v737, %v770
    %v800 = vmul.f32 %v741, %v774
    %v801 = vmul.f32 %v745, %v778
    %v802 = vmul.f32 %v749, %v782
    %v803 = vmul.f32 %v753, %v786
    %v804 = vmul.f32 %v757, %v790
    %v805 = vmul.f32 %v761, %v794
    %v806 = vmul.f32 %v765, %v798
    %v807 = vadd.f32 %v727, %v799
    %v808 = vadd.f32 %v728, %v800
    %v809 = vadd.f32 %v729, %v801
    %v810 = vadd.f32 %v730, %v802
    %v811 = vadd.f32 %v731, %v803
    %v812 = vadd.f32 %v732, %v804
    %v813 = vadd.f32 %v733, %v805
    %v814 = vadd.f32 %v734, %v806
    %v815 = vld [vmem:[#allocation5] sm:$0xff]
    %v816 = vld [vmem:[#allocation5 + $0x8] sm:$0x7]
    %v817 = vld [vmem:[%s3] sm:$0x1]
    %v819 = vlaneseq
    %v820 = vshrl.u32 %v819, 7
    %v821 = vsub.s32 0, %v820
    %v822 = vrot.slane %v817, %v821
    %vm824 = vcmask 89088
    %v826 = vsel %vm824, %v807, 0
    %v829 = vsel %vm824, %v808, 0
    %v832 = vsel %vm824, %v809, 0
    %v835 = vsel %vm824, %v810, 0
    %v838 = vsel %vm824, %v811, 0
    %v841 = vsel %vm824, %v812, 0
    %v844 = vsel %vm824, %v813, 0
    %v847 = vsel %vm824, %v814, 0
    %vm849 = vcmask 1042432
    %v851 = vsel %vm849, %v816, 0
    %853 = vmatprep.subr.mxu0 0.0
    %854 = vmatpush1.msra.mxu0 0.0
    %855 = vmatprep.subr.mxu0 0.0
    %856 = vmatpush1.msra.mxu0 0.0
    %857 = vmatprep.subr.mxu0 0.0
    %858 = vmatpush1.msra.mxu0 0.0
    %859 = vmatprep.subr.mxu0 0.0
    %860 = vmatpush1.msra.mxu0 0.0
    %861 = vmatprep.subr.mxu0 0.0
    %862 = vmatpush1.msra.mxu0 0.0
    %863 = vmatprep.subr.mxu0 0.0
    %864 = vmatpush1.msra.mxu0 0.0
    %865 = vmatprep.subr.mxu0 0.0
    %866 = vmatpush1.msra.mxu0 0.0
    %867 = vmatprep.subr.mxu0 0.0
    %868 = vmatpush1.msra.mxu0 0.0
    %869 = vmatprep.subr.mxu0 0.0
    %870 = vmatpush1.msra.mxu0 0.0
    %871 = vmatprep.subr.mxu0 0.0
    %872 = vmatpush1.msra.mxu0 0.0
    %873 = vmatprep.subr.mxu0 0.0
    %874 = vmatpush1.msra.mxu0 0.0
    %875 = vmatprep.subr.mxu0 0.0
    %876 = vmatpush1.msra.mxu0 0.0
    %877 = vmatprep.subr.mxu0 0.0
    %878 = vmatpush1.msra.mxu0 0.0
    %879 = vmatprep.subr.mxu0 0.0
    %880 = vmatpush1.msra.mxu0 0.0
    %881 = vmatprep.subr.mxu0 0.0
    %882 = vmatpush1.msra.mxu0 %v851
    %883 = vmatprep.subr.mxu0 0.0
    %884 = vmatpush1.msra.mxu0 %v815
    %885 = vmatprep.subr.mxu0 0.0
    %886 = vmatpush2.msra.mxu0 0.0
    %887 = vmatprep.subr.mxu0 0.0
    %888 = vmatpush2.msra.mxu0 0.0
    %889 = vmatprep.subr.mxu0 0.0
    %890 = vmatpush2.msra.mxu0 0.0
    %891 = vmatprep.subr.mxu0 0.0
    %892 = vmatpush2.msra.mxu0 0.0
    %893 = vmatprep.subr.mxu0 0.0
    %894 = vmatpush2.msra.mxu0 0.0
    %895 = vmatprep.subr.mxu0 0.0
    %896 = vmatpush2.msra.mxu0 0.0
    %897 = vmatprep.subr.mxu0 0.0
    %898 = vmatpush2.msra.mxu0 0.0
    %899 = vmatprep.subr.mxu0 0.0
    %900 = vmatpush2.msra.mxu0 0.0
    %901 = vmatprep.subr.mxu0 0.0
    %902 = vmatpush2.msra.mxu0 0.0
    %903 = vmatprep.subr.mxu0 0.0
    %904 = vmatpush2.msra.mxu0 0.0
    %905 = vmatprep.subr.mxu0 0.0
    %906 = vmatpush2.msra.mxu0 0.0
    %907 = vmatprep.subr.mxu0 0.0
    %908 = vmatpush2.msra.mxu0 0.0
    %909 = vmatprep.subr.mxu0 0.0
    %910 = vmatpush2.msra.mxu0 0.0
    %911 = vmatprep.subr.mxu0 0.0
    %912 = vmatpush2.msra.mxu0 0.0
    %913 = vmatprep.subr.mxu0 0.0
    %914 = vmatpush2.msra.mxu0 0.0
    %915 = vmatprep.subr.mxu0 0.0
    %916 = vmatpush2.msra.mxu0 0.0
    %917 = vmatprep.mubr.f32.mxu0 0.0
    %918 = vmatmul.mubr.f32.gmra.mxu0 %v826
    %v919 = vpop.f32.mrf.mxu0
    %v920 = vadd.f32 %v822, %v919
    %v921 = vpop.f32.mrf.mxu0
    %922 = vmatprep.mubr.f32.mxu0 0.0
    %923 = vmatmul.mubr.f32.gmra.mxu0 %v829
    %v924 = vpop.f32.mrf.mxu0
    %v925 = vadd.f32 %v822, %v924
    %v926 = vpop.f32.mrf.mxu0
    %927 = vmatprep.mubr.f32.mxu0 0.0
    %928 = vmatmul.mubr.f32.gmra.mxu0 %v832
    %v929 = vpop.f32.mrf.mxu0
    %v930 = vadd.f32 %v822, %v929
    %v931 = vpop.f32.mrf.mxu0
    %932 = vmatprep.mubr.f32.mxu0 0.0
    %933 = vmatmul.mubr.f32.gmra.mxu0 %v835
    %v934 = vpop.f32.mrf.mxu0
    %v935 = vadd.f32 %v822, %v934
    %v936 = vpop.f32.mrf.mxu0
    %937 = vmatprep.mubr.f32.mxu0 0.0
    %938 = vmatmul.mubr.f32.gmra.mxu0 %v838
    %v939 = vpop.f32.mrf.mxu0
    %v940 = vadd.f32 %v822, %v939
    %v941 = vpop.f32.mrf.mxu0
    %942 = vmatprep.mubr.f32.mxu0 0.0
    %943 = vmatmul.mubr.f32.gmra.mxu0 %v841
    %v944 = vpop.f32.mrf.mxu0
    %v945 = vadd.f32 %v822, %v944
    %v946 = vpop.f32.mrf.mxu0
    %947 = vmatprep.mubr.f32.mxu0 0.0
    %948 = vmatmul.mubr.f32.gmra.mxu0 %v844
    %v949 = vpop.f32.mrf.mxu0
    %v950 = vadd.f32 %v822, %v949
    %v951 = vpop.f32.mrf.mxu0
    %952 = vmatprep.mubr.f32.mxu0 0.0
    %953 = vmatmul.mubr.f32.gmra.mxu0 %v847
    %v954 = vpop.f32.mrf.mxu0
    %v955 = vadd.f32 %v822, %v954
    %v956 = vpop.f32.mrf.mxu0
    %957 = vdwg.mxu0
    %v958 = vmax.f32 %v920, 0.0
    %v959 = vmax.f32 %v925, 0.0
    %v960 = vmax.f32 %v930, 0.0
    %v961 = vmax.f32 %v935, 0.0
    %v962 = vmax.f32 %v940, 0.0
    %v963 = vmax.f32 %v945, 0.0
    %v964 = vmax.f32 %v950, 0.0
    %v965 = vmax.f32 %v955, 0.0
    %v966 = vlaneseq
    %v967 = vshrl.u32 %v966, 7
    %v968 = vsub.s32 0, %v967
    %v969 = vrot.slane %v958, %v968
    %v970 = vlaneseq
    %v971 = vshrl.u32 %v970, 7
    %v972 = vsub.s32 0, %v971
    %v973 = vrot.slane %v959, %v972
    %v974 = vlaneseq
    %v975 = vshrl.u32 %v974, 7
    %v976 = vsub.s32 0, %v975
    %v977 = vrot.slane %v960, %v976
    %v978 = vlaneseq
    %v979 = vshrl.u32 %v978, 7
    %v980 = vsub.s32 0, %v979
    %v981 = vrot.slane %v961, %v980
    %v982 = vlaneseq
    %v983 = vshrl.u32 %v982, 7
    %v984 = vsub.s32 0, %v983
    %v985 = vrot.slane %v962, %v984
    %v986 = vlaneseq
    %v987 = vshrl.u32 %v986, 7
    %v988 = vsub.s32 0, %v987
    %v989 = vrot.slane %v963, %v988
    %v990 = vlaneseq
    %v991 = vshrl.u32 %v990, 7
    %v992 = vsub.s32 0, %v991
    %v993 = vrot.slane %v964, %v992
    %v994 = vlaneseq
    %v995 = vshrl.u32 %v994, 7
    %v996 = vsub.s32 0, %v995
    %v997 = vrot.slane %v965, %v996
    %v998 = vmul.f32 %v178, %v969
    %v999 = vmul.f32 %v183, %v973
    %v1000 = vmul.f32 %v188, %v977
    %v1001 = vmul.f32 %v193, %v981
    %v1002 = vmul.f32 %v198, %v985
    %v1003 = vmul.f32 %v203, %v989
    %v1004 = vmul.f32 %v208, %v993
    %v1005 = vmul.f32 %v213, %v997
    %v1006 = vlaneseq
    %v1007 = vshrl.u32 %v1006, 7
    %v1008 = vsub.s32 1, %v1007
    %v1009 = vrot.slane %v958, %v1008
    %v1010 = vlaneseq
    %v1011 = vshrl.u32 %v1010, 7
    %v1012 = vsub.s32 1, %v1011
    %v1013 = vrot.slane %v959, %v1012
    %v1014 = vlaneseq
    %v1015 = vshrl.u32 %v1014, 7
    %v1016 = vsub.s32 1, %v1015
    %v1017 = vrot.slane %v960, %v1016
    %v1018 = vlaneseq
    %v1019 = vshrl.u32 %v1018, 7
    %v1020 = vsub.s32 1, %v1019
    %v1021 = vrot.slane %v961, %v1020
    %v1022 = vlaneseq
    %v1023 = vshrl.u32 %v1022, 7
    %v1024 = vsub.s32 1, %v1023
    %v1025 = vrot.slane %v962, %v1024
    %v1026 = vlaneseq
    %v1027 = vshrl.u32 %v1026, 7
    %v1028 = vsub.s32 1, %v1027
    %v1029 = vrot.slane %v963, %v1028
    %v1030 = vlaneseq
    %v1031 = vshrl.u32 %v1030, 7
    %v1032 = vsub.s32 1, %v1031
    %v1033 = vrot.slane %v964, %v1032
    %v1034 = vlaneseq
    %v1035 = vshrl.u32 %v1034, 7
    %v1036 = vsub.s32 1, %v1035
    %v1037 = vrot.slane %v965, %v1036
    %v1038 = vmul.f32 %v257, %v1009
    %v1039 = vmul.f32 %v261, %v1013
    %v1040 = vmul.f32 %v265, %v1017
    %v1041 = vmul.f32 %v269, %v1021
    %v1042 = vmul.f32 %v273, %v1025
    %v1043 = vmul.f32 %v277, %v1029
    %v1044 = vmul.f32 %v281, %v1033
    %v1045 = vmul.f32 %v285, %v1037
    %v1046 = vadd.f32 %v998, %v1038
    %v1047 = vadd.f32 %v999, %v1039
    %v1048 = vadd.f32 %v1000, %v1040
    %v1049 = vadd.f32 %v1001, %v1041
    %v1050 = vadd.f32 %v1002, %v1042
    %v1051 = vadd.f32 %v1003, %v1043
    %v1052 = vadd.f32 %v1004, %v1044
    %v1053 = vadd.f32 %v1005, %v1045
    %v1054 = vlaneseq
    %v1055 = vshrl.u32 %v1054, 7
    %v1056 = vsub.s32 2, %v1055
    %v1057 = vrot.slane %v958, %v1056
    %v1058 = vlaneseq
    %v1059 = vshrl.u32 %v1058, 7
    %v1060 = vsub.s32 2, %v1059
    %v1061 = vrot.slane %v959, %v1060
    %v1062 = vlaneseq
    %v1063 = vshrl.u32 %v1062, 7
    %v1064 = vsub.s32 2, %v1063
    %v1065 = vrot.slane %v960, %v1064
    %v1066 = vlaneseq
    %v1067 = vshrl.u32 %v1066, 7
    %v1068 = vsub.s32 2, %v1067
    %v1069 = vrot.slane %v961, %v1068
    %v1070 = vlaneseq
    %v1071 = vshrl.u32 %v1070, 7
    %v1072 = vsub.s32 2, %v1071
    %v1073 = vrot.slane %v962, %v1072
    %v1074 = vlaneseq
    %v1075 = vshrl.u32 %v1074, 7
    %v1076 = vsub.s32 2, %v1075
    %v1077 = vrot.slane %v963, %v1076
    %v1078 = vlaneseq
    %v1079 = vshrl.u32 %v1078, 7
    %v1080 = vsub.s32 2, %v1079
    %v1081 = vrot.slane %v964, %v1080
    %v1082 = vlaneseq
    %v1083 = vshrl.u32 %v1082, 7
    %v1084 = vsub.s32 2, %v1083
    %v1085 = vrot.slane %v965, %v1084
    %v1086 = vmul.f32 %v337, %v1057
    %v1087 = vmul.f32 %v341, %v1061
    %v1088 = vmul.f32 %v345, %v1065
    %v1089 = vmul.f32 %v349, %v1069
    %v1090 = vmul.f32 %v353, %v1073
    %v1091 = vmul.f32 %v357, %v1077
    %v1092 = vmul.f32 %v361, %v1081
    %v1093 = vmul.f32 %v365, %v1085
    %v1094 = vadd.f32 %v1046, %v1086
    %v1095 = vadd.f32 %v1047, %v1087
    %v1096 = vadd.f32 %v1048, %v1088
    %v1097 = vadd.f32 %v1049, %v1089
    %v1098 = vadd.f32 %v1050, %v1090
    %v1099 = vadd.f32 %v1051, %v1091
    %v1100 = vadd.f32 %v1052, %v1092
    %v1101 = vadd.f32 %v1053, %v1093
    %v1102 = vlaneseq
    %v1103 = vshrl.u32 %v1102, 7
    %v1104 = vsub.s32 3, %v1103
    %v1105 = vrot.slane %v958, %v1104
    %v1106 = vlaneseq
    %v1107 = vshrl.u32 %v1106, 7
    %v1108 = vsub.s32 3, %v1107
    %v1109 = vrot.slane %v959, %v1108
    %v1110 = vlaneseq
    %v1111 = vshrl.u32 %v1110, 7
    %v1112 = vsub.s32 3, %v1111
    %v1113 = vrot.slane %v960, %v1112
    %v1114 = vlaneseq
    %v1115 = vshrl.u32 %v1114, 7
    %v1116 = vsub.s32 3, %v1115
    %v1117 = vrot.slane %v961, %v1116
    %v1118 = vlaneseq
    %v1119 = vshrl.u32 %v1118, 7
    %v1120 = vsub.s32 3, %v1119
    %v1121 = vrot.slane %v962, %v1120
    %v1122 = vlaneseq
    %v1123 = vshrl.u32 %v1122, 7
    %v1124 = vsub.s32 3, %v1123
    %v1125 = vrot.slane %v963, %v1124
    %v1126 = vlaneseq
    %v1127 = vshrl.u32 %v1126, 7
    %v1128 = vsub.s32 3, %v1127
    %v1129 = vrot.slane %v964, %v1128
    %v1130 = vlaneseq
    %v1131 = vshrl.u32 %v1130, 7
    %v1132 = vsub.s32 3, %v1131
    %v1133 = vrot.slane %v965, %v1132
    %v1134 = vmul.f32 %v417, %v1105
    %v1135 = vmul.f32 %v421, %v1109
    %v1136 = vmul.f32 %v425, %v1113
    %v1137 = vmul.f32 %v429, %v1117
    %v1138 = vmul.f32 %v433, %v1121
    %v1139 = vmul.f32 %v437, %v1125
    %v1140 = vmul.f32 %v441, %v1129
    %v1141 = vmul.f32 %v445, %v1133
    %v1142 = vadd.f32 %v1094, %v1134
    %v1143 = vadd.f32 %v1095, %v1135
    %v1144 = vadd.f32 %v1096, %v1136
    %v1145 = vadd.f32 %v1097, %v1137
    %v1146 = vadd.f32 %v1098, %v1138
    %v1147 = vadd.f32 %v1099, %v1139
    %v1148 = vadd.f32 %v1100, %v1140
    %v1149 = vadd.f32 %v1101, %v1141
    %v1150 = vlaneseq
    %v1151 = vshrl.u32 %v1150, 7
    %v1152 = vsub.s32 4, %v1151
    %v1153 = vrot.slane %v958, %v1152
    %v1154 = vlaneseq
    %v1155 = vshrl.u32 %v1154, 7
    %v1156 = vsub.s32 4, %v1155
    %v1157 = vrot.slane %v959, %v1156
    %v1158 = vlaneseq
    %v1159 = vshrl.u32 %v1158, 7
    %v1160 = vsub.s32 4, %v1159
    %v1161 = vrot.slane %v960, %v1160
    %v1162 = vlaneseq
    %v1163 = vshrl.u32 %v1162, 7
    %v1164 = vsub.s32 4, %v1163
    %v1165 = vrot.slane %v961, %v1164
    %v1166 = vlaneseq
    %v1167 = vshrl.u32 %v1166, 7
    %v1168 = vsub.s32 4, %v1167
    %v1169 = vrot.slane %v962, %v1168
    %v1170 = vlaneseq
    %v1171 = vshrl.u32 %v1170, 7
    %v1172 = vsub.s32 4, %v1171
    %v1173 = vrot.slane %v963, %v1172
    %v1174 = vlaneseq
    %v1175 = vshrl.u32 %v1174, 7
    %v1176 = vsub.s32 4, %v1175
    %v1177 = vrot.slane %v964, %v1176
    %v1178 = vlaneseq
    %v1179 = vshrl.u32 %v1178, 7
    %v1180 = vsub.s32 4, %v1179
    %v1181 = vrot.slane %v965, %v1180
    %v1182 = vmul.f32 %v497, %v1153
    %v1183 = vmul.f32 %v501, %v1157
    %v1184 = vmul.f32 %v505, %v1161
    %v1185 = vmul.f32 %v509, %v1165
    %v1186 = vmul.f32 %v513, %v1169
    %v1187 = vmul.f32 %v517, %v1173
    %v1188 = vmul.f32 %v521, %v1177
    %v1189 = vmul.f32 %v525, %v1181
    %v1190 = vadd.f32 %v1142, %v1182
    %v1191 = vadd.f32 %v1143, %v1183
    %v1192 = vadd.f32 %v1144, %v1184
    %v1193 = vadd.f32 %v1145, %v1185
    %v1194 = vadd.f32 %v1146, %v1186
    %v1195 = vadd.f32 %v1147, %v1187
    %v1196 = vadd.f32 %v1148, %v1188
    %v1197 = vadd.f32 %v1149, %v1189
    %v1198 = vlaneseq
    %v1199 = vshrl.u32 %v1198, 7
    %v1200 = vsub.s32 5, %v1199
    %v1201 = vrot.slane %v958, %v1200
    %v1202 = vlaneseq
    %v1203 = vshrl.u32 %v1202, 7
    %v1204 = vsub.s32 5, %v1203
    %v1205 = vrot.slane %v959, %v1204
    %v1206 = vlaneseq
    %v1207 = vshrl.u32 %v1206, 7
    %v1208 = vsub.s32 5, %v1207
    %v1209 = vrot.slane %v960, %v1208
    %v1210 = vlaneseq
    %v1211 = vshrl.u32 %v1210, 7
    %v1212 = vsub.s32 5, %v1211
    %v1213 = vrot.slane %v961, %v1212
    %v1214 = vlaneseq
    %v1215 = vshrl.u32 %v1214, 7
    %v1216 = vsub.s32 5, %v1215
    %v1217 = vrot.slane %v962, %v1216
    %v1218 = vlaneseq
    %v1219 = vshrl.u32 %v1218, 7
    %v1220 = vsub.s32 5, %v1219
    %v1221 = vrot.slane %v963, %v1220
    %v1222 = vlaneseq
    %v1223 = vshrl.u32 %v1222, 7
    %v1224 = vsub.s32 5, %v1223
    %v1225 = vrot.slane %v964, %v1224
    %v1226 = vlaneseq
    %v1227 = vshrl.u32 %v1226, 7
    %v1228 = vsub.s32 5, %v1227
    %v1229 = vrot.slane %v965, %v1228
    %v1230 = vmul.f32 %v577, %v1201
    %v1231 = vmul.f32 %v581, %v1205
    %v1232 = vmul.f32 %v585, %v1209
    %v1233 = vmul.f32 %v589, %v1213
    %v1234 = vmul.f32 %v593, %v1217
    %v1235 = vmul.f32 %v597, %v1221
    %v1236 = vmul.f32 %v601, %v1225
    %v1237 = vmul.f32 %v605, %v1229
    %v1238 = vadd.f32 %v1190, %v1230
    %v1239 = vadd.f32 %v1191, %v1231
    %v1240 = vadd.f32 %v1192, %v1232
    %v1241 = vadd.f32 %v1193, %v1233
    %v1242 = vadd.f32 %v1194, %v1234
    %v1243 = vadd.f32 %v1195, %v1235
    %v1244 = vadd.f32 %v1196, %v1236
    %v1245 = vadd.f32 %v1197, %v1237
    %v1246 = vlaneseq
    %v1247 = vshrl.u32 %v1246, 7
    %v1248 = vsub.s32 6, %v1247
    %v1249 = vrot.slane %v958, %v1248
    %v1250 = vlaneseq
    %v1251 = vshrl.u32 %v1250, 7
    %v1252 = vsub.s32 6, %v1251
    %v1253 = vrot.slane %v959, %v1252
    %v1254 = vlaneseq
    %v1255 = vshrl.u32 %v1254, 7
    %v1256 = vsub.s32 6, %v1255
    %v1257 = vrot.slane %v960, %v1256
    %v1258 = vlaneseq
    %v1259 = vshrl.u32 %v1258, 7
    %v1260 = vsub.s32 6, %v1259
    %v1261 = vrot.slane %v961, %v1260
    %v1262 = vlaneseq
    %v1263 = vshrl.u32 %v1262, 7
    %v1264 = vsub.s32 6, %v1263
    %v1265 = vrot.slane %v962, %v1264
    %v1266 = vlaneseq
    %v1267 = vshrl.u32 %v1266, 7
    %v1268 = vsub.s32 6, %v1267
    %v1269 = vrot.slane %v963, %v1268
    %v1270 = vlaneseq
    %v1271 = vshrl.u32 %v1270, 7
    %v1272 = vsub.s32 6, %v1271
    %v1273 = vrot.slane %v964, %v1272
    %v1274 = vlaneseq
    %v1275 = vshrl.u32 %v1274, 7
    %v1276 = vsub.s32 6, %v1275
    %v1277 = vrot.slane %v965, %v1276
    %v1278 = vmul.f32 %v657, %v1249
    %v1279 = vmul.f32 %v661, %v1253
    %v1280 = vmul.f32 %v665, %v1257
    %v1281 = vmul.f32 %v669, %v1261
    %v1282 = vmul.f32 %v673, %v1265
    %v1283 = vmul.f32 %v677, %v1269
    %v1284 = vmul.f32 %v681, %v1273
    %v1285 = vmul.f32 %v685, %v1277
    %v1286 = vadd.f32 %v1238, %v1278
    %v1287 = vadd.f32 %v1239, %v1279
    %v1288 = vadd.f32 %v1240, %v1280
    %v1289 = vadd.f32 %v1241, %v1281
    %v1290 = vadd.f32 %v1242, %v1282
    %v1291 = vadd.f32 %v1243, %v1283
    %v1292 = vadd.f32 %v1244, %v1284
    %v1293 = vadd.f32 %v1245, %v1285
    %v1294 = vlaneseq
    %v1295 = vshrl.u32 %v1294, 7
    %v1296 = vsub.s32 7, %v1295
    %v1297 = vrot.slane %v958, %v1296
    %v1298 = vlaneseq
    %v1299 = vshrl.u32 %v1298, 7
    %v1300 = vsub.s32 7, %v1299
    %v1301 = vrot.slane %v959, %v1300
    %v1302 = vlaneseq
    %v1303 = vshrl.u32 %v1302, 7
    %v1304 = vsub.s32 7, %v1303
    %v1305 = vrot.slane %v960, %v1304
    %v1306 = vlaneseq
    %v1307 = vshrl.u32 %v1306, 7
    %v1308 = vsub.s32 7, %v1307
    %v1309 = vrot.slane %v961, %v1308
    %v1310 = vlaneseq
    %v1311 = vshrl.u32 %v1310, 7
    %v1312 = vsub.s32 7, %v1311
    %v1313 = vrot.slane %v962, %v1312
    %v1314 = vlaneseq
    %v1315 = vshrl.u32 %v1314, 7
    %v1316 = vsub.s32 7, %v1315
    %v1317 = vrot.slane %v963, %v1316
    %v1318 = vlaneseq
    %v1319 = vshrl.u32 %v1318, 7
    %v1320 = vsub.s32 7, %v1319
    %v1321 = vrot.slane %v964, %v1320
    %v1322 = vlaneseq
    %v1323 = vshrl.u32 %v1322, 7
    %v1324 = vsub.s32 7, %v1323
    %v1325 = vrot.slane %v965, %v1324
    %v1326 = vmul.f32 %v737, %v1297
    %v1327 = vmul.f32 %v741, %v1301
    %v1328 = vmul.f32 %v745, %v1305
    %v1329 = vmul.f32 %v749, %v1309
    %v1330 = vmul.f32 %v753, %v1313
    %v1331 = vmul.f32 %v757, %v1317
    %v1332 = vmul.f32 %v761, %v1321
    %v1333 = vmul.f32 %v765, %v1325
    %v1334 = vadd.f32 %v1286, %v1326
    %v1335 = vadd.f32 %v1287, %v1327
    %v1336 = vadd.f32 %v1288, %v1328
    %v1337 = vadd.f32 %v1289, %v1329
    %v1338 = vadd.f32 %v1290, %v1330
    %v1339 = vadd.f32 %v1291, %v1331
    %v1340 = vadd.f32 %v1292, %v1332
    %v1341 = vadd.f32 %v1293, %v1333
    %v1342 = vld [vmem:[%s4] sm:$0xff]
    %v1343 = vld [vmem:[%s4 + $0x8] sm:$0xff]
    %v1344 = vld [vmem:[%s4 + $0x10] sm:$0xff]
    %v1345 = vld [vmem:[%s4 + $0x18] sm:$0xff]
    %v1346 = vld [vmem:[%s4 + $0x20] sm:$0xff]
    %v1347 = vld [vmem:[%s4 + $0x28] sm:$0xff]
    %v1348 = vld [vmem:[%s4 + $0x30] sm:$0xff]
    %v1349 = vld [vmem:[%s4 + $0x38] sm:$0xff]
    %v1350 = vld [vmem:[%s4 + $0x40] sm:$0xff]
    %v1351 = vld [vmem:[%s4 + $0x48] sm:$0xff]
    %v1352 = vld [vmem:[%s4 + $0x50] sm:$0xff]
    %v1353 = vld [vmem:[%s4 + $0x58] sm:$0xff]
    %v1354 = vld [vmem:[%s4 + $0x60] sm:$0xff]
    %v1355 = vld [vmem:[%s4 + $0x68] sm:$0xff]
    %v1356 = vld [vmem:[%s4 + $0x70] sm:$0xff]
    %v1357 = vld [vmem:[%s4 + $0x78] sm:$0xff]
    %v1358 = vld [vmem:[%s5] sm:$0x1]
    %v1360 = vlaneseq
    %v1361 = vshrl.u32 %v1360, 7
    %v1362 = vsub.s32 0, %v1361
    %v1363 = vrot.slane %v1358, %v1362
    %1365 = vmatprep.subr.mxu0 0.0
    %1366 = vmatpush1.msra.mxu0 %v1357
    %1367 = vmatprep.subr.mxu0 0.0
    %1368 = vmatpush1.msra.mxu0 %v1356
    %1369 = vmatprep.subr.mxu0 0.0
    %1370 = vmatpush1.msra.mxu0 %v1355
    %1371 = vmatprep.subr.mxu0 0.0
    %1372 = vmatpush1.msra.mxu0 %v1354
    %1373 = vmatprep.subr.mxu0 0.0
    %1374 = vmatpush1.msra.mxu0 %v1353
    %1375 = vmatprep.subr.mxu0 0.0
    %1376 = vmatpush1.msra.mxu0 %v1352
    %1377 = vmatprep.subr.mxu0 0.0
    %1378 = vmatpush1.msra.mxu0 %v1351
    %1379 = vmatprep.subr.mxu0 0.0
    %1380 = vmatpush1.msra.mxu0 %v1350
    %1381 = vmatprep.subr.mxu0 0.0
    %1382 = vmatpush1.msra.mxu0 %v1349
    %1383 = vmatprep.subr.mxu0 0.0
    %1384 = vmatpush1.msra.mxu0 %v1348
    %1385 = vmatprep.subr.mxu0 0.0
    %1386 = vmatpush1.msra.mxu0 %v1347
    %1387 = vmatprep.subr.mxu0 0.0
    %1388 = vmatpush1.msra.mxu0 %v1346
    %1389 = vmatprep.subr.mxu0 0.0
    %1390 = vmatpush1.msra.mxu0 %v1345
    %1391 = vmatprep.subr.mxu0 0.0
    %1392 = vmatpush1.msra.mxu0 %v1344
    %1393 = vmatprep.subr.mxu0 0.0
    %1394 = vmatpush1.msra.mxu0 %v1343
    %1395 = vmatprep.subr.mxu0 0.0
    %1396 = vmatpush1.msra.mxu0 %v1342
    %1397 = vmatprep.subr.mxu0 0.0
    %1398 = vmatpush2.msra.mxu0 0.0
    %1399 = vmatprep.subr.mxu0 0.0
    %1400 = vmatpush2.msra.mxu0 0.0
    %1401 = vmatprep.subr.mxu0 0.0
    %1402 = vmatpush2.msra.mxu0 0.0
    %1403 = vmatprep.subr.mxu0 0.0
    %1404 = vmatpush2.msra.mxu0 0.0
    %1405 = vmatprep.subr.mxu0 0.0
    %1406 = vmatpush2.msra.mxu0 0.0
    %1407 = vmatprep.subr.mxu0 0.0
    %1408 = vmatpush2.msra.mxu0 0.0
    %1409 = vmatprep.subr.mxu0 0.0
    %1410 = vmatpush2.msra.mxu0 0.0
    %1411 = vmatprep.subr.mxu0 0.0
    %1412 = vmatpush2.msra.mxu0 0.0
    %1413 = vmatprep.subr.mxu0 0.0
    %1414 = vmatpush2.msra.mxu0 0.0
    %1415 = vmatprep.subr.mxu0 0.0
    %1416 = vmatpush2.msra.mxu0 0.0
    %1417 = vmatprep.subr.mxu0 0.0
    %1418 = vmatpush2.msra.mxu0 0.0
    %1419 = vmatprep.subr.mxu0 0.0
    %1420 = vmatpush2.msra.mxu0 0.0
    %1421 = vmatprep.subr.mxu0 0.0
    %1422 = vmatpush2.msra.mxu0 0.0
    %1423 = vmatprep.subr.mxu0 0.0
    %1424 = vmatpush2.msra.mxu0 0.0
    %1425 = vmatprep.subr.mxu0 0.0
    %1426 = vmatpush2.msra.mxu0 0.0
    %1427 = vmatprep.subr.mxu0 0.0
    %1428 = vmatpush2.msra.mxu0 0.0
    %1429 = vmatprep.mubr.f32.mxu0 0.0
    %1430 = vmatmul.mubr.f32.gmra.mxu0 %v1334
    %v1431 = vpop.f32.mrf.mxu0
    %v1432 = vadd.f32 %v1363, %v1431
    %v1433 = vpop.f32.mrf.mxu0
    %1434 = vmatprep.mubr.f32.mxu0 0.0
    %1435 = vmatmul.mubr.f32.gmra.mxu0 %v1335
    %v1436 = vpop.f32.mrf.mxu0
    %v1437 = vadd.f32 %v1363, %v1436
    %v1438 = vpop.f32.mrf.mxu0
    %1439 = vmatprep.mubr.f32.mxu0 0.0
    %1440 = vmatmul.mubr.f32.gmra.mxu0 %v1336
    %v1441 = vpop.f32.mrf.mxu0
    %v1442 = vadd.f32 %v1363, %v1441
    %v1443 = vpop.f32.mrf.mxu0
    %1444 = vmatprep.mubr.f32.mxu0 0.0
    %1445 = vmatmul.mubr.f32.gmra.mxu0 %v1337
    %v1446 = vpop.f32.mrf.mxu0
    %v1447 = vadd.f32 %v1363, %v1446
    %v1448 = vpop.f32.mrf.mxu0
    %1449 = vmatprep.mubr.f32.mxu0 0.0
    %1450 = vmatmul.mubr.f32.gmra.mxu0 %v1338
    %v1451 = vpop.f32.mrf.mxu0
    %v1452 = vadd.f32 %v1363, %v1451
    %v1453 = vpop.f32.mrf.mxu0
    %1454 = vmatprep.mubr.f32.mxu0 0.0
    %1455 = vmatmul.mubr.f32.gmra.mxu0 %v1339
    %v1456 = vpop.f32.mrf.mxu0
    %v1457 = vadd.f32 %v1363, %v1456
    %v1458 = vpop.f32.mrf.mxu0
    %1459 = vmatprep.mubr.f32.mxu0 0.0
    %1460 = vmatmul.mubr.f32.gmra.mxu0 %v1340
    %v1461 = vpop.f32.mrf.mxu0
    %v1462 = vadd.f32 %v1363, %v1461
    %v1463 = vpop.f32.mrf.mxu0
    %1464 = vmatprep.mubr.f32.mxu0 0.0
    %1465 = vmatmul.mubr.f32.gmra.mxu0 %v1341
    %v1466 = vpop.f32.mrf.mxu0
    %v1467 = vadd.f32 %v1363, %v1466
    %v1468 = vpop.f32.mrf.mxu0
    %1469 = vdwg.mxu0
    %v1470 = vmax.f32 %v1432, 0.0
    %v1471 = vmax.f32 %v1437, 0.0
    %v1472 = vmax.f32 %v1442, 0.0
    %v1473 = vmax.f32 %v1447, 0.0
    %v1474 = vmax.f32 %v1452, 0.0
    %v1475 = vmax.f32 %v1457, 0.0
    %v1476 = vmax.f32 %v1462, 0.0
    %v1477 = vmax.f32 %v1467, 0.0
    %v1478 = vlaneseq
    %v1479 = vshrl.u32 %v1478, 7
    %v1480 = vsub.s32 0, %v1479
    %v1481 = vrot.slane %v1470, %v1480
    %v1482 = vlaneseq
    %v1483 = vshrl.u32 %v1482, 7
    %v1484 = vsub.s32 0, %v1483
    %v1485 = vrot.slane %v1471, %v1484
    %v1486 = vlaneseq
    %v1487 = vshrl.u32 %v1486, 7
    %v1488 = vsub.s32 0, %v1487
    %v1489 = vrot.slane %v1472, %v1488
    %v1490 = vlaneseq
    %v1491 = vshrl.u32 %v1490, 7
    %v1492 = vsub.s32 0, %v1491
    %v1493 = vrot.slane %v1473, %v1492
    %v1494 = vlaneseq
    %v1495 = vshrl.u32 %v1494, 7
    %v1496 = vsub.s32 0, %v1495
    %v1497 = vrot.slane %v1474, %v1496
    %v1498 = vlaneseq
    %v1499 = vshrl.u32 %v1498, 7
    %v1500 = vsub.s32 0, %v1499
    %v1501 = vrot.slane %v1475, %v1500
    %v1502 = vlaneseq
    %v1503 = vshrl.u32 %v1502, 7
    %v1504 = vsub.s32 0, %v1503
    %v1505 = vrot.slane %v1476, %v1504
    %v1506 = vlaneseq
    %v1507 = vshrl.u32 %v1506, 7
    %v1508 = vsub.s32 0, %v1507
    %v1509 = vrot.slane %v1477, %v1508
    %v1510 = vmul.f32 %v178, %v1481
    %v1511 = vmul.f32 %v183, %v1485
    %v1512 = vmul.f32 %v188, %v1489
    %v1513 = vmul.f32 %v193, %v1493
    %v1514 = vmul.f32 %v198, %v1497
    %v1515 = vmul.f32 %v203, %v1501
    %v1516 = vmul.f32 %v208, %v1505
    %v1517 = vmul.f32 %v213, %v1509
    %v1518 = vlaneseq
    %v1519 = vshrl.u32 %v1518, 7
    %v1520 = vsub.s32 1, %v1519
    %v1521 = vrot.slane %v1470, %v1520
    %v1522 = vlaneseq
    %v1523 = vshrl.u32 %v1522, 7
    %v1524 = vsub.s32 1, %v1523
    %v1525 = vrot.slane %v1471, %v1524
    %v1526 = vlaneseq
    %v1527 = vshrl.u32 %v1526, 7
    %v1528 = vsub.s32 1, %v1527
    %v1529 = vrot.slane %v1472, %v1528
    %v1530 = vlaneseq
    %v1531 = vshrl.u32 %v1530, 7
    %v1532 = vsub.s32 1, %v1531
    %v1533 = vrot.slane %v1473, %v1532
    %v1534 = vlaneseq
    %v1535 = vshrl.u32 %v1534, 7
    %v1536 = vsub.s32 1, %v1535
    %v1537 = vrot.slane %v1474, %v1536
    %v1538 = vlaneseq
    %v1539 = vshrl.u32 %v1538, 7
    %v1540 = vsub.s32 1, %v1539
    %v1541 = vrot.slane %v1475, %v1540
    %v1542 = vlaneseq
    %v1543 = vshrl.u32 %v1542, 7
    %v1544 = vsub.s32 1, %v1543
    %v1545 = vrot.slane %v1476, %v1544
    %v1546 = vlaneseq
    %v1547 = vshrl.u32 %v1546, 7
    %v1548 = vsub.s32 1, %v1547
    %v1549 = vrot.slane %v1477, %v1548
    %v1550 = vmul.f32 %v257, %v1521
    %v1551 = vmul.f32 %v261, %v1525
    %v1552 = vmul.f32 %v265, %v1529
    %v1553 = vmul.f32 %v269, %v1533
    %v1554 = vmul.f32 %v273, %v1537
    %v1555 = vmul.f32 %v277, %v1541
    %v1556 = vmul.f32 %v281, %v1545
    %v1557 = vmul.f32 %v285, %v1549
    %v1558 = vadd.f32 %v1510, %v1550
    %v1559 = vadd.f32 %v1511, %v1551
    %v1560 = vadd.f32 %v1512, %v1552
    %v1561 = vadd.f32 %v1513, %v1553
    %v1562 = vadd.f32 %v1514, %v1554
    %v1563 = vadd.f32 %v1515, %v1555
    %v1564 = vadd.f32 %v1516, %v1556
    %v1565 = vadd.f32 %v1517, %v1557
    %v1566 = vlaneseq
    %v1567 = vshrl.u32 %v1566, 7
    %v1568 = vsub.s32 2, %v1567
    %v1569 = vrot.slane %v1470, %v1568
    %v1570 = vlaneseq
    %v1571 = vshrl.u32 %v1570, 7
    %v1572 = vsub.s32 2, %v1571
    %v1573 = vrot.slane %v1471, %v1572
    %v1574 = vlaneseq
    %v1575 = vshrl.u32 %v1574, 7
    %v1576 = vsub.s32 2, %v1575
    %v1577 = vrot.slane %v1472, %v1576
    %v1578 = vlaneseq
    %v1579 = vshrl.u32 %v1578, 7
    %v1580 = vsub.s32 2, %v1579
    %v1581 = vrot.slane %v1473, %v1580
    %v1582 = vlaneseq
    %v1583 = vshrl.u32 %v1582, 7
    %v1584 = vsub.s32 2, %v1583
    %v1585 = vrot.slane %v1474, %v1584
    %v1586 = vlaneseq
    %v1587 = vshrl.u32 %v1586, 7
    %v1588 = vsub.s32 2, %v1587
    %v1589 = vrot.slane %v1475, %v1588
    %v1590 = vlaneseq
    %v1591 = vshrl.u32 %v1590, 7
    %v1592 = vsub.s32 2, %v1591
    %v1593 = vrot.slane %v1476, %v1592
    %v1594 = vlaneseq
    %v1595 = vshrl.u32 %v1594, 7
    %v1596 = vsub.s32 2, %v1595
    %v1597 = vrot.slane %v1477, %v1596
    %v1598 = vmul.f32 %v337, %v1569
    %v1599 = vmul.f32 %v341, %v1573
    %v1600 = vmul.f32 %v345, %v1577
    %v1601 = vmul.f32 %v349, %v1581
    %v1602 = vmul.f32 %v353, %v1585
    %v1603 = vmul.f32 %v357, %v1589
    %v1604 = vmul.f32 %v361, %v1593
    %v1605 = vmul.f32 %v365, %v1597
    %v1606 = vadd.f32 %v1558, %v1598
    %v1607 = vadd.f32 %v1559, %v1599
    %v1608 = vadd.f32 %v1560, %v1600
    %v1609 = vadd.f32 %v1561, %v1601
    %v1610 = vadd.f32 %v1562, %v1602
    %v1611 = vadd.f32 %v1563, %v1603
    %v1612 = vadd.f32 %v1564, %v1604
    %v1613 = vadd.f32 %v1565, %v1605
    %v1614 = vlaneseq
    %v1615 = vshrl.u32 %v1614, 7
    %v1616 = vsub.s32 3, %v1615
    %v1617 = vrot.slane %v1470, %v1616
    %v1618 = vlaneseq
    %v1619 = vshrl.u32 %v1618, 7
    %v1620 = vsub.s32 3, %v1619
    %v1621 = vrot.slane %v1471, %v1620
    %v1622 = vlaneseq
    %v1623 = vshrl.u32 %v1622, 7
    %v1624 = vsub.s32 3, %v1623
    %v1625 = vrot.slane %v1472, %v1624
    %v1626 = vlaneseq
    %v1627 = vshrl.u32 %v1626, 7
    %v1628 = vsub.s32 3, %v1627
    %v1629 = vrot.slane %v1473, %v1628
    %v1630 = vlaneseq
    %v1631 = vshrl.u32 %v1630, 7
    %v1632 = vsub.s32 3, %v1631
    %v1633 = vrot.slane %v1474, %v1632
    %v1634 = vlaneseq
    %v1635 = vshrl.u32 %v1634, 7
    %v1636 = vsub.s32 3, %v1635
    %v1637 = vrot.slane %v1475, %v1636
    %v1638 = vlaneseq
    %v1639 = vshrl.u32 %v1638, 7
    %v1640 = vsub.s32 3, %v1639
    %v1641 = vrot.slane %v1476, %v1640
    %v1642 = vlaneseq
    %v1643 = vshrl.u32 %v1642, 7
    %v1644 = vsub.s32 3, %v1643
    %v1645 = vrot.slane %v1477, %v1644
    %v1646 = vmul.f32 %v417, %v1617
    %v1647 = vmul.f32 %v421, %v1621
    %v1648 = vmul.f32 %v425, %v1625
    %v1649 = vmul.f32 %v429, %v1629
    %v1650 = vmul.f32 %v433, %v1633
    %v1651 = vmul.f32 %v437, %v1637
    %v1652 = vmul.f32 %v441, %v1641
    %v1653 = vmul.f32 %v445, %v1645
    %v1654 = vadd.f32 %v1606, %v1646
    %v1655 = vadd.f32 %v1607, %v1647
    %v1656 = vadd.f32 %v1608, %v1648
    %v1657 = vadd.f32 %v1609, %v1649
    %v1658 = vadd.f32 %v1610, %v1650
    %v1659 = vadd.f32 %v1611, %v1651
    %v1660 = vadd.f32 %v1612, %v1652
    %v1661 = vadd.f32 %v1613, %v1653
    %v1662 = vlaneseq
    %v1663 = vshrl.u32 %v1662, 7
    %v1664 = vsub.s32 4, %v1663
    %v1665 = vrot.slane %v1470, %v1664
    %v1666 = vlaneseq
    %v1667 = vshrl.u32 %v1666, 7
    %v1668 = vsub.s32 4, %v1667
    %v1669 = vrot.slane %v1471, %v1668
    %v1670 = vlaneseq
    %v1671 = vshrl.u32 %v1670, 7
    %v1672 = vsub.s32 4, %v1671
    %v1673 = vrot.slane %v1472, %v1672
    %v1674 = vlaneseq
    %v1675 = vshrl.u32 %v1674, 7
    %v1676 = vsub.s32 4, %v1675
    %v1677 = vrot.slane %v1473, %v1676
    %v1678 = vlaneseq
    %v1679 = vshrl.u32 %v1678, 7
    %v1680 = vsub.s32 4, %v1679
    %v1681 = vrot.slane %v1474, %v1680
    %v1682 = vlaneseq
    %v1683 = vshrl.u32 %v1682, 7
    %v1684 = vsub.s32 4, %v1683
    %v1685 = vrot.slane %v1475, %v1684
    %v1686 = vlaneseq
    %v1687 = vshrl.u32 %v1686, 7
    %v1688 = vsub.s32 4, %v1687
    %v1689 = vrot.slane %v1476, %v1688
    %v1690 = vlaneseq
    %v1691 = vshrl.u32 %v1690, 7
    %v1692 = vsub.s32 4, %v1691
    %v1693 = vrot.slane %v1477, %v1692
    %v1694 = vmul.f32 %v497, %v1665
    %v1695 = vmul.f32 %v501, %v1669
    %v1696 = vmul.f32 %v505, %v1673
    %v1697 = vmul.f32 %v509, %v1677
    %v1698 = vmul.f32 %v513, %v1681
    %v1699 = vmul.f32 %v517, %v1685
    %v1700 = vmul.f32 %v521, %v1689
    %v1701 = vmul.f32 %v525, %v1693
    %v1702 = vadd.f32 %v1654, %v1694
    %v1703 = vadd.f32 %v1655, %v1695
    %v1704 = vadd.f32 %v1656, %v1696
    %v1705 = vadd.f32 %v1657, %v1697
    %v1706 = vadd.f32 %v1658, %v1698
    %v1707 = vadd.f32 %v1659, %v1699
    %v1708 = vadd.f32 %v1660, %v1700
    %v1709 = vadd.f32 %v1661, %v1701
    %v1710 = vlaneseq
    %v1711 = vshrl.u32 %v1710, 7
    %v1712 = vsub.s32 5, %v1711
    %v1713 = vrot.slane %v1470, %v1712
    %v1714 = vlaneseq
    %v1715 = vshrl.u32 %v1714, 7
    %v1716 = vsub.s32 5, %v1715
    %v1717 = vrot.slane %v1471, %v1716
    %v1718 = vlaneseq
    %v1719 = vshrl.u32 %v1718, 7
    %v1720 = vsub.s32 5, %v1719
    %v1721 = vrot.slane %v1472, %v1720
    %v1722 = vlaneseq
    %v1723 = vshrl.u32 %v1722, 7
    %v1724 = vsub.s32 5, %v1723
    %v1725 = vrot.slane %v1473, %v1724
    %v1726 = vlaneseq
    %v1727 = vshrl.u32 %v1726, 7
    %v1728 = vsub.s32 5, %v1727
    %v1729 = vrot.slane %v1474, %v1728
    %v1730 = vlaneseq
    %v1731 = vshrl.u32 %v1730, 7
    %v1732 = vsub.s32 5, %v1731
    %v1733 = vrot.slane %v1475, %v1732
    %v1734 = vlaneseq
    %v1735 = vshrl.u32 %v1734, 7
    %v1736 = vsub.s32 5, %v1735
    %v1737 = vrot.slane %v1476, %v1736
    %v1738 = vlaneseq
    %v1739 = vshrl.u32 %v1738, 7
    %v1740 = vsub.s32 5, %v1739
    %v1741 = vrot.slane %v1477, %v1740
    %v1742 = vmul.f32 %v577, %v1713
    %v1743 = vmul.f32 %v581, %v1717
    %v1744 = vmul.f32 %v585, %v1721
    %v1745 = vmul.f32 %v589, %v1725
    %v1746 = vmul.f32 %v593, %v1729
    %v1747 = vmul.f32 %v597, %v1733
    %v1748 = vmul.f32 %v601, %v1737
    %v1749 = vmul.f32 %v605, %v1741
    %v1750 = vadd.f32 %v1702, %v1742
    %v1751 = vadd.f32 %v1703, %v1743
    %v1752 = vadd.f32 %v1704, %v1744
    %v1753 = vadd.f32 %v1705, %v1745
    %v1754 = vadd.f32 %v1706, %v1746
    %v1755 = vadd.f32 %v1707, %v1747
    %v1756 = vadd.f32 %v1708, %v1748
    %v1757 = vadd.f32 %v1709, %v1749
    %v1758 = vlaneseq
    %v1759 = vshrl.u32 %v1758, 7
    %v1760 = vsub.s32 6, %v1759
    %v1761 = vrot.slane %v1470, %v1760
    %v1762 = vlaneseq
    %v1763 = vshrl.u32 %v1762, 7
    %v1764 = vsub.s32 6, %v1763
    %v1765 = vrot.slane %v1471, %v1764
    %v1766 = vlaneseq
    %v1767 = vshrl.u32 %v1766, 7
    %v1768 = vsub.s32 6, %v1767
    %v1769 = vrot.slane %v1472, %v1768
    %v1770 = vlaneseq
    %v1771 = vshrl.u32 %v1770, 7
    %v1772 = vsub.s32 6, %v1771
    %v1773 = vrot.slane %v1473, %v1772
    %v1774 = vlaneseq
    %v1775 = vshrl.u32 %v1774, 7
    %v1776 = vsub.s32 6, %v1775
    %v1777 = vrot.slane %v1474, %v1776
    %v1778 = vlaneseq
    %v1779 = vshrl.u32 %v1778, 7
    %v1780 = vsub.s32 6, %v1779
    %v1781 = vrot.slane %v1475, %v1780
    %v1782 = vlaneseq
    %v1783 = vshrl.u32 %v1782, 7
    %v1784 = vsub.s32 6, %v1783
    %v1785 = vrot.slane %v1476, %v1784
    %v1786 = vlaneseq
    %v1787 = vshrl.u32 %v1786, 7
    %v1788 = vsub.s32 6, %v1787
    %v1789 = vrot.slane %v1477, %v1788
    %v1790 = vmul.f32 %v657, %v1761
    %v1791 = vmul.f32 %v661, %v1765
    %v1792 = vmul.f32 %v665, %v1769
    %v1793 = vmul.f32 %v669, %v1773
    %v1794 = vmul.f32 %v673, %v1777
    %v1795 = vmul.f32 %v677, %v1781
    %v1796 = vmul.f32 %v681, %v1785
    %v1797 = vmul.f32 %v685, %v1789
    %v1798 = vadd.f32 %v1750, %v1790
    %v1799 = vadd.f32 %v1751, %v1791
    %v1800 = vadd.f32 %v1752, %v1792
    %v1801 = vadd.f32 %v1753, %v1793
    %v1802 = vadd.f32 %v1754, %v1794
    %v1803 = vadd.f32 %v1755, %v1795
    %v1804 = vadd.f32 %v1756, %v1796
    %v1805 = vadd.f32 %v1757, %v1797
    %v1806 = vlaneseq
    %v1807 = vshrl.u32 %v1806, 7
    %v1808 = vsub.s32 7, %v1807
    %v1809 = vrot.slane %v1470, %v1808
    %v1810 = vlaneseq
    %v1811 = vshrl.u32 %v1810, 7
    %v1812 = vsub.s32 7, %v1811
    %v1813 = vrot.slane %v1471, %v1812
    %v1814 = vlaneseq
    %v1815 = vshrl.u32 %v1814, 7
    %v1816 = vsub.s32 7, %v1815
    %v1817 = vrot.slane %v1472, %v1816
    %v1818 = vlaneseq
    %v1819 = vshrl.u32 %v1818, 7
    %v1820 = vsub.s32 7, %v1819
    %v1821 = vrot.slane %v1473, %v1820
    %v1822 = vlaneseq
    %v1823 = vshrl.u32 %v1822, 7
    %v1824 = vsub.s32 7, %v1823
    %v1825 = vrot.slane %v1474, %v1824
    %v1826 = vlaneseq
    %v1827 = vshrl.u32 %v1826, 7
    %v1828 = vsub.s32 7, %v1827
    %v1829 = vrot.slane %v1475, %v1828
    %v1830 = vlaneseq
    %v1831 = vshrl.u32 %v1830, 7
    %v1832 = vsub.s32 7, %v1831
    %v1833 = vrot.slane %v1476, %v1832
    %v1834 = vlaneseq
    %v1835 = vshrl.u32 %v1834, 7
    %v1836 = vsub.s32 7, %v1835
    %v1837 = vrot.slane %v1477, %v1836
    %v1838 = vmul.f32 %v737, %v1809
    %v1839 = vmul.f32 %v741, %v1813
    %v1840 = vmul.f32 %v745, %v1817
    %v1841 = vmul.f32 %v749, %v1821
    %v1842 = vmul.f32 %v753, %v1825
    %v1843 = vmul.f32 %v757, %v1829
    %v1844 = vmul.f32 %v761, %v1833
    %v1845 = vmul.f32 %v765, %v1837
    %v1846 = vadd.f32 %v1798, %v1838
    %v1847 = vadd.f32 %v1799, %v1839
    %v1848 = vadd.f32 %v1800, %v1840
    %v1849 = vadd.f32 %v1801, %v1841
    %v1850 = vadd.f32 %v1802, %v1842
    %v1851 = vadd.f32 %v1803, %v1843
    %v1852 = vadd.f32 %v1804, %v1844
    %v1853 = vadd.f32 %v1805, %v1845
    %v1854 = vld [vmem:[%s6] sm:$0xff]
    %v1855 = vld [vmem:[%s6 + $0x8] sm:$0xff]
    %v1856 = vld [vmem:[%s6 + $0x10] sm:$0xff]
    %v1857 = vld [vmem:[%s6 + $0x18] sm:$0xff]
    %v1858 = vld [vmem:[%s6 + $0x20] sm:$0xff]
    %v1859 = vld [vmem:[%s6 + $0x28] sm:$0xff]
    %v1860 = vld [vmem:[%s6 + $0x30] sm:$0xff]
    %v1861 = vld [vmem:[%s6 + $0x38] sm:$0xff]
    %v1862 = vld [vmem:[%s6 + $0x40] sm:$0xff]
    %v1863 = vld [vmem:[%s6 + $0x48] sm:$0xff]
    %v1864 = vld [vmem:[%s6 + $0x50] sm:$0xff]
    %v1865 = vld [vmem:[%s6 + $0x58] sm:$0xff]
    %v1866 = vld [vmem:[%s6 + $0x60] sm:$0xff]
    %v1867 = vld [vmem:[%s6 + $0x68] sm:$0xff]
    %v1868 = vld [vmem:[%s6 + $0x70] sm:$0xff]
    %v1869 = vld [vmem:[%s6 + $0x78] sm:$0xff]
    %v1870 = vld [vmem:[%s7] sm:$0x1]
    %v1872 = vlaneseq
    %v1873 = vshrl.u32 %v1872, 7
    %v1874 = vsub.s32 0, %v1873
    %v1875 = vrot.slane %v1870, %v1874
    %1877 = vmatprep.subr.mxu0 0.0
    %1878 = vmatpush1.msra.mxu0 %v1869
    %1879 = vmatprep.subr.mxu0 0.0
    %1880 = vmatpush1.msra.mxu0 %v1868
    %1881 = vmatprep.subr.mxu0 0.0
    %1882 = vmatpush1.msra.mxu0 %v1867
    %1883 = vmatprep.subr.mxu0 0.0
    %1884 = vmatpush1.msra.mxu0 %v1866
    %1885 = vmatprep.subr.mxu0 0.0
    %1886 = vmatpush1.msra.mxu0 %v1865
    %1887 = vmatprep.subr.mxu0 0.0
    %1888 = vmatpush1.msra.mxu0 %v1864
    %1889 = vmatprep.subr.mxu0 0.0
    %1890 = vmatpush1.msra.mxu0 %v1863
    %1891 = vmatprep.subr.mxu0 0.0
    %1892 = vmatpush1.msra.mxu0 %v1862
    %1893 = vmatprep.subr.mxu0 0.0
    %1894 = vmatpush1.msra.mxu0 %v1861
    %1895 = vmatprep.subr.mxu0 0.0
    %1896 = vmatpush1.msra.mxu0 %v1860
    %1897 = vmatprep.subr.mxu0 0.0
    %1898 = vmatpush1.msra.mxu0 %v1859
    %1899 = vmatprep.subr.mxu0 0.0
    %1900 = vmatpush1.msra.mxu0 %v1858
    %1901 = vmatprep.subr.mxu0 0.0
    %1902 = vmatpush1.msra.mxu0 %v1857
    %1903 = vmatprep.subr.mxu0 0.0
    %1904 = vmatpush1.msra.mxu0 %v1856
    %1905 = vmatprep.subr.mxu0 0.0
    %1906 = vmatpush1.msra.mxu0 %v1855
    %1907 = vmatprep.subr.mxu0 0.0
    %1908 = vmatpush1.msra.mxu0 %v1854
    %1909 = vmatprep.subr.mxu0 0.0
    %1910 = vmatpush2.msra.mxu0 0.0
    %1911 = vmatprep.subr.mxu0 0.0
    %1912 = vmatpush2.msra.mxu0 0.0
    %1913 = vmatprep.subr.mxu0 0.0
    %1914 = vmatpush2.msra.mxu0 0.0
    %1915 = vmatprep.subr.mxu0 0.0
    %1916 = vmatpush2.msra.mxu0 0.0
    %1917 = vmatprep.subr.mxu0 0.0
    %1918 = vmatpush2.msra.mxu0 0.0
    %1919 = vmatprep.subr.mxu0 0.0
    %1920 = vmatpush2.msra.mxu0 0.0
    %1921 = vmatprep.subr.mxu0 0.0
    %1922 = vmatpush2.msra.mxu0 0.0
    %1923 = vmatprep.subr.mxu0 0.0
    %1924 = vmatpush2.msra.mxu0 0.0
    %1925 = vmatprep.subr.mxu0 0.0
    %1926 = vmatpush2.msra.mxu0 0.0
    %1927 = vmatprep.subr.mxu0 0.0
    %1928 = vmatpush2.msra.mxu0 0.0
    %1929 = vmatprep.subr.mxu0 0.0
    %1930 = vmatpush2.msra.mxu0 0.0
    %1931 = vmatprep.subr.mxu0 0.0
    %1932 = vmatpush2.msra.mxu0 0.0
    %1933 = vmatprep.subr.mxu0 0.0
    %1934 = vmatpush2.msra.mxu0 0.0
    %1935 = vmatprep.subr.mxu0 0.0
    %1936 = vmatpush2.msra.mxu0 0.0
    %1937 = vmatprep.subr.mxu0 0.0
    %1938 = vmatpush2.msra.mxu0 0.0
    %1939 = vmatprep.subr.mxu0 0.0
    %1940 = vmatpush2.msra.mxu0 0.0
    %1941 = vmatprep.mubr.f32.mxu0 0.0
    %1942 = vmatmul.mubr.f32.gmra.mxu0 %v1846
    %v1943 = vpop.f32.mrf.mxu0
    %v1944 = vadd.f32 %v1875, %v1943
    %v1945 = vpop.f32.mrf.mxu0
    %1946 = vmatprep.mubr.f32.mxu0 0.0
    %1947 = vmatmul.mubr.f32.gmra.mxu0 %v1847
    %v1948 = vpop.f32.mrf.mxu0
    %v1949 = vadd.f32 %v1875, %v1948
    %v1950 = vpop.f32.mrf.mxu0
    %1951 = vmatprep.mubr.f32.mxu0 0.0
    %1952 = vmatmul.mubr.f32.gmra.mxu0 %v1848
    %v1953 = vpop.f32.mrf.mxu0
    %v1954 = vadd.f32 %v1875, %v1953
    %v1955 = vpop.f32.mrf.mxu0
    %1956 = vmatprep.mubr.f32.mxu0 0.0
    %1957 = vmatmul.mubr.f32.gmra.mxu0 %v1849
    %v1958 = vpop.f32.mrf.mxu0
    %v1959 = vadd.f32 %v1875, %v1958
    %v1960 = vpop.f32.mrf.mxu0
    %1961 = vmatprep.mubr.f32.mxu0 0.0
    %1962 = vmatmul.mubr.f32.gmra.mxu0 %v1850
    %v1963 = vpop.f32.mrf.mxu0
    %v1964 = vadd.f32 %v1875, %v1963
    %v1965 = vpop.f32.mrf.mxu0
    %1966 = vmatprep.mubr.f32.mxu0 0.0
    %1967 = vmatmul.mubr.f32.gmra.mxu0 %v1851
    %v1968 = vpop.f32.mrf.mxu0
    %v1969 = vadd.f32 %v1875, %v1968
    %v1970 = vpop.f32.mrf.mxu0
    %1971 = vmatprep.mubr.f32.mxu0 0.0
    %1972 = vmatmul.mubr.f32.gmra.mxu0 %v1852
    %v1973 = vpop.f32.mrf.mxu0
    %v1974 = vadd.f32 %v1875, %v1973
    %v1975 = vpop.f32.mrf.mxu0
    %1976 = vmatprep.mubr.f32.mxu0 0.0
    %1977 = vmatmul.mubr.f32.gmra.mxu0 %v1853
    %v1978 = vpop.f32.mrf.mxu0
    %v1979 = vadd.f32 %v1875, %v1978
    %v1980 = vpop.f32.mrf.mxu0
    %1981 = vdwg.mxu0
    %v1982 = vmax.f32 %v1944, 0.0
    %v1983 = vmax.f32 %v1949, 0.0
    %v1984 = vmax.f32 %v1954, 0.0
    %v1985 = vmax.f32 %v1959, 0.0
    %v1986 = vmax.f32 %v1964, 0.0
    %v1987 = vmax.f32 %v1969, 0.0
    %v1988 = vmax.f32 %v1974, 0.0
    %v1989 = vmax.f32 %v1979, 0.0
    %v1990 = vld [vmem:[%s8] sm:$0xff]
    %v1991 = vld [vmem:[%s8 + $0x8] sm:$0xff]
    %v1992 = vld [vmem:[%s8 + $0x10] sm:$0xff]
    %v1993 = vld [vmem:[%s8 + $0x18] sm:$0xff]
    %v1994 = vld [vmem:[%s8 + $0x20] sm:$0xff]
    %v1995 = vld [vmem:[%s8 + $0x28] sm:$0xff]
    %v1996 = vld [vmem:[%s8 + $0x30] sm:$0xff]
    %v1997 = vld [vmem:[%s8 + $0x38] sm:$0xff]
    %v1998 = vld [vmem:[%s8 + $0x40] sm:$0xff]
    %v1999 = vld [vmem:[%s8 + $0x48] sm:$0xff]
    %v2000 = vld [vmem:[%s8 + $0x50] sm:$0xff]
    %v2001 = vld [vmem:[%s8 + $0x58] sm:$0xff]
    %v2002 = vld [vmem:[%s8 + $0x60] sm:$0xff]
    %v2003 = vld [vmem:[%s8 + $0x68] sm:$0xff]
    %v2004 = vld [vmem:[%s8 + $0x70] sm:$0xff]
    %v2005 = vld [vmem:[%s8 + $0x78] sm:$0xff]
    %2006 = vmatprep.subr.mxu0 0.0
    %2007 = vmatpush1.msra.mxu0 %v2005
    %2008 = vmatprep.subr.mxu0 0.0
    %2009 = vmatpush1.msra.mxu0 %v2004
    %2010 = vmatprep.subr.mxu0 0.0
    %2011 = vmatpush1.msra.mxu0 %v2003
    %2012 = vmatprep.subr.mxu0 0.0
    %2013 = vmatpush1.msra.mxu0 %v2002
    %2014 = vmatprep.subr.mxu0 0.0
    %2015 = vmatpush1.msra.mxu0 %v2001
    %2016 = vmatprep.subr.mxu0 0.0
    %2017 = vmatpush1.msra.mxu0 %v2000
    %2018 = vmatprep.subr.mxu0 0.0
    %2019 = vmatpush1.msra.mxu0 %v1999
    %2020 = vmatprep.subr.mxu0 0.0
    %2021 = vmatpush1.msra.mxu0 %v1998
    %2022 = vmatprep.subr.mxu0 0.0
    %2023 = vmatpush1.msra.mxu0 %v1997
    %2024 = vmatprep.subr.mxu0 0.0
    %2025 = vmatpush1.msra.mxu0 %v1996
    %2026 = vmatprep.subr.mxu0 0.0
    %2027 = vmatpush1.msra.mxu0 %v1995
    %2028 = vmatprep.subr.mxu0 0.0
    %2029 = vmatpush1.msra.mxu0 %v1994
    %2030 = vmatprep.subr.mxu0 0.0
    %2031 = vmatpush1.msra.mxu0 %v1993
    %2032 = vmatprep.subr.mxu0 0.0
    %2033 = vmatpush1.msra.mxu0 %v1992
    %2034 = vmatprep.subr.mxu0 0.0
    %2035 = vmatpush1.msra.mxu0 %v1991
    %2036 = vmatprep.subr.mxu0 0.0
    %2037 = vmatpush1.msra.mxu0 %v1990
    %2038 = vmatprep.subr.mxu0 0.0
    %2039 = vmatpush2.msra.mxu0 0.0
    %2040 = vmatprep.subr.mxu0 0.0
    %2041 = vmatpush2.msra.mxu0 0.0
    %2042 = vmatprep.subr.mxu0 0.0
    %2043 = vmatpush2.msra.mxu0 0.0
    %2044 = vmatprep.subr.mxu0 0.0
    %2045 = vmatpush2.msra.mxu0 0.0
    %2046 = vmatprep.subr.mxu0 0.0
    %2047 = vmatpush2.msra.mxu0 0.0
    %2048 = vmatprep.subr.mxu0 0.0
    %2049 = vmatpush2.msra.mxu0 0.0
    %2050 = vmatprep.subr.mxu0 0.0
    %2051 = vmatpush2.msra.mxu0 0.0
    %2052 = vmatprep.subr.mxu0 0.0
    %2053 = vmatpush2.msra.mxu0 0.0
    %2054 = vmatprep.subr.mxu0 0.0
    %2055 = vmatpush2.msra.mxu0 0.0
    %2056 = vmatprep.subr.mxu0 0.0
    %2057 = vmatpush2.msra.mxu0 0.0
    %2058 = vmatprep.subr.mxu0 0.0
    %2059 = vmatpush2.msra.mxu0 0.0
    %2060 = vmatprep.subr.mxu0 0.0
    %2061 = vmatpush2.msra.mxu0 0.0
    %2062 = vmatprep.subr.mxu0 0.0
    %2063 = vmatpush2.msra.mxu0 0.0
    %2064 = vmatprep.subr.mxu0 0.0
    %2065 = vmatpush2.msra.mxu0 0.0
    %2066 = vmatprep.subr.mxu0 0.0
    %2067 = vmatpush2.msra.mxu0 0.0
    %2068 = vmatprep.subr.mxu0 0.0
    %2069 = vmatpush2.msra.mxu0 0.0
    %2070 = vmatprep.mubr.f32.mxu0 0.0
    %2071 = vmatmul.mubr.f32.gmra.mxu0 %v1982
    %v2072 = vpop.f32.mrf.mxu0
    %v2073 = vadd.f32 0.0, %v2072
    %v2074 = vpop.f32.mrf.mxu0
    %2075 = vmatprep.mubr.f32.mxu0 0.0
    %2076 = vmatmul.mubr.f32.gmra.mxu0 %v1983
    %v2077 = vpop.f32.mrf.mxu0
    %v2078 = vadd.f32 0.0, %v2077
    %v2079 = vpop.f32.mrf.mxu0
    %2080 = vmatprep.mubr.f32.mxu0 0.0
    %2081 = vmatmul.mubr.f32.gmra.mxu0 %v1984
    %v2082 = vpop.f32.mrf.mxu0
    %v2083 = vadd.f32 0.0, %v2082
    %v2084 = vpop.f32.mrf.mxu0
    %2085 = vmatprep.mubr.f32.mxu0 0.0
    %2086 = vmatmul.mubr.f32.gmra.mxu0 %v1985
    %v2087 = vpop.f32.mrf.mxu0
    %v2088 = vadd.f32 0.0, %v2087
    %v2089 = vpop.f32.mrf.mxu0
    %2090 = vmatprep.mubr.f32.mxu0 0.0
    %2091 = vmatmul.mubr.f32.gmra.mxu0 %v1986
    %v2092 = vpop.f32.mrf.mxu0
    %v2093 = vadd.f32 0.0, %v2092
    %v2094 = vpop.f32.mrf.mxu0
    %2095 = vmatprep.mubr.f32.mxu0 0.0
    %2096 = vmatmul.mubr.f32.gmra.mxu0 %v1987
    %v2097 = vpop.f32.mrf.mxu0
    %v2098 = vadd.f32 0.0, %v2097
    %v2099 = vpop.f32.mrf.mxu0
    %2100 = vmatprep.mubr.f32.mxu0 0.0
    %2101 = vmatmul.mubr.f32.gmra.mxu0 %v1988
    %v2102 = vpop.f32.mrf.mxu0
    %v2103 = vadd.f32 0.0, %v2102
    %v2104 = vpop.f32.mrf.mxu0
    %2105 = vmatprep.mubr.f32.mxu0 0.0
    %2106 = vmatmul.mubr.f32.gmra.mxu0 %v1989
    %v2107 = vpop.f32.mrf.mxu0
    %v2108 = vadd.f32 0.0, %v2107
    %v2109 = vpop.f32.mrf.mxu0
    %2110 = vdwg.mxu0
    %v2111 = vlaneseq
    %v2112 = vshrl.u32 %v2111, 7
    %v2113 = vsub.s32 0, %v2112
    %v2114 = vrot.slane %v2073, %v2113
    %v2115 = vlaneseq
    %v2116 = vshrl.u32 %v2115, 7
    %v2117 = vsub.s32 0, %v2116
    %v2118 = vrot.slane %v2078, %v2117
    %v2119 = vlaneseq
    %v2120 = vshrl.u32 %v2119, 7
    %v2121 = vsub.s32 0, %v2120
    %v2122 = vrot.slane %v2083, %v2121
    %v2123 = vlaneseq
    %v2124 = vshrl.u32 %v2123, 7
    %v2125 = vsub.s32 0, %v2124
    %v2126 = vrot.slane %v2088, %v2125
    %v2127 = vlaneseq
    %v2128 = vshrl.u32 %v2127, 7
    %v2129 = vsub.s32 0, %v2128
    %v2130 = vrot.slane %v2093, %v2129
    %v2131 = vlaneseq
    %v2132 = vshrl.u32 %v2131, 7
    %v2133 = vsub.s32 0, %v2132
    %v2134 = vrot.slane %v2098, %v2133
    %v2135 = vlaneseq
    %v2136 = vshrl.u32 %v2135, 7
    %v2137 = vsub.s32 0, %v2136
    %v2138 = vrot.slane %v2103, %v2137
    %v2139 = vlaneseq
    %v2140 = vshrl.u32 %v2139, 7
    %v2141 = vsub.s32 0, %v2140
    %v2142 = vrot.slane %v2108, %v2141
    %v2143 = vmul.f32 %v178, %v2114
    %v2144 = vmul.f32 %v183, %v2118
    %v2145 = vmul.f32 %v188, %v2122
    %v2146 = vmul.f32 %v193, %v2126
    %v2147 = vmul.f32 %v198, %v2130
    %v2148 = vmul.f32 %v203, %v2134
    %v2149 = vmul.f32 %v208, %v2138
    %v2150 = vmul.f32 %v213, %v2142
    %v2151 = vlaneseq
    %v2152 = vshrl.u32 %v2151, 7
    %v2153 = vsub.s32 1, %v2152
    %v2154 = vrot.slane %v2073, %v2153
    %v2155 = vlaneseq
    %v2156 = vshrl.u32 %v2155, 7
    %v2157 = vsub.s32 1, %v2156
    %v2158 = vrot.slane %v2078, %v2157
    %v2159 = vlaneseq
    %v2160 = vshrl.u32 %v2159, 7
    %v2161 = vsub.s32 1, %v2160
    %v2162 = vrot.slane %v2083, %v2161
    %v2163 = vlaneseq
    %v2164 = vshrl.u32 %v2163, 7
    %v2165 = vsub.s32 1, %v2164
    %v2166 = vrot.slane %v2088, %v2165
    %v2167 = vlaneseq
    %v2168 = vshrl.u32 %v2167, 7
    %v2169 = vsub.s32 1, %v2168
    %v2170 = vrot.slane %v2093, %v2169
    %v2171 = vlaneseq
    %v2172 = vshrl.u32 %v2171, 7
    %v2173 = vsub.s32 1, %v2172
    %v2174 = vrot.slane %v2098, %v2173
    %v2175 = vlaneseq
    %v2176 = vshrl.u32 %v2175, 7
    %v2177 = vsub.s32 1, %v2176
    %v2178 = vrot.slane %v2103, %v2177
    %v2179 = vlaneseq
    %v2180 = vshrl.u32 %v2179, 7
    %v2181 = vsub.s32 1, %v2180
    %v2182 = vrot.slane %v2108, %v2181
    %v2183 = vmul.f32 %v257, %v2154
    %v2184 = vmul.f32 %v261, %v2158
    %v2185 = vmul.f32 %v265, %v2162
    %v2186 = vmul.f32 %v269, %v2166
    %v2187 = vmul.f32 %v273, %v2170
    %v2188 = vmul.f32 %v277, %v2174
    %v2189 = vmul.f32 %v281, %v2178
    %v2190 = vmul.f32 %v285, %v2182
    %v2191 = vadd.f32 %v2143, %v2183
    %v2192 = vadd.f32 %v2144, %v2184
    %v2193 = vadd.f32 %v2145, %v2185
    %v2194 = vadd.f32 %v2146, %v2186
    %v2195 = vadd.f32 %v2147, %v2187
    %v2196 = vadd.f32 %v2148, %v2188
    %v2197 = vadd.f32 %v2149, %v2189
    %v2198 = vadd.f32 %v2150, %v2190
    %v2199 = vlaneseq
    %v2200 = vshrl.u32 %v2199, 7
    %v2201 = vsub.s32 2, %v2200
    %v2202 = vrot.slane %v2073, %v2201
    %v2203 = vlaneseq
    %v2204 = vshrl.u32 %v2203, 7
    %v2205 = vsub.s32 2, %v2204
    %v2206 = vrot.slane %v2078, %v2205
    %v2207 = vlaneseq
    %v2208 = vshrl.u32 %v2207, 7
    %v2209 = vsub.s32 2, %v2208
    %v2210 = vrot.slane %v2083, %v2209
    %v2211 = vlaneseq
    %v2212 = vshrl.u32 %v2211, 7
    %v2213 = vsub.s32 2, %v2212
    %v2214 = vrot.slane %v2088, %v2213
    %v2215 = vlaneseq
    %v2216 = vshrl.u32 %v2215, 7
    %v2217 = vsub.s32 2, %v2216
    %v2218 = vrot.slane %v2093, %v2217
    %v2219 = vlaneseq
    %v2220 = vshrl.u32 %v2219, 7
    %v2221 = vsub.s32 2, %v2220
    %v2222 = vrot.slane %v2098, %v2221
    %v2223 = vlaneseq
    %v2224 = vshrl.u32 %v2223, 7
    %v2225 = vsub.s32 2, %v2224
    %v2226 = vrot.slane %v2103, %v2225
    %v2227 = vlaneseq
    %v2228 = vshrl.u32 %v2227, 7
    %v2229 = vsub.s32 2, %v2228
    %v2230 = vrot.slane %v2108, %v2229
    %v2231 = vmul.f32 %v337, %v2202
    %v2232 = vmul.f32 %v341, %v2206
    %v2233 = vmul.f32 %v345, %v2210
    %v2234 = vmul.f32 %v349, %v2214
    %v2235 = vmul.f32 %v353, %v2218
    %v2236 = vmul.f32 %v357, %v2222
    %v2237 = vmul.f32 %v361, %v2226
    %v2238 = vmul.f32 %v365, %v2230
    %v2239 = vadd.f32 %v2191, %v2231
    %v2240 = vadd.f32 %v2192, %v2232
    %v2241 = vadd.f32 %v2193, %v2233
    %v2242 = vadd.f32 %v2194, %v2234
    %v2243 = vadd.f32 %v2195, %v2235
    %v2244 = vadd.f32 %v2196, %v2236
    %v2245 = vadd.f32 %v2197, %v2237
    %v2246 = vadd.f32 %v2198, %v2238
    %v2247 = vlaneseq
    %v2248 = vshrl.u32 %v2247, 7
    %v2249 = vsub.s32 3, %v2248
    %v2250 = vrot.slane %v2073, %v2249
    %v2251 = vlaneseq
    %v2252 = vshrl.u32 %v2251, 7
    %v2253 = vsub.s32 3, %v2252
    %v2254 = vrot.slane %v2078, %v2253
    %v2255 = vlaneseq
    %v2256 = vshrl.u32 %v2255, 7
    %v2257 = vsub.s32 3, %v2256
    %v2258 = vrot.slane %v2083, %v2257
    %v2259 = vlaneseq
    %v2260 = vshrl.u32 %v2259, 7
    %v2261 = vsub.s32 3, %v2260
    %v2262 = vrot.slane %v2088, %v2261
    %v2263 = vlaneseq
    %v2264 = vshrl.u32 %v2263, 7
    %v2265 = vsub.s32 3, %v2264
    %v2266 = vrot.slane %v2093, %v2265
    %v2267 = vlaneseq
    %v2268 = vshrl.u32 %v2267, 7
    %v2269 = vsub.s32 3, %v2268
    %v2270 = vrot.slane %v2098, %v2269
    %v2271 = vlaneseq
    %v2272 = vshrl.u32 %v2271, 7
    %v2273 = vsub.s32 3, %v2272
    %v2274 = vrot.slane %v2103, %v2273
    %v2275 = vlaneseq
    %v2276 = vshrl.u32 %v2275, 7
    %v2277 = vsub.s32 3, %v2276
    %v2278 = vrot.slane %v2108, %v2277
    %v2279 = vmul.f32 %v417, %v2250
    %v2280 = vmul.f32 %v421, %v2254
    %v2281 = vmul.f32 %v425, %v2258
    %v2282 = vmul.f32 %v429, %v2262
    %v2283 = vmul.f32 %v433, %v2266
    %v2284 = vmul.f32 %v437, %v2270
    %v2285 = vmul.f32 %v441, %v2274
    %v2286 = vmul.f32 %v445, %v2278
    %v2287 = vadd.f32 %v2239, %v2279
    %v2288 = vadd.f32 %v2240, %v2280
    %v2289 = vadd.f32 %v2241, %v2281
    %v2290 = vadd.f32 %v2242, %v2282
    %v2291 = vadd.f32 %v2243, %v2283
    %v2292 = vadd.f32 %v2244, %v2284
    %v2293 = vadd.f32 %v2245, %v2285
    %v2294 = vadd.f32 %v2246, %v2286
    %v2295 = vlaneseq
    %v2296 = vshrl.u32 %v2295, 7
    %v2297 = vsub.s32 4, %v2296
    %v2298 = vrot.slane %v2073, %v2297
    %v2299 = vlaneseq
    %v2300 = vshrl.u32 %v2299, 7
    %v2301 = vsub.s32 4, %v2300
    %v2302 = vrot.slane %v2078, %v2301
    %v2303 = vlaneseq
    %v2304 = vshrl.u32 %v2303, 7
    %v2305 = vsub.s32 4, %v2304
    %v2306 = vrot.slane %v2083, %v2305
    %v2307 = vlaneseq
    %v2308 = vshrl.u32 %v2307, 7
    %v2309 = vsub.s32 4, %v2308
    %v2310 = vrot.slane %v2088, %v2309
    %v2311 = vlaneseq
    %v2312 = vshrl.u32 %v2311, 7
    %v2313 = vsub.s32 4, %v2312
    %v2314 = vrot.slane %v2093, %v2313
    %v2315 = vlaneseq
    %v2316 = vshrl.u32 %v2315, 7
    %v2317 = vsub.s32 4, %v2316
    %v2318 = vrot.slane %v2098, %v2317
    %v2319 = vlaneseq
    %v2320 = vshrl.u32 %v2319, 7
    %v2321 = vsub.s32 4, %v2320
    %v2322 = vrot.slane %v2103, %v2321
    %v2323 = vlaneseq
    %v2324 = vshrl.u32 %v2323, 7
    %v2325 = vsub.s32 4, %v2324
    %v2326 = vrot.slane %v2108, %v2325
    %v2327 = vmul.f32 %v497, %v2298
    %v2328 = vmul.f32 %v501, %v2302
    %v2329 = vmul.f32 %v505, %v2306
    %v2330 = vmul.f32 %v509, %v2310
    %v2331 = vmul.f32 %v513, %v2314
    %v2332 = vmul.f32 %v517, %v2318
    %v2333 = vmul.f32 %v521, %v2322
    %v2334 = vmul.f32 %v525, %v2326
    %v2335 = vadd.f32 %v2287, %v2327
    %v2336 = vadd.f32 %v2288, %v2328
    %v2337 = vadd.f32 %v2289, %v2329
    %v2338 = vadd.f32 %v2290, %v2330
    %v2339 = vadd.f32 %v2291, %v2331
    %v2340 = vadd.f32 %v2292, %v2332
    %v2341 = vadd.f32 %v2293, %v2333
    %v2342 = vadd.f32 %v2294, %v2334
    %v2343 = vlaneseq
    %v2344 = vshrl.u32 %v2343, 7
    %v2345 = vsub.s32 5, %v2344
    %v2346 = vrot.slane %v2073, %v2345
    %v2347 = vlaneseq
    %v2348 = vshrl.u32 %v2347, 7
    %v2349 = vsub.s32 5, %v2348
    %v2350 = vrot.slane %v2078, %v2349
    %v2351 = vlaneseq
    %v2352 = vshrl.u32 %v2351, 7
    %v2353 = vsub.s32 5, %v2352
    %v2354 = vrot.slane %v2083, %v2353
    %v2355 = vlaneseq
    %v2356 = vshrl.u32 %v2355, 7
    %v2357 = vsub.s32 5, %v2356
    %v2358 = vrot.slane %v2088, %v2357
    %v2359 = vlaneseq
    %v2360 = vshrl.u32 %v2359, 7
    %v2361 = vsub.s32 5, %v2360
    %v2362 = vrot.slane %v2093, %v2361
    %v2363 = vlaneseq
    %v2364 = vshrl.u32 %v2363, 7
    %v2365 = vsub.s32 5, %v2364
    %v2366 = vrot.slane %v2098, %v2365
    %v2367 = vlaneseq
    %v2368 = vshrl.u32 %v2367, 7
    %v2369 = vsub.s32 5, %v2368
    %v2370 = vrot.slane %v2103, %v2369
    %v2371 = vlaneseq
    %v2372 = vshrl.u32 %v2371, 7
    %v2373 = vsub.s32 5, %v2372
    %v2374 = vrot.slane %v2108, %v2373
    %v2375 = vmul.f32 %v577, %v2346
    %v2376 = vmul.f32 %v581, %v2350
    %v2377 = vmul.f32 %v585, %v2354
    %v2378 = vmul.f32 %v589, %v2358
    %v2379 = vmul.f32 %v593, %v2362
    %v2380 = vmul.f32 %v597, %v2366
    %v2381 = vmul.f32 %v601, %v2370
    %v2382 = vmul.f32 %v605, %v2374
    %v2383 = vadd.f32 %v2335, %v2375
    %v2384 = vadd.f32 %v2336, %v2376
    %v2385 = vadd.f32 %v2337, %v2377
    %v2386 = vadd.f32 %v2338, %v2378
    %v2387 = vadd.f32 %v2339, %v2379
    %v2388 = vadd.f32 %v2340, %v2380
    %v2389 = vadd.f32 %v2341, %v2381
    %v2390 = vadd.f32 %v2342, %v2382
    %v2391 = vlaneseq
    %v2392 = vshrl.u32 %v2391, 7
    %v2393 = vsub.s32 6, %v2392
    %v2394 = vrot.slane %v2073, %v2393
    %v2395 = vlaneseq
    %v2396 = vshrl.u32 %v2395, 7
    %v2397 = vsub.s32 6, %v2396
    %v2398 = vrot.slane %v2078, %v2397
    %v2399 = vlaneseq
    %v2400 = vshrl.u32 %v2399, 7
    %v2401 = vsub.s32 6, %v2400
    %v2402 = vrot.slane %v2083, %v2401
    %v2403 = vlaneseq
    %v2404 = vshrl.u32 %v2403, 7
    %v2405 = vsub.s32 6, %v2404
    %v2406 = vrot.slane %v2088, %v2405
    %v2407 = vlaneseq
    %v2408 = vshrl.u32 %v2407, 7
    %v2409 = vsub.s32 6, %v2408
    %v2410 = vrot.slane %v2093, %v2409
    %v2411 = vlaneseq
    %v2412 = vshrl.u32 %v2411, 7
    %v2413 = vsub.s32 6, %v2412
    %v2414 = vrot.slane %v2098, %v2413
    %v2415 = vlaneseq
    %v2416 = vshrl.u32 %v2415, 7
    %v2417 = vsub.s32 6, %v2416
    %v2418 = vrot.slane %v2103, %v2417
    %v2419 = vlaneseq
    %v2420 = vshrl.u32 %v2419, 7
    %v2421 = vsub.s32 6, %v2420
    %v2422 = vrot.slane %v2108, %v2421
    %v2423 = vmul.f32 %v657, %v2394
    %v2424 = vmul.f32 %v661, %v2398
    %v2425 = vmul.f32 %v665, %v2402
    %v2426 = vmul.f32 %v669, %v2406
    %v2427 = vmul.f32 %v673, %v2410
    %v2428 = vmul.f32 %v677, %v2414
    %v2429 = vmul.f32 %v681, %v2418
    %v2430 = vmul.f32 %v685, %v2422
    %v2431 = vadd.f32 %v2383, %v2423
    %v2432 = vadd.f32 %v2384, %v2424
    %v2433 = vadd.f32 %v2385, %v2425
    %v2434 = vadd.f32 %v2386, %v2426
    %v2435 = vadd.f32 %v2387, %v2427
    %v2436 = vadd.f32 %v2388, %v2428
    %v2437 = vadd.f32 %v2389, %v2429
    %v2438 = vadd.f32 %v2390, %v2430
    %v2439 = vlaneseq
    %v2440 = vshrl.u32 %v2439, 7
    %v2441 = vsub.s32 7, %v2440
    %v2442 = vrot.slane %v2073, %v2441
    %v2443 = vlaneseq
    %v2444 = vshrl.u32 %v2443, 7
    %v2445 = vsub.s32 7, %v2444
    %v2446 = vrot.slane %v2078, %v2445
    %v2447 = vlaneseq
    %v2448 = vshrl.u32 %v2447, 7
    %v2449 = vsub.s32 7, %v2448
    %v2450 = vrot.slane %v2083, %v2449
    %v2451 = vlaneseq
    %v2452 = vshrl.u32 %v2451, 7
    %v2453 = vsub.s32 7, %v2452
    %v2454 = vrot.slane %v2088, %v2453
    %v2455 = vlaneseq
    %v2456 = vshrl.u32 %v2455, 7
    %v2457 = vsub.s32 7, %v2456
    %v2458 = vrot.slane %v2093, %v2457
    %v2459 = vlaneseq
    %v2460 = vshrl.u32 %v2459, 7
    %v2461 = vsub.s32 7, %v2460
    %v2462 = vrot.slane %v2098, %v2461
    %v2463 = vlaneseq
    %v2464 = vshrl.u32 %v2463, 7
    %v2465 = vsub.s32 7, %v2464
    %v2466 = vrot.slane %v2103, %v2465
    %v2467 = vlaneseq
    %v2468 = vshrl.u32 %v2467, 7
    %v2469 = vsub.s32 7, %v2468
    %v2470 = vrot.slane %v2108, %v2469
    %v2471 = vmul.f32 %v737, %v2442
    %v2472 = vmul.f32 %v741, %v2446
    %v2473 = vmul.f32 %v745, %v2450
    %v2474 = vmul.f32 %v749, %v2454
    %v2475 = vmul.f32 %v753, %v2458
    %v2476 = vmul.f32 %v757, %v2462
    %v2477 = vmul.f32 %v761, %v2466
    %v2478 = vmul.f32 %v765, %v2470
    %v2479 = vadd.f32 %v2431, %v2471
    %v2480 = vadd.f32 %v2432, %v2472
    %v2481 = vadd.f32 %v2433, %v2473
    %v2482 = vadd.f32 %v2434, %v2474
    %v2483 = vadd.f32 %v2435, %v2475
    %v2484 = vadd.f32 %v2436, %v2476
    %v2485 = vadd.f32 %v2437, %v2477
    %v2486 = vadd.f32 %v2438, %v2478
    %v2487 = vld [vmem:[%s9] sm:$0x1]
    %v2489 = vlaneseq
    %v2490 = vshrl.u32 %v2489, 7
    %v2491 = vsub.s32 0, %v2490
    %v2492 = vrot.slane %v2487, %v2491
    %v2494 = vadd.f32 %v2479, %v2492
    %v2495 = vadd.f32 %v2480, %v2492
    %v2496 = vadd.f32 %v2481, %v2492
    %v2497 = vadd.f32 %v2482, %v2492
    %v2498 = vadd.f32 %v2483, %v2492
    %v2499 = vadd.f32 %v2484, %v2492
    %v2500 = vadd.f32 %v2485, %v2492
    %v2501 = vadd.f32 %v2486, %v2492
    %v2502 = vmax.f32 %v2494, 0.0
    %v2503 = vmax.f32 %v2495, 0.0
    %v2504 = vmax.f32 %v2496, 0.0
    %v2505 = vmax.f32 %v2497, 0.0
    %v2506 = vmax.f32 %v2498, 0.0
    %v2507 = vmax.f32 %v2499, 0.0
    %v2508 = vmax.f32 %v2500, 0.0
    %v2509 = vmax.f32 %v2501, 0.0
    %vm2510 = vcmask 523264
    %v2511 = vsel %vm2510, %v2502, 0.0
    %v2512 = vrot.slane %v2511, 4
    %v2513 = vadd.f32 %v2511, %v2512
    %v2514 = vrot.slane %v2513, 2
    %v2515 = vadd.f32 %v2513, %v2514
    %v2516 = vrot.slane %v2515, 1
    %v2517 = vadd.f32 %v2515, %v2516
    %v2518 = vsel %vm2510, %v2503, 0.0
    %v2519 = vrot.slane %v2518, 4
    %v2520 = vadd.f32 %v2518, %v2519
    %v2521 = vrot.slane %v2520, 2
    %v2522 = vadd.f32 %v2520, %v2521
    %v2523 = vrot.slane %v2522, 1
    %v2524 = vadd.f32 %v2522, %v2523
    %v2525 = vsel %vm2510, %v2504, 0.0
    %v2526 = vrot.slane %v2525, 4
    %v2527 = vadd.f32 %v2525, %v2526
    %v2528 = vrot.slane %v2527, 2
    %v2529 = vadd.f32 %v2527, %v2528
    %v2530 = vrot.slane %v2529, 1
    %v2531 = vadd.f32 %v2529, %v2530
    %v2532 = vsel %vm2510, %v2505, 0.0
    %v2533 = vrot.slane %v2532, 4
    %v2534 = vadd.f32 %v2532, %v2533
    %v2535 = vrot.slane %v2534, 2
    %v2536 = vadd.f32 %v2534, %v2535
    %v2537 = vrot.slane %v2536, 1
    %v2538 = vadd.f32 %v2536, %v2537
    %v2539 = vsel %vm2510, %v2506, 0.0
    %v2540 = vrot.slane %v2539, 4
    %v2541 = vadd.f32 %v2539, %v2540
    %v2542 = vrot.slane %v2541, 2
    %v2543 = vadd.f32 %v2541, %v2542
    %v2544 = vrot.slane %v2543, 1
    %v2545 = vadd.f32 %v2543, %v2544
    %v2546 = vsel %vm2510, %v2507, 0.0
    %v2547 = vrot.slane %v2546, 4
    %v2548 = vadd.f32 %v2546, %v2547
    %v2549 = vrot.slane %v2548, 2
    %v2550 = vadd.f32 %v2548, %v2549
    %v2551 = vrot.slane %v2550, 1
    %v2552 = vadd.f32 %v2550, %v2551
    %v2553 = vsel %vm2510, %v2508, 0.0
    %v2554 = vrot.slane %v2553, 4
    %v2555 = vadd.f32 %v2553, %v2554
    %v2556 = vrot.slane %v2555, 2
    %v2557 = vadd.f32 %v2555, %v2556
    %v2558 = vrot.slane %v2557, 1
    %v2559 = vadd.f32 %v2557, %v2558
    %v2560 = vsel %vm2510, %v2509, 0.0
    %v2561 = vrot.slane %v2560, 4
    %v2562 = vadd.f32 %v2560, %v2561
    %v2563 = vrot.slane %v2562, 2
    %v2564 = vadd.f32 %v2562, %v2563
    %v2565 = vrot.slane %v2564, 1
    %v2566 = vadd.f32 %v2564, %v2565
    %v2567 = vrcp.pop 8.0
    %v2568 = vmul.f32 %v2517, %v2567
    %v2569 = vmul.f32 %v2524, %v2567
    %v2570 = vmul.f32 %v2531, %v2567
    %v2571 = vmul.f32 %v2538, %v2567
    %v2572 = vmul.f32 %v2545, %v2567
    %v2573 = vmul.f32 %v2552, %v2567
    %v2574 = vmul.f32 %v2559, %v2567
    %v2575 = vmul.f32 %v2566, %v2567
    %v2576 = vld [vmem:[#allocation7] sm:$0xff]
    %v2577 = vld [vmem:[#allocation7 + $0x8] sm:$0xff]
    %v2578 = vld [vmem:[#allocation7 + $0x10] sm:$0xff]
    %v2579 = vld [vmem:[#allocation7 + $0x18] sm:$0xff]
    %v2580 = vld [vmem:[#allocation7 + $0x20] sm:$0xff]
    %v2581 = vld [vmem:[#allocation7 + $0x28] sm:$0xff]
    %v2582 = vld [vmem:[#allocation7 + $0x30] sm:$0xff]
    %v2583 = vld [vmem:[#allocation7 + $0x38] sm:$0xff]
    %v2584 = vld [vmem:[%s11] sm:$0x1]
    %v2586 = vlaneseq
    %v2587 = vshrl.u32 %v2586, 7
    %v2588 = vsub.s32 0, %v2587
    %v2589 = vrot.slane %v2584, %v2588
    %vm2599 = vcmask 1041409
    %v2600 = vsel %vm2599, %v2569, %v2568
    %vm2601 = vcmask 1042434
    %v2602 = vsel %vm2601, %v2570, %v2600
    %vm2603 = vcmask 1043459
    %v2604 = vsel %vm2603, %v2571, %v2602
    %vm2605 = vcmask 1044484
    %v2606 = vsel %vm2605, %v2572, %v2604
    %vm2607 = vcmask 1045509
    %v2608 = vsel %vm2607, %v2573, %v2606
    %vm2609 = vcmask 1046534
    %v2610 = vsel %vm2609, %v2574, %v2608
    %vm2611 = vcmask 1047559
    %v2612 = vsel %vm2611, %v2575, %v2610
    %v2613 = vsel %vm2510, %v2612, 0
    %2615 = vmatprep.subr.mxu0 0.0
    %2616 = vmatpush1.msra.mxu0 0.0
    %2617 = vmatprep.subr.mxu0 0.0
    %2618 = vmatpush1.msra.mxu0 0.0
    %2619 = vmatprep.subr.mxu0 0.0
    %2620 = vmatpush1.msra.mxu0 0.0
    %2621 = vmatprep.subr.mxu0 0.0
    %2622 = vmatpush1.msra.mxu0 0.0
    %2623 = vmatprep.subr.mxu0 0.0
    %2624 = vmatpush1.msra.mxu0 0.0
    %2625 = vmatprep.subr.mxu0 0.0
    %2626 = vmatpush1.msra.mxu0 0.0
    %2627 = vmatprep.subr.mxu0 0.0
    %2628 = vmatpush1.msra.mxu0 0.0
    %2629 = vmatprep.subr.mxu0 0.0
    %2630 = vmatpush1.msra.mxu0 0.0
    %2631 = vmatprep.subr.mxu0 0.0
    %2632 = vmatpush1.msra.mxu0 %v2583
    %2633 = vmatprep.subr.mxu0 0.0
    %2634 = vmatpush1.msra.mxu0 %v2582
    %2635 = vmatprep.subr.mxu0 0.0
    %2636 = vmatpush1.msra.mxu0 %v2581
    %2637 = vmatprep.subr.mxu0 0.0
    %2638 = vmatpush1.msra.mxu0 %v2580
    %2639 = vmatprep.subr.mxu0 0.0
    %2640 = vmatpush1.msra.mxu0 %v2579
    %2641 = vmatprep.subr.mxu0 0.0
    %2642 = vmatpush1.msra.mxu0 %v2578
    %2643 = vmatprep.subr.mxu0 0.0
    %2644 = vmatpush1.msra.mxu0 %v2577
    %2645 = vmatprep.subr.mxu0 0.0
    %2646 = vmatpush1.msra.mxu0 %v2576
    %2647 = vmatprep.subr.mxu0 0.0
    %2648 = vmatpush2.msra.mxu0 0.0
    %2649 = vmatprep.subr.mxu0 0.0
    %2650 = vmatpush2.msra.mxu0 0.0
    %2651 = vmatprep.subr.mxu0 0.0
    %2652 = vmatpush2.msra.mxu0 0.0
    %2653 = vmatprep.subr.mxu0 0.0
    %2654 = vmatpush2.msra.mxu0 0.0
    %2655 = vmatprep.subr.mxu0 0.0
    %2656 = vmatpush2.msra.mxu0 0.0
    %2657 = vmatprep.subr.mxu0 0.0
    %2658 = vmatpush2.msra.mxu0 0.0
    %2659 = vmatprep.subr.mxu0 0.0
    %2660 = vmatpush2.msra.mxu0 0.0
    %2661 = vmatprep.subr.mxu0 0.0
    %2662 = vmatpush2.msra.mxu0 0.0
    %2663 = vmatprep.subr.mxu0 0.0
    %2664 = vmatpush2.msra.mxu0 0.0
    %2665 = vmatprep.subr.mxu0 0.0
    %2666 = vmatpush2.msra.mxu0 0.0
    %2667 = vmatprep.subr.mxu0 0.0
    %2668 = vmatpush2.msra.mxu0 0.0
    %2669 = vmatprep.subr.mxu0 0.0
    %2670 = vmatpush2.msra.mxu0 0.0
    %2671 = vmatprep.subr.mxu0 0.0
    %2672 = vmatpush2.msra.mxu0 0.0
    %2673 = vmatprep.subr.mxu0 0.0
    %2674 = vmatpush2.msra.mxu0 0.0
    %2675 = vmatprep.subr.mxu0 0.0
    %2676 = vmatpush2.msra.mxu0 0.0
    %2677 = vmatprep.subr.mxu0 0.0
    %2678 = vmatpush2.msra.mxu0 0.0
    %2679 = vmatprep.mubr.f32.mxu0 0.0
    %2680 = vmatmul.mubr.f32.gmra.mxu0 %v2613
    %v2681 = vpop.f32.mrf.mxu0
    %v2682 = vadd.f32 %v2589, %v2681
    %v2683 = vpop.f32.mrf.mxu0
    %2684 = vdwg.mxu0
    %v2685 = vmax.f32 %v2682, 0.0
    %v2686 = vld [vmem:[%s12] sm:$0xff]
    %v2687 = vld [vmem:[%s12 + $0x8] sm:$0xff]
    %v2688 = vld [vmem:[%s12 + $0x10] sm:$0xff]
    %v2689 = vld [vmem:[%s12 + $0x18] sm:$0xff]
    %v2690 = vld [vmem:[%s12 + $0x20] sm:$0xff]
    %v2691 = vld [vmem:[%s12 + $0x28] sm:$0xff]
    %v2692 = vld [vmem:[%s12 + $0x30] sm:$0xff]
    %v2693 = vld [vmem:[%s12 + $0x38] sm:$0xff]
    %v2694 = vld [vmem:[%s12 + $0x40] sm:$0xff]
    %v2695 = vld [vmem:[%s12 + $0x48] sm:$0xff]
    %v2696 = vld [vmem:[%s12 + $0x50] sm:$0xff]
    %v2697 = vld [vmem:[%s12 + $0x58] sm:$0xff]
    %v2698 = vld [vmem:[%s12 + $0x60] sm:$0xff]
    %v2699 = vld [vmem:[%s12 + $0x68] sm:$0xff]
    %v2700 = vld [vmem:[%s12 + $0x70] sm:$0xff]
    %v2701 = vld [vmem:[%s12 + $0x78] sm:$0xff]
    %v2702 = vld [vmem:[%s13] sm:$0x1]
    %v2704 = vlaneseq
    %v2705 = vshrl.u32 %v2704, 7
    %v2706 = vsub.s32 0, %v2705
    %v2707 = vrot.slane %v2702, %v2706
    %2709 = vmatprep.subr.mxu0 0.0
    %2710 = vmatpush1.msra.mxu0 %v2701
    %2711 = vmatprep.subr.mxu0 0.0
    %2712 = vmatpush1.msra.mxu0 %v2700
    %2713 = vmatprep.subr.mxu0 0.0
    %2714 = vmatpush1.msra.mxu0 %v2699
    %2715 = vmatprep.subr.mxu0 0.0
    %2716 = vmatpush1.msra.mxu0 %v2698
    %2717 = vmatprep.subr.mxu0 0.0
    %2718 = vmatpush1.msra.mxu0 %v2697
    %2719 = vmatprep.subr.mxu0 0.0
    %2720 = vmatpush1.msra.mxu0 %v2696
    %2721 = vmatprep.subr.mxu0 0.0
    %2722 = vmatpush1.msra.mxu0 %v2695
    %2723 = vmatprep.subr.mxu0 0.0
    %2724 = vmatpush1.msra.mxu0 %v2694
    %2725 = vmatprep.subr.mxu0 0.0
    %2726 = vmatpush1.msra.mxu0 %v2693
    %2727 = vmatprep.subr.mxu0 0.0
    %2728 = vmatpush1.msra.mxu0 %v2692
    %2729 = vmatprep.subr.mxu0 0.0
    %2730 = vmatpush1.msra.mxu0 %v2691
    %2731 = vmatprep.subr.mxu0 0.0
    %2732 = vmatpush1.msra.mxu0 %v2690
    %2733 = vmatprep.subr.mxu0 0.0
    %2734 = vmatpush1.msra.mxu0 %v2689
    %2735 = vmatprep.subr.mxu0 0.0
    %2736 = vmatpush1.msra.mxu0 %v2688
    %2737 = vmatprep.subr.mxu0 0.0
    %2738 = vmatpush1.msra.mxu0 %v2687
    %2739 = vmatprep.subr.mxu0 0.0
    %2740 = vmatpush1.msra.mxu0 %v2686
    %2741 = vmatprep.subr.mxu0 0.0
    %2742 = vmatpush2.msra.mxu0 0.0
    %2743 = vmatprep.subr.mxu0 0.0
    %2744 = vmatpush2.msra.mxu0 0.0
    %2745 = vmatprep.subr.mxu0 0.0
    %2746 = vmatpush2.msra.mxu0 0.0
    %2747 = vmatprep.subr.mxu0 0.0
    %2748 = vmatpush2.msra.mxu0 0.0
    %2749 = vmatprep.subr.mxu0 0.0
    %2750 = vmatpush2.msra.mxu0 0.0
    %2751 = vmatprep.subr.mxu0 0.0
    %2752 = vmatpush2.msra.mxu0 0.0
    %2753 = vmatprep.subr.mxu0 0.0
    %2754 = vmatpush2.msra.mxu0 0.0
    %2755 = vmatprep.subr.mxu0 0.0
    %2756 = vmatpush2.msra.mxu0 0.0
    %2757 = vmatprep.subr.mxu0 0.0
    %2758 = vmatpush2.msra.mxu0 0.0
    %2759 = vmatprep.subr.mxu0 0.0
    %2760 = vmatpush2.msra.mxu0 0.0
    %2761 = vmatprep.subr.mxu0 0.0
    %2762 = vmatpush2.msra.mxu0 0.0
    %2763 = vmatprep.subr.mxu0 0.0
    %2764 = vmatpush2.msra.mxu0 0.0
    %2765 = vmatprep.subr.mxu0 0.0
    %2766 = vmatpush2.msra.mxu0 0.0
    %2767 = vmatprep.subr.mxu0 0.0
    %2768 = vmatpush2.msra.mxu0 0.0
    %2769 = vmatprep.subr.mxu0 0.0
    %2770 = vmatpush2.msra.mxu0 0.0
    %2771 = vmatprep.subr.mxu0 0.0
    %2772 = vmatpush2.msra.mxu0 0.0
    %2773 = vmatprep.mubr.f32.mxu0 0.0
    %2774 = vmatmul.mubr.f32.gmra.mxu0 %v2685
    %v2775 = vpop.f32.mrf.mxu0
    %v2776 = vadd.f32 %v2707, %v2775
    %v2777 = vpop.f32.mrf.mxu0
    %2778 = vdwg.mxu0
    %v2779 = vmax.f32 %v2776, 0.0
    %v2780 = vld [vmem:[%s14] sm:$0x1]
    %v2782 = vlaneseq
    %v2783 = vshrl.u32 %v2782, 7
    %v2784 = vsub.s32 0, %v2783
    %v2785 = vrot.slane %v2780, %v2784
    %v2787 = vmul.f32 %v2779, %v2785
    %v2788 = vsel %vm2510, %v2787, 0.0
    %2789 = vadd.xlane.f32.xlu0 %v2788
    %v2790 = vpop.xlane.xlu0 %2789
    %v2791 = vld [vmem:[#allocation2] sm:$0x1]
    %v2793 = vlaneseq
    %v2794 = vshrl.u32 %v2793, 7
    %v2795 = vsub.s32 0, %v2794
    %v2796 = vrot.slane %v2791, %v2795
    %v2798 = vadd.f32 %v2790, %v2796
    %vm2799 = vcmask 7168
    %2800 = vst.msk [vmem:[%s16] sm:$0xff] %vm2799, %v2798
    // Predicated region
    $region78: #{tpu_custom_call.1} parent=1 // pred_check
      _
    $region79: #{tpu_custom_call.1} parent=1 // pred_check_branch
      %2802 = sbr.rel (0) target = $region81
    $region80: #{tpu_custom_call.1} parent=1 // pred_region
      _
    $region81: #{tpu_custom_call.1} parent=1 // pred_fallthru
      _
    // Predicated region
    $region82: #{tpu_custom_call.1} parent=1 // pred_check
      _
    $region83: #{tpu_custom_call.1} parent=1 // pred_check_branch
      %2804 = sbr.rel (0) target = $region85
    $region84: #{tpu_custom_call.1} parent=1 // pred_region
      _
    $region85: #{tpu_custom_call.1} parent=1 // pred_fallthru
      _
    %2805 = vsyncpa [#allocation4], 1
    %2806 = vsyncpa [#allocation6], 1

</llo_original>
